<compile_context>
chip_gen: v7x
topology: tpu7x:2x2x1
jax: 0.10.0
libtpu: 0.0.40
codegen_flags: <defaults>
</compile_context>

<pallas_src>
import functools

import jax
import jax.numpy as jnp
from jax.experimental import pallas as pl
from jax.experimental.pallas import tpu as pltpu

_LANE = 128
_SUBLANE = 8


def _edge_conv_stage(x, w12, p, h_pad, *, k, negative_slope, idx_mask):
    """One DynamicEdgeConv on VMEM-resident values.

    x:   [N, Cin_pad]  f32 (zero-padded lanes)
    w12: [Cin_pad, 2*h_pad] f32; [:, :h_pad] = W_self, [:, h_pad:] = W_diff
    p:   [8, h_pad]    f32; rows = (bias, bn_scale, bn_shift)
    """
    n = x.shape[0]
    bias, scale, shift = p[0:1, :], p[1:2, :], p[2:3, :]

    # --- kNN distances (ranking only): bf16 Gram matrix on the MXU. ---
    xb = x.astype(jnp.bfloat16)
    xr = xb.astype(jnp.float32)
    sq = jnp.sum(xr * xr, axis=-1, keepdims=True)                       # [N, 1]
    gram = jax.lax.dot_general(xb, xb, (((1,), (1,)), ((), ())),
                               preferred_element_type=jnp.float32)      # [N, N]
    # Clamp rounding noise so the f32->i32 bitcast key below is monotone in the
    # distance (non-negative floats order like their bits).
    dist = jnp.maximum(sq + sq.T - 2.0 * gram, 0.0)                     # [N, N]

    # --- Affine parts of the edge MLP: ONE 2*h_pad-wide matmul (f32). ---
    ab = jnp.dot(x, w12, preferred_element_type=jnp.float32)            # [N, 2H]
    a = ab[:, :h_pad] + bias                                            # x_i @ W_self + b
    b = ab[:, h_pad:]                                                   # x_i @ W_diff

    # --- Iterative top-k, ONE cross-lane reduction per step: pack
    # (quantized distance bits | column index) into an i32 key so a single
    # jnp.min yields both min distance and its argmin column.  The one-hot
    # gather of B is folded into the loop as a running max (bf16 MXU; the
    # one-hot is exact, so it gathers bf16-rounded B values). ---
    col = jax.lax.broadcasted_iota(jnp.int32, (n, n), 1)
    work = (pltpu.bitcast(dist, jnp.int32) & jnp.int32(~idx_mask)) | col
    big = jnp.int32(jnp.iinfo(jnp.int32).max)
    b_bf = b.astype(jnp.bfloat16)
    max_b = None
    for step in range(k):                    # k is small & static -> unrolled
        kmin = jnp.min(work, axis=-1, keepdims=True)                    # [N, 1]
        hit = col == (kmin & idx_mask)       # exactly one column per row
        onehot = jnp.where(hit, 1.0, 0.0).astype(jnp.bfloat16)
        g = jnp.dot(onehot, b_bf, preferred_element_type=jnp.float32)   # [N, H]
        max_b = g if max_b is None else jnp.maximum(max_b, g)
        if step + 1 < k:
            work = jnp.where(hit, big, work)

    # max_j MLP([x_i, x_j - x_i]) = BN(LeakyReLU(A_i - B_i + max_j B_j)):
    # valid because LeakyReLU (slope > 0) and the eval-mode BN affine with
    # positive per-channel scale are monotone increasing per channel.
    y = a - b + max_b
    y = jnp.where(y >= 0, y, negative_slope * y)                        # LeakyReLU
    y = y * scale + shift                                               # BatchNorm1d (eval)
    return y                                                            # Dropout(p=0): no-op


def _feature_extraction_kernel(x_ref,
                               w_a_ref, p_a_ref,
                               w_b_ref, p_b_ref,
                               w_c_ref, p_c_ref,
                               o_ref, *, k, negative_slope, idx_mask, h_pads):
    x = x_ref[...].astype(jnp.float32)
    stages = ((w_a_ref, p_a_ref, h_pads[0]),
              (w_b_ref, p_b_ref, h_pads[1]),
              (w_c_ref, p_c_ref, h_pads[2]))
    for w_ref, p_ref, h_pad in stages:
        x = _edge_conv_stage(x, w_ref[...], p_ref[...], h_pad,
                             k=k, negative_slope=negative_slope, idx_mask=idx_mask)
    o_ref[...] = x.astype(o_ref.dtype)


def _round_up(v, m):
    return ((v + m - 1) // m) * m


def _prep_layer(w, bias, bn_scale, bn_shift, c_in, in_pad, out_pad):
    """Split PyTorch-layout weight [2*Cin, H] into W_self|W_diff, lane-padded."""
    h = w.shape[1]
    w12 = jnp.zeros((in_pad, 2 * out_pad), jnp.float32)
    w12 = w12.at[:c_in, :h].set(w[:c_in, :])                    # on x_i
    w12 = w12.at[:c_in, out_pad:out_pad + h].set(w[c_in:, :])   # on (x_j - x_i)
    p = jnp.zeros((_SUBLANE, out_pad), jnp.float32)
    p = p.at[0, :h].set(bias).at[1, :h].set(bn_scale).at[2, :h].set(bn_shift)
    return w12, p


def feature_extraction(x, params, *, k, negative_slope=0.2):
    """Fused forward of FeatureExtraction (transformer=False, cosine=False,
    dropout=0, batch=None).  params: 3 tuples (w[2*Cin,H], bias[H],
    bn_scale[H], bn_shift[H]) with bn_scale = gamma/sqrt(running_var+eps) (>0)
    and bn_shift = beta - running_mean*bn_scale.  Returns [N, out_features]."""
    n, c_in = x.shape
    dims = [c_in] + [w.shape[1] for (w, _, _, _) in params]
    out_features = dims[-1]
    in_pads = [_round_up(d, _LANE) for d in dims[:-1]]   # per-layer lane padding
    out_pads = [_round_up(d, _LANE) for d in dims[1:]]

    # Zero-padded lanes are inert: they contribute nothing to the distances and
    # all their per-channel params are zero, so they stay zero through every stage.
    xp = jnp.zeros((n, in_pads[0]), jnp.float32).at[:, :c_in].set(x.astype(jnp.float32))

    flat_params = []
    for (w, bb, s, t), cin, ip, op in zip(params, dims[:-1], in_pads, out_pads):
        flat_params.extend(_prep_layer(w, bb, s, t, cin, ip, op))

    idx_bits = max(1, (n - 1).bit_length())
    idx_mask = (1 << idx_bits) - 1           # low mantissa bits traded for the argmin index

    kern = functools.partial(_feature_extraction_kernel, k=k,
                             negative_slope=negative_slope, idx_mask=idx_mask,
                             h_pads=tuple(out_pads))

    def full(shape):
        return pl.BlockSpec(shape, lambda i, _r=len(shape): (0,) * _r)

    in_specs = [full((n, in_pads[0]))]
    for arr in flat_params:
        in_specs.append(full(arr.shape))

    out = pl.pallas_call(
        kern,
        out_shape=jax.ShapeDtypeStruct((n, out_pads[-1]), jnp.float32),
        grid=(1,),
        in_specs=in_specs,
        out_specs=full((n, out_pads[-1])),
        compiler_params=pltpu.CompilerParams(
            dimension_semantics=("arbitrary",),
            vmem_limit_bytes=64 * 1024 * 1024),
    )(xp, *flat_params)
    return out[:, :out_features]


def _init_linear(key, fan_in, fan_out):
    """Deterministic PyTorch-Linear-style init (uniform +- 1/sqrt(fan_in))."""
    kw, kb = jax.random.split(key)
    bound = 1.0 / jnp.sqrt(jnp.float32(fan_in))
    w = jax.random.uniform(kw, (fan_in, fan_out), jnp.float32, -bound, bound)
    b = jax.random.uniform(kb, (fan_out,), jnp.float32, -bound, bound)
    return w, b


def _bn_eval_affine(num_features, eps=1e-5):
    # Default BatchNorm1d init: gamma=1, beta=0, running_mean=0, running_var=1.
    scale = jnp.full((num_features,), 1.0 / jnp.sqrt(1.0 + eps), jnp.float32)
    shift = jnp.zeros((num_features,), jnp.float32)
    return scale, shift


if __name__ == "__main__":
    N, IN_C, HID, OUT, K = 64, 4, 32, 16, 4
    NEG_SLOPE = 0.2

    key = jax.random.PRNGKey(0)
    kx, k1, k2, k3 = jax.random.split(key, 4)

    x = jax.random.normal(kx, (N, IN_C), jnp.float32)

    # conv1: MLP([2*in_channels, hidden]); conv2: MLP([2*hidden, hidden]);
    # conv3: MLP([2*hidden, out_features]).
    w1, b1 = _init_linear(k1, 2 * IN_C, HID)
    w2, b2 = _init_linear(k2, 2 * HID, HID)
    w3, b3 = _init_linear(k3, 2 * HID, OUT)
    s1, t1 = _bn_eval_affine(HID)
    s2, t2 = _bn_eval_affine(HID)
    s3, t3 = _bn_eval_affine(OUT)

    params = [(w1, b1, s1, t1), (w2, b2, s2, t2), (w3, b3, s3, t3)]

    out = feature_extraction(x, params, k=K, negative_slope=NEG_SLOPE)
    out = jax.block_until_ready(out)
    assert out.shape == (N, OUT), out.shape
    print("KERNEL_OK")
</pallas_src>

<mosaic_0001>
module attributes {stable_mosaic.version = 11 : i64} {
  func.func @_feature_extraction_kernel(%arg0: i32, %arg1: memref<64x128xf32, #tpu.memory_space<vmem>>, %arg2: memref<128x256xf32, #tpu.memory_space<vmem>>, %arg3: memref<8x128xf32, #tpu.memory_space<vmem>>, %arg4: memref<128x256xf32, #tpu.memory_space<vmem>>, %arg5: memref<8x128xf32, #tpu.memory_space<vmem>>, %arg6: memref<128x256xf32, #tpu.memory_space<vmem>>, %arg7: memref<8x128xf32, #tpu.memory_space<vmem>>, %arg8: memref<64x128xf32, #tpu.memory_space<vmem>>) attributes {dimension_semantics = [#tpu.dimension_semantics<arbitrary>], iteration_bounds = array<i64: 1>, scalar_prefetch = 0 : i64, scratch_operands = 0 : i64, tpu.core_type = #tpu.core_type<tc>, window_params = [{pipeline_mode = #tpu.pipeline_mode<synchronous>, transform_indices = @transform_0, window_bounds = array<i64: 64, 128>}, {pipeline_mode = #tpu.pipeline_mode<synchronous>, transform_indices = @transform_1, window_bounds = array<i64: 128, 256>}, {pipeline_mode = #tpu.pipeline_mode<synchronous>, transform_indices = @transform_2, window_bounds = array<i64: 8, 128>}, {pipeline_mode = #tpu.pipeline_mode<synchronous>, transform_indices = @transform_3, window_bounds = array<i64: 128, 256>}, {pipeline_mode = #tpu.pipeline_mode<synchronous>, transform_indices = @transform_4, window_bounds = array<i64: 8, 128>}, {pipeline_mode = #tpu.pipeline_mode<synchronous>, transform_indices = @transform_5, window_bounds = array<i64: 128, 256>}, {pipeline_mode = #tpu.pipeline_mode<synchronous>, transform_indices = @transform_6, window_bounds = array<i64: 8, 128>}, {pipeline_mode = #tpu.pipeline_mode<synchronous>, transform_indices = @transform_7, window_bounds = array<i64: 64, 128>}]} {
    %c0 = arith.constant 0 : index
    %c0_0 = arith.constant 0 : index
    %0 = vector.load %arg1[%c0, %c0_0] : memref<64x128xf32, #tpu.memory_space<vmem>>, vector<64x128xf32>
    %c0_1 = arith.constant 0 : index
    %c0_2 = arith.constant 0 : index
    %1 = vector.load %arg2[%c0_1, %c0_2] : memref<128x256xf32, #tpu.memory_space<vmem>>, vector<128x256xf32>
    %c0_3 = arith.constant 0 : index
    %c0_4 = arith.constant 0 : index
    %2 = vector.load %arg3[%c0_3, %c0_4] : memref<8x128xf32, #tpu.memory_space<vmem>>, vector<8x128xf32>
    %3 = vector.extract_strided_slice %2 {offsets = [0, 0], sizes = [1, 128], strides = [1, 1]} : vector<8x128xf32> to vector<1x128xf32>
    %4 = vector.extract_strided_slice %2 {offsets = [1, 0], sizes = [1, 128], strides = [1, 1]} : vector<8x128xf32> to vector<1x128xf32>
    %5 = vector.extract_strided_slice %2 {offsets = [2, 0], sizes = [1, 128], strides = [1, 1]} : vector<8x128xf32> to vector<1x128xf32>
    %6 = arith.truncf %0 : vector<64x128xf32> to vector<64x128xbf16>
    %7 = arith.extf %6 : vector<64x128xbf16> to vector<64x128xf32>
    %8 = arith.mulf %7, %7 : vector<64x128xf32>
    %cst = arith.constant dense<0.000000e+00> : vector<64xf32>
    %9 = vector.multi_reduction <add>, %8, %cst [1] : vector<64x128xf32> to vector<64xf32>
    %10 = vector.shape_cast %9 : vector<64xf32> to vector<64x1xf32>
    %cst_5 = arith.constant dense<0.000000e+00> : vector<64x64xf32>
    %11 = tpu.matmul %6, %6, %cst_5 {dimension_numbers = #tpu.dot_dimension_numbers<[1], [1], [0], [0], [0, 0, 1, 0], [], []>} : vector<64x128xbf16>, vector<64x128xbf16>, vector<64x64xf32> -> vector<64x64xf32>
    %12 = tpu.transpose %10, [1, 0] : vector<64x1xf32> -> vector<1x64xf32>
    %13 = vector.broadcast %10 : vector<64x1xf32> to vector<64x64xf32>
    %14 = vector.broadcast %12 : vector<1x64xf32> to vector<64x64xf32>
    %15 = arith.addf %13, %14 : vector<64x64xf32>
    %cst_6 = arith.constant 2.000000e+00 : f32
    %16 = vector.broadcast %cst_6 : f32 to vector<64x64xf32>
    %17 = arith.mulf %16, %11 : vector<64x64xf32>
    %18 = arith.subf %15, %17 : vector<64x64xf32>
    %cst_7 = arith.constant 0.000000e+00 : f32
    %19 = vector.broadcast %cst_7 : f32 to vector<64x64xf32>
    %20 = arith.maximumf %18, %19 : vector<64x64xf32>
    %cst_8 = arith.constant dense<0.000000e+00> : vector<64x256xf32>
    %21 = tpu.matmul %0, %1, %cst_8 {dimension_numbers = #tpu.dot_dimension_numbers<[1], [0], [0], [1], [0, 0, 1, 1], [], []>} : vector<64x128xf32>, vector<128x256xf32>, vector<64x256xf32> -> vector<64x256xf32>
    %22 = vector.extract_strided_slice %21 {offsets = [0, 0], sizes = [64, 128], strides = [1, 1]} : vector<64x256xf32> to vector<64x128xf32>
    %23 = vector.broadcast %3 : vector<1x128xf32> to vector<64x128xf32>
    %24 = arith.addf %22, %23 : vector<64x128xf32>
    %25 = vector.extract_strided_slice %21 {offsets = [0, 128], sizes = [64, 128], strides = [1, 1]} : vector<64x256xf32> to vector<64x128xf32>
    %26 = tpu.iota {dimensions = array<i32: 1>} : vector<64x64xi32>
    %27 = tpu.bitcast %20 : vector<64x64xf32> -> vector<64x64xi32>
    %c-64_i32 = arith.constant -64 : i32
    %28 = vector.broadcast %c-64_i32 : i32 to vector<64x64xi32>
    %29 = arith.andi %27, %28 : vector<64x64xi32>
    %30 = arith.ori %29, %26 : vector<64x64xi32>
    %31 = arith.truncf %25 : vector<64x128xf32> to vector<64x128xbf16>
    %cst_9 = arith.constant dense<2147483647> : vector<64xi32>
    %32 = vector.multi_reduction <minsi>, %30, %cst_9 [1] : vector<64x64xi32> to vector<64xi32>
    %33 = vector.shape_cast %32 : vector<64xi32> to vector<64x1xi32>
    %c63_i32 = arith.constant 63 : i32
    %34 = vector.broadcast %c63_i32 : i32 to vector<64x1xi32>
    %35 = arith.andi %33, %34 : vector<64x1xi32>
    %36 = vector.broadcast %35 : vector<64x1xi32> to vector<64x64xi32>
    %37 = arith.cmpi eq, %26, %36 : vector<64x64xi32>
    %cst_10 = arith.constant 1.000000e+00 : f32
    %cst_11 = arith.constant 0.000000e+00 : f32
    %38 = vector.broadcast %cst_10 : f32 to vector<64x64xf32>
    %39 = vector.broadcast %cst_11 : f32 to vector<64x64xf32>
    %40 = arith.select %37, %38, %39 : vector<64x64xi1>, vector<64x64xf32>
    %41 = arith.truncf %40 : vector<64x64xf32> to vector<64x64xbf16>
    %cst_12 = arith.constant dense<0.000000e+00> : vector<64x128xf32>
    %42 = tpu.matmul %41, %31, %cst_12 {dimension_numbers = #tpu.dot_dimension_numbers<[1], [0], [0], [1], [0, 0, 1, 1], [], []>} : vector<64x64xbf16>, vector<64x128xbf16>, vector<64x128xf32> -> vector<64x128xf32>
    %c2147483647_i32 = arith.constant 2147483647 : i32
    %43 = vector.broadcast %c2147483647_i32 : i32 to vector<64x64xi32>
    %44 = arith.select %37, %43, %30 : vector<64x64xi1>, vector<64x64xi32>
    %cst_13 = arith.constant dense<2147483647> : vector<64xi32>
    %45 = vector.multi_reduction <minsi>, %44, %cst_13 [1] : vector<64x64xi32> to vector<64xi32>
    %46 = vector.shape_cast %45 : vector<64xi32> to vector<64x1xi32>
    %c63_i32_14 = arith.constant 63 : i32
    %47 = vector.broadcast %c63_i32_14 : i32 to vector<64x1xi32>
    %48 = arith.andi %46, %47 : vector<64x1xi32>
    %49 = vector.broadcast %48 : vector<64x1xi32> to vector<64x64xi32>
    %50 = arith.cmpi eq, %26, %49 : vector<64x64xi32>
    %cst_15 = arith.constant 1.000000e+00 : f32
    %cst_16 = arith.constant 0.000000e+00 : f32
    %51 = vector.broadcast %cst_15 : f32 to vector<64x64xf32>
    %52 = vector.broadcast %cst_16 : f32 to vector<64x64xf32>
    %53 = arith.select %50, %51, %52 : vector<64x64xi1>, vector<64x64xf32>
    %54 = arith.truncf %53 : vector<64x64xf32> to vector<64x64xbf16>
    %cst_17 = arith.constant dense<0.000000e+00> : vector<64x128xf32>
    %55 = tpu.matmul %54, %31, %cst_17 {dimension_numbers = #tpu.dot_dimension_numbers<[1], [0], [0], [1], [0, 0, 1, 1], [], []>} : vector<64x64xbf16>, vector<64x128xbf16>, vector<64x128xf32> -> vector<64x128xf32>
    %56 = arith.maximumf %42, %55 : vector<64x128xf32>
    %c2147483647_i32_18 = arith.constant 2147483647 : i32
    %57 = vector.broadcast %c2147483647_i32_18 : i32 to vector<64x64xi32>
    %58 = arith.select %50, %57, %44 : vector<64x64xi1>, vector<64x64xi32>
    %cst_19 = arith.constant dense<2147483647> : vector<64xi32>
    %59 = vector.multi_reduction <minsi>, %58, %cst_19 [1] : vector<64x64xi32> to vector<64xi32>
    %60 = vector.shape_cast %59 : vector<64xi32> to vector<64x1xi32>
    %c63_i32_20 = arith.constant 63 : i32
    %61 = vector.broadcast %c63_i32_20 : i32 to vector<64x1xi32>
    %62 = arith.andi %60, %61 : vector<64x1xi32>
    %63 = vector.broadcast %62 : vector<64x1xi32> to vector<64x64xi32>
    %64 = arith.cmpi eq, %26, %63 : vector<64x64xi32>
    %cst_21 = arith.constant 1.000000e+00 : f32
    %cst_22 = arith.constant 0.000000e+00 : f32
    %65 = vector.broadcast %cst_21 : f32 to vector<64x64xf32>
    %66 = vector.broadcast %cst_22 : f32 to vector<64x64xf32>
    %67 = arith.select %64, %65, %66 : vector<64x64xi1>, vector<64x64xf32>
    %68 = arith.truncf %67 : vector<64x64xf32> to vector<64x64xbf16>
    %cst_23 = arith.constant dense<0.000000e+00> : vector<64x128xf32>
    %69 = tpu.matmul %68, %31, %cst_23 {dimension_numbers = #tpu.dot_dimension_numbers<[1], [0], [0], [1], [0, 0, 1, 1], [], []>} : vector<64x64xbf16>, vector<64x128xbf16>, vector<64x128xf32> -> vector<64x128xf32>
    %70 = arith.maximumf %56, %69 : vector<64x128xf32>
    %c2147483647_i32_24 = arith.constant 2147483647 : i32
    %71 = vector.broadcast %c2147483647_i32_24 : i32 to vector<64x64xi32>
    %72 = arith.select %64, %71, %58 : vector<64x64xi1>, vector<64x64xi32>
    %cst_25 = arith.constant dense<2147483647> : vector<64xi32>
    %73 = vector.multi_reduction <minsi>, %72, %cst_25 [1] : vector<64x64xi32> to vector<64xi32>
    %74 = vector.shape_cast %73 : vector<64xi32> to vector<64x1xi32>
    %c63_i32_26 = arith.constant 63 : i32
    %75 = vector.broadcast %c63_i32_26 : i32 to vector<64x1xi32>
    %76 = arith.andi %74, %75 : vector<64x1xi32>
    %77 = vector.broadcast %76 : vector<64x1xi32> to vector<64x64xi32>
    %78 = arith.cmpi eq, %26, %77 : vector<64x64xi32>
    %cst_27 = arith.constant 1.000000e+00 : f32
    %cst_28 = arith.constant 0.000000e+00 : f32
    %79 = vector.broadcast %cst_27 : f32 to vector<64x64xf32>
    %80 = vector.broadcast %cst_28 : f32 to vector<64x64xf32>
    %81 = arith.select %78, %79, %80 : vector<64x64xi1>, vector<64x64xf32>
    %82 = arith.truncf %81 : vector<64x64xf32> to vector<64x64xbf16>
    %cst_29 = arith.constant dense<0.000000e+00> : vector<64x128xf32>
    %83 = tpu.matmul %82, %31, %cst_29 {dimension_numbers = #tpu.dot_dimension_numbers<[1], [0], [0], [1], [0, 0, 1, 1], [], []>} : vector<64x64xbf16>, vector<64x128xbf16>, vector<64x128xf32> -> vector<64x128xf32>
    %84 = arith.maximumf %70, %83 : vector<64x128xf32>
    %85 = arith.subf %24, %25 : vector<64x128xf32>
    %86 = arith.addf %85, %84 : vector<64x128xf32>
    %cst_30 = arith.constant 0.000000e+00 : f32
    %87 = vector.broadcast %cst_30 : f32 to vector<64x128xf32>
    %88 = arith.cmpf oge, %86, %87 : vector<64x128xf32>
    %cst_31 = arith.constant 2.000000e-01 : f32
    %89 = vector.broadcast %cst_31 : f32 to vector<64x128xf32>
    %90 = arith.mulf %89, %86 : vector<64x128xf32>
    %91 = arith.select %88, %86, %90 : vector<64x128xi1>, vector<64x128xf32>
    %92 = vector.broadcast %4 : vector<1x128xf32> to vector<64x128xf32>
    %93 = arith.mulf %91, %92 : vector<64x128xf32>
    %94 = vector.broadcast %5 : vector<1x128xf32> to vector<64x128xf32>
    %95 = arith.addf %93, %94 : vector<64x128xf32>
    %c0_32 = arith.constant 0 : index
    %c0_33 = arith.constant 0 : index
    %96 = vector.load %arg4[%c0_32, %c0_33] : memref<128x256xf32, #tpu.memory_space<vmem>>, vector<128x256xf32>
    %c0_34 = arith.constant 0 : index
    %c0_35 = arith.constant 0 : index
    %97 = vector.load %arg5[%c0_34, %c0_35] : memref<8x128xf32, #tpu.memory_space<vmem>>, vector<8x128xf32>
    %98 = vector.extract_strided_slice %97 {offsets = [0, 0], sizes = [1, 128], strides = [1, 1]} : vector<8x128xf32> to vector<1x128xf32>
    %99 = vector.extract_strided_slice %97 {offsets = [1, 0], sizes = [1, 128], strides = [1, 1]} : vector<8x128xf32> to vector<1x128xf32>
    %100 = vector.extract_strided_slice %97 {offsets = [2, 0], sizes = [1, 128], strides = [1, 1]} : vector<8x128xf32> to vector<1x128xf32>
    %101 = arith.truncf %95 : vector<64x128xf32> to vector<64x128xbf16>
    %102 = arith.extf %101 : vector<64x128xbf16> to vector<64x128xf32>
    %103 = arith.mulf %102, %102 : vector<64x128xf32>
    %cst_36 = arith.constant dense<0.000000e+00> : vector<64xf32>
    %104 = vector.multi_reduction <add>, %103, %cst_36 [1] : vector<64x128xf32> to vector<64xf32>
    %105 = vector.shape_cast %104 : vector<64xf32> to vector<64x1xf32>
    %cst_37 = arith.constant dense<0.000000e+00> : vector<64x64xf32>
    %106 = tpu.matmul %101, %101, %cst_37 {dimension_numbers = #tpu.dot_dimension_numbers<[1], [1], [0], [0], [0, 0, 1, 0], [], []>} : vector<64x128xbf16>, vector<64x128xbf16>, vector<64x64xf32> -> vector<64x64xf32>
    %107 = tpu.transpose %105, [1, 0] : vector<64x1xf32> -> vector<1x64xf32>
    %108 = vector.broadcast %105 : vector<64x1xf32> to vector<64x64xf32>
    %109 = vector.broadcast %107 : vector<1x64xf32> to vector<64x64xf32>
    %110 = arith.addf %108, %109 : vector<64x64xf32>
    %cst_38 = arith.constant 2.000000e+00 : f32
    %111 = vector.broadcast %cst_38 : f32 to vector<64x64xf32>
    %112 = arith.mulf %111, %106 : vector<64x64xf32>
    %113 = arith.subf %110, %112 : vector<64x64xf32>
    %cst_39 = arith.constant 0.000000e+00 : f32
    %114 = vector.broadcast %cst_39 : f32 to vector<64x64xf32>
    %115 = arith.maximumf %113, %114 : vector<64x64xf32>
    %cst_40 = arith.constant dense<0.000000e+00> : vector<64x256xf32>
    %116 = tpu.matmul %95, %96, %cst_40 {dimension_numbers = #tpu.dot_dimension_numbers<[1], [0], [0], [1], [0, 0, 1, 1], [], []>} : vector<64x128xf32>, vector<128x256xf32>, vector<64x256xf32> -> vector<64x256xf32>
    %117 = vector.extract_strided_slice %116 {offsets = [0, 0], sizes = [64, 128], strides = [1, 1]} : vector<64x256xf32> to vector<64x128xf32>
    %118 = vector.broadcast %98 : vector<1x128xf32> to vector<64x128xf32>
    %119 = arith.addf %117, %118 : vector<64x128xf32>
    %120 = vector.extract_strided_slice %116 {offsets = [0, 128], sizes = [64, 128], strides = [1, 1]} : vector<64x256xf32> to vector<64x128xf32>
    %121 = tpu.iota {dimensions = array<i32: 1>} : vector<64x64xi32>
    %122 = tpu.bitcast %115 : vector<64x64xf32> -> vector<64x64xi32>
    %c-64_i32_41 = arith.constant -64 : i32
    %123 = vector.broadcast %c-64_i32_41 : i32 to vector<64x64xi32>
    %124 = arith.andi %122, %123 : vector<64x64xi32>
    %125 = arith.ori %124, %121 : vector<64x64xi32>
    %126 = arith.truncf %120 : vector<64x128xf32> to vector<64x128xbf16>
    %cst_42 = arith.constant dense<2147483647> : vector<64xi32>
    %127 = vector.multi_reduction <minsi>, %125, %cst_42 [1] : vector<64x64xi32> to vector<64xi32>
    %128 = vector.shape_cast %127 : vector<64xi32> to vector<64x1xi32>
    %c63_i32_43 = arith.constant 63 : i32
    %129 = vector.broadcast %c63_i32_43 : i32 to vector<64x1xi32>
    %130 = arith.andi %128, %129 : vector<64x1xi32>
    %131 = vector.broadcast %130 : vector<64x1xi32> to vector<64x64xi32>
    %132 = arith.cmpi eq, %121, %131 : vector<64x64xi32>
    %cst_44 = arith.constant 1.000000e+00 : f32
    %cst_45 = arith.constant 0.000000e+00 : f32
    %133 = vector.broadcast %cst_44 : f32 to vector<64x64xf32>
    %134 = vector.broadcast %cst_45 : f32 to vector<64x64xf32>
    %135 = arith.select %132, %133, %134 : vector<64x64xi1>, vector<64x64xf32>
    %136 = arith.truncf %135 : vector<64x64xf32> to vector<64x64xbf16>
    %cst_46 = arith.constant dense<0.000000e+00> : vector<64x128xf32>
    %137 = tpu.matmul %136, %126, %cst_46 {dimension_numbers = #tpu.dot_dimension_numbers<[1], [0], [0], [1], [0, 0, 1, 1], [], []>} : vector<64x64xbf16>, vector<64x128xbf16>, vector<64x128xf32> -> vector<64x128xf32>
    %c2147483647_i32_47 = arith.constant 2147483647 : i32
    %138 = vector.broadcast %c2147483647_i32_47 : i32 to vector<64x64xi32>
    %139 = arith.select %132, %138, %125 : vector<64x64xi1>, vector<64x64xi32>
    %cst_48 = arith.constant dense<2147483647> : vector<64xi32>
    %140 = vector.multi_reduction <minsi>, %139, %cst_48 [1] : vector<64x64xi32> to vector<64xi32>
    %141 = vector.shape_cast %140 : vector<64xi32> to vector<64x1xi32>
    %c63_i32_49 = arith.constant 63 : i32
    %142 = vector.broadcast %c63_i32_49 : i32 to vector<64x1xi32>
    %143 = arith.andi %141, %142 : vector<64x1xi32>
    %144 = vector.broadcast %143 : vector<64x1xi32> to vector<64x64xi32>
    %145 = arith.cmpi eq, %121, %144 : vector<64x64xi32>
    %cst_50 = arith.constant 1.000000e+00 : f32
    %cst_51 = arith.constant 0.000000e+00 : f32
    %146 = vector.broadcast %cst_50 : f32 to vector<64x64xf32>
    %147 = vector.broadcast %cst_51 : f32 to vector<64x64xf32>
    %148 = arith.select %145, %146, %147 : vector<64x64xi1>, vector<64x64xf32>
    %149 = arith.truncf %148 : vector<64x64xf32> to vector<64x64xbf16>
    %cst_52 = arith.constant dense<0.000000e+00> : vector<64x128xf32>
    %150 = tpu.matmul %149, %126, %cst_52 {dimension_numbers = #tpu.dot_dimension_numbers<[1], [0], [0], [1], [0, 0, 1, 1], [], []>} : vector<64x64xbf16>, vector<64x128xbf16>, vector<64x128xf32> -> vector<64x128xf32>
    %151 = arith.maximumf %137, %150 : vector<64x128xf32>
    %c2147483647_i32_53 = arith.constant 2147483647 : i32
    %152 = vector.broadcast %c2147483647_i32_53 : i32 to vector<64x64xi32>
    %153 = arith.select %145, %152, %139 : vector<64x64xi1>, vector<64x64xi32>
    %cst_54 = arith.constant dense<2147483647> : vector<64xi32>
    %154 = vector.multi_reduction <minsi>, %153, %cst_54 [1] : vector<64x64xi32> to vector<64xi32>
    %155 = vector.shape_cast %154 : vector<64xi32> to vector<64x1xi32>
    %c63_i32_55 = arith.constant 63 : i32
    %156 = vector.broadcast %c63_i32_55 : i32 to vector<64x1xi32>
    %157 = arith.andi %155, %156 : vector<64x1xi32>
    %158 = vector.broadcast %157 : vector<64x1xi32> to vector<64x64xi32>
    %159 = arith.cmpi eq, %121, %158 : vector<64x64xi32>
    %cst_56 = arith.constant 1.000000e+00 : f32
    %cst_57 = arith.constant 0.000000e+00 : f32
    %160 = vector.broadcast %cst_56 : f32 to vector<64x64xf32>
    %161 = vector.broadcast %cst_57 : f32 to vector<64x64xf32>
    %162 = arith.select %159, %160, %161 : vector<64x64xi1>, vector<64x64xf32>
    %163 = arith.truncf %162 : vector<64x64xf32> to vector<64x64xbf16>
    %cst_58 = arith.constant dense<0.000000e+00> : vector<64x128xf32>
    %164 = tpu.matmul %163, %126, %cst_58 {dimension_numbers = #tpu.dot_dimension_numbers<[1], [0], [0], [1], [0, 0, 1, 1], [], []>} : vector<64x64xbf16>, vector<64x128xbf16>, vector<64x128xf32> -> vector<64x128xf32>
    %165 = arith.maximumf %151, %164 : vector<64x128xf32>
    %c2147483647_i32_59 = arith.constant 2147483647 : i32
    %166 = vector.broadcast %c2147483647_i32_59 : i32 to vector<64x64xi32>
    %167 = arith.select %159, %166, %153 : vector<64x64xi1>, vector<64x64xi32>
    %cst_60 = arith.constant dense<2147483647> : vector<64xi32>
    %168 = vector.multi_reduction <minsi>, %167, %cst_60 [1] : vector<64x64xi32> to vector<64xi32>
    %169 = vector.shape_cast %168 : vector<64xi32> to vector<64x1xi32>
    %c63_i32_61 = arith.constant 63 : i32
    %170 = vector.broadcast %c63_i32_61 : i32 to vector<64x1xi32>
    %171 = arith.andi %169, %170 : vector<64x1xi32>
    %172 = vector.broadcast %171 : vector<64x1xi32> to vector<64x64xi32>
    %173 = arith.cmpi eq, %121, %172 : vector<64x64xi32>
    %cst_62 = arith.constant 1.000000e+00 : f32
    %cst_63 = arith.constant 0.000000e+00 : f32
    %174 = vector.broadcast %cst_62 : f32 to vector<64x64xf32>
    %175 = vector.broadcast %cst_63 : f32 to vector<64x64xf32>
    %176 = arith.select %173, %174, %175 : vector<64x64xi1>, vector<64x64xf32>
    %177 = arith.truncf %176 : vector<64x64xf32> to vector<64x64xbf16>
    %cst_64 = arith.constant dense<0.000000e+00> : vector<64x128xf32>
    %178 = tpu.matmul %177, %126, %cst_64 {dimension_numbers = #tpu.dot_dimension_numbers<[1], [0], [0], [1], [0, 0, 1, 1], [], []>} : vector<64x64xbf16>, vector<64x128xbf16>, vector<64x128xf32> -> vector<64x128xf32>
    %179 = arith.maximumf %165, %178 : vector<64x128xf32>
    %180 = arith.subf %119, %120 : vector<64x128xf32>
    %181 = arith.addf %180, %179 : vector<64x128xf32>
    %cst_65 = arith.constant 0.000000e+00 : f32
    %182 = vector.broadcast %cst_65 : f32 to vector<64x128xf32>
    %183 = arith.cmpf oge, %181, %182 : vector<64x128xf32>
    %cst_66 = arith.constant 2.000000e-01 : f32
    %184 = vector.broadcast %cst_66 : f32 to vector<64x128xf32>
    %185 = arith.mulf %184, %181 : vector<64x128xf32>
    %186 = arith.select %183, %181, %185 : vector<64x128xi1>, vector<64x128xf32>
    %187 = vector.broadcast %99 : vector<1x128xf32> to vector<64x128xf32>
    %188 = arith.mulf %186, %187 : vector<64x128xf32>
    %189 = vector.broadcast %100 : vector<1x128xf32> to vector<64x128xf32>
    %190 = arith.addf %188, %189 : vector<64x128xf32>
    %c0_67 = arith.constant 0 : index
    %c0_68 = arith.constant 0 : index
    %191 = vector.load %arg6[%c0_67, %c0_68] : memref<128x256xf32, #tpu.memory_space<vmem>>, vector<128x256xf32>
    %c0_69 = arith.constant 0 : index
    %c0_70 = arith.constant 0 : index
    %192 = vector.load %arg7[%c0_69, %c0_70] : memref<8x128xf32, #tpu.memory_space<vmem>>, vector<8x128xf32>
    %193 = vector.extract_strided_slice %192 {offsets = [0, 0], sizes = [1, 128], strides = [1, 1]} : vector<8x128xf32> to vector<1x128xf32>
    %194 = vector.extract_strided_slice %192 {offsets = [1, 0], sizes = [1, 128], strides = [1, 1]} : vector<8x128xf32> to vector<1x128xf32>
    %195 = vector.extract_strided_slice %192 {offsets = [2, 0], sizes = [1, 128], strides = [1, 1]} : vector<8x128xf32> to vector<1x128xf32>
    %196 = arith.truncf %190 : vector<64x128xf32> to vector<64x128xbf16>
    %197 = arith.extf %196 : vector<64x128xbf16> to vector<64x128xf32>
    %198 = arith.mulf %197, %197 : vector<64x128xf32>
    %cst_71 = arith.constant dense<0.000000e+00> : vector<64xf32>
    %199 = vector.multi_reduction <add>, %198, %cst_71 [1] : vector<64x128xf32> to vector<64xf32>
    %200 = vector.shape_cast %199 : vector<64xf32> to vector<64x1xf32>
    %cst_72 = arith.constant dense<0.000000e+00> : vector<64x64xf32>
    %201 = tpu.matmul %196, %196, %cst_72 {dimension_numbers = #tpu.dot_dimension_numbers<[1], [1], [0], [0], [0, 0, 1, 0], [], []>} : vector<64x128xbf16>, vector<64x128xbf16>, vector<64x64xf32> -> vector<64x64xf32>
    %202 = tpu.transpose %200, [1, 0] : vector<64x1xf32> -> vector<1x64xf32>
    %203 = vector.broadcast %200 : vector<64x1xf32> to vector<64x64xf32>
    %204 = vector.broadcast %202 : vector<1x64xf32> to vector<64x64xf32>
    %205 = arith.addf %203, %204 : vector<64x64xf32>
    %cst_73 = arith.constant 2.000000e+00 : f32
    %206 = vector.broadcast %cst_73 : f32 to vector<64x64xf32>
    %207 = arith.mulf %206, %201 : vector<64x64xf32>
    %208 = arith.subf %205, %207 : vector<64x64xf32>
    %cst_74 = arith.constant 0.000000e+00 : f32
    %209 = vector.broadcast %cst_74 : f32 to vector<64x64xf32>
    %210 = arith.maximumf %208, %209 : vector<64x64xf32>
    %cst_75 = arith.constant dense<0.000000e+00> : vector<64x256xf32>
    %211 = tpu.matmul %190, %191, %cst_75 {dimension_numbers = #tpu.dot_dimension_numbers<[1], [0], [0], [1], [0, 0, 1, 1], [], []>} : vector<64x128xf32>, vector<128x256xf32>, vector<64x256xf32> -> vector<64x256xf32>
    %212 = vector.extract_strided_slice %211 {offsets = [0, 0], sizes = [64, 128], strides = [1, 1]} : vector<64x256xf32> to vector<64x128xf32>
    %213 = vector.broadcast %193 : vector<1x128xf32> to vector<64x128xf32>
    %214 = arith.addf %212, %213 : vector<64x128xf32>
    %215 = vector.extract_strided_slice %211 {offsets = [0, 128], sizes = [64, 128], strides = [1, 1]} : vector<64x256xf32> to vector<64x128xf32>
    %216 = tpu.iota {dimensions = array<i32: 1>} : vector<64x64xi32>
    %217 = tpu.bitcast %210 : vector<64x64xf32> -> vector<64x64xi32>
    %c-64_i32_76 = arith.constant -64 : i32
    %218 = vector.broadcast %c-64_i32_76 : i32 to vector<64x64xi32>
    %219 = arith.andi %217, %218 : vector<64x64xi32>
    %220 = arith.ori %219, %216 : vector<64x64xi32>
    %221 = arith.truncf %215 : vector<64x128xf32> to vector<64x128xbf16>
    %cst_77 = arith.constant dense<2147483647> : vector<64xi32>
    %222 = vector.multi_reduction <minsi>, %220, %cst_77 [1] : vector<64x64xi32> to vector<64xi32>
    %223 = vector.shape_cast %222 : vector<64xi32> to vector<64x1xi32>
    %c63_i32_78 = arith.constant 63 : i32
    %224 = vector.broadcast %c63_i32_78 : i32 to vector<64x1xi32>
    %225 = arith.andi %223, %224 : vector<64x1xi32>
    %226 = vector.broadcast %225 : vector<64x1xi32> to vector<64x64xi32>
    %227 = arith.cmpi eq, %216, %226 : vector<64x64xi32>
    %cst_79 = arith.constant 1.000000e+00 : f32
    %cst_80 = arith.constant 0.000000e+00 : f32
    %228 = vector.broadcast %cst_79 : f32 to vector<64x64xf32>
    %229 = vector.broadcast %cst_80 : f32 to vector<64x64xf32>
    %230 = arith.select %227, %228, %229 : vector<64x64xi1>, vector<64x64xf32>
    %231 = arith.truncf %230 : vector<64x64xf32> to vector<64x64xbf16>
    %cst_81 = arith.constant dense<0.000000e+00> : vector<64x128xf32>
    %232 = tpu.matmul %231, %221, %cst_81 {dimension_numbers = #tpu.dot_dimension_numbers<[1], [0], [0], [1], [0, 0, 1, 1], [], []>} : vector<64x64xbf16>, vector<64x128xbf16>, vector<64x128xf32> -> vector<64x128xf32>
    %c2147483647_i32_82 = arith.constant 2147483647 : i32
    %233 = vector.broadcast %c2147483647_i32_82 : i32 to vector<64x64xi32>
    %234 = arith.select %227, %233, %220 : vector<64x64xi1>, vector<64x64xi32>
    %cst_83 = arith.constant dense<2147483647> : vector<64xi32>
    %235 = vector.multi_reduction <minsi>, %234, %cst_83 [1] : vector<64x64xi32> to vector<64xi32>
    %236 = vector.shape_cast %235 : vector<64xi32> to vector<64x1xi32>
    %c63_i32_84 = arith.constant 63 : i32
    %237 = vector.broadcast %c63_i32_84 : i32 to vector<64x1xi32>
    %238 = arith.andi %236, %237 : vector<64x1xi32>
    %239 = vector.broadcast %238 : vector<64x1xi32> to vector<64x64xi32>
    %240 = arith.cmpi eq, %216, %239 : vector<64x64xi32>
    %cst_85 = arith.constant 1.000000e+00 : f32
    %cst_86 = arith.constant 0.000000e+00 : f32
    %241 = vector.broadcast %cst_85 : f32 to vector<64x64xf32>
    %242 = vector.broadcast %cst_86 : f32 to vector<64x64xf32>
    %243 = arith.select %240, %241, %242 : vector<64x64xi1>, vector<64x64xf32>
    %244 = arith.truncf %243 : vector<64x64xf32> to vector<64x64xbf16>
    %cst_87 = arith.constant dense<0.000000e+00> : vector<64x128xf32>
    %245 = tpu.matmul %244, %221, %cst_87 {dimension_numbers = #tpu.dot_dimension_numbers<[1], [0], [0], [1], [0, 0, 1, 1], [], []>} : vector<64x64xbf16>, vector<64x128xbf16>, vector<64x128xf32> -> vector<64x128xf32>
    %246 = arith.maximumf %232, %245 : vector<64x128xf32>
    %c2147483647_i32_88 = arith.constant 2147483647 : i32
    %247 = vector.broadcast %c2147483647_i32_88 : i32 to vector<64x64xi32>
    %248 = arith.select %240, %247, %234 : vector<64x64xi1>, vector<64x64xi32>
    %cst_89 = arith.constant dense<2147483647> : vector<64xi32>
    %249 = vector.multi_reduction <minsi>, %248, %cst_89 [1] : vector<64x64xi32> to vector<64xi32>
    %250 = vector.shape_cast %249 : vector<64xi32> to vector<64x1xi32>
    %c63_i32_90 = arith.constant 63 : i32
    %251 = vector.broadcast %c63_i32_90 : i32 to vector<64x1xi32>
    %252 = arith.andi %250, %251 : vector<64x1xi32>
    %253 = vector.broadcast %252 : vector<64x1xi32> to vector<64x64xi32>
    %254 = arith.cmpi eq, %216, %253 : vector<64x64xi32>
    %cst_91 = arith.constant 1.000000e+00 : f32
    %cst_92 = arith.constant 0.000000e+00 : f32
    %255 = vector.broadcast %cst_91 : f32 to vector<64x64xf32>
    %256 = vector.broadcast %cst_92 : f32 to vector<64x64xf32>
    %257 = arith.select %254, %255, %256 : vector<64x64xi1>, vector<64x64xf32>
    %258 = arith.truncf %257 : vector<64x64xf32> to vector<64x64xbf16>
    %cst_93 = arith.constant dense<0.000000e+00> : vector<64x128xf32>
    %259 = tpu.matmul %258, %221, %cst_93 {dimension_numbers = #tpu.dot_dimension_numbers<[1], [0], [0], [1], [0, 0, 1, 1], [], []>} : vector<64x64xbf16>, vector<64x128xbf16>, vector<64x128xf32> -> vector<64x128xf32>
    %260 = arith.maximumf %246, %259 : vector<64x128xf32>
    %c2147483647_i32_94 = arith.constant 2147483647 : i32
    %261 = vector.broadcast %c2147483647_i32_94 : i32 to vector<64x64xi32>
    %262 = arith.select %254, %261, %248 : vector<64x64xi1>, vector<64x64xi32>
    %cst_95 = arith.constant dense<2147483647> : vector<64xi32>
    %263 = vector.multi_reduction <minsi>, %262, %cst_95 [1] : vector<64x64xi32> to vector<64xi32>
    %264 = vector.shape_cast %263 : vector<64xi32> to vector<64x1xi32>
    %c63_i32_96 = arith.constant 63 : i32
    %265 = vector.broadcast %c63_i32_96 : i32 to vector<64x1xi32>
    %266 = arith.andi %264, %265 : vector<64x1xi32>
    %267 = vector.broadcast %266 : vector<64x1xi32> to vector<64x64xi32>
    %268 = arith.cmpi eq, %216, %267 : vector<64x64xi32>
    %cst_97 = arith.constant 1.000000e+00 : f32
    %cst_98 = arith.constant 0.000000e+00 : f32
    %269 = vector.broadcast %cst_97 : f32 to vector<64x64xf32>
    %270 = vector.broadcast %cst_98 : f32 to vector<64x64xf32>
    %271 = arith.select %268, %269, %270 : vector<64x64xi1>, vector<64x64xf32>
    %272 = arith.truncf %271 : vector<64x64xf32> to vector<64x64xbf16>
    %cst_99 = arith.constant dense<0.000000e+00> : vector<64x128xf32>
    %273 = tpu.matmul %272, %221, %cst_99 {dimension_numbers = #tpu.dot_dimension_numbers<[1], [0], [0], [1], [0, 0, 1, 1], [], []>} : vector<64x64xbf16>, vector<64x128xbf16>, vector<64x128xf32> -> vector<64x128xf32>
    %274 = arith.maximumf %260, %273 : vector<64x128xf32>
    %275 = arith.subf %214, %215 : vector<64x128xf32>
    %276 = arith.addf %275, %274 : vector<64x128xf32>
    %cst_100 = arith.constant 0.000000e+00 : f32
    %277 = vector.broadcast %cst_100 : f32 to vector<64x128xf32>
    %278 = arith.cmpf oge, %276, %277 : vector<64x128xf32>
    %cst_101 = arith.constant 2.000000e-01 : f32
    %279 = vector.broadcast %cst_101 : f32 to vector<64x128xf32>
    %280 = arith.mulf %279, %276 : vector<64x128xf32>
    %281 = arith.select %278, %276, %280 : vector<64x128xi1>, vector<64x128xf32>
    %282 = vector.broadcast %194 : vector<1x128xf32> to vector<64x128xf32>
    %283 = arith.mulf %281, %282 : vector<64x128xf32>
    %284 = vector.broadcast %195 : vector<1x128xf32> to vector<64x128xf32>
    %285 = arith.addf %283, %284 : vector<64x128xf32>
    %c0_102 = arith.constant 0 : index
    %c0_103 = arith.constant 0 : index
    %286 = vector.load %arg8[%c0_102, %c0_103] : memref<64x128xf32, #tpu.memory_space<vmem>>, vector<64x128xf32>
    tpu.vector_store %arg8[%c0_102, %c0_103], %285 {strides = array<i32>} : memref<64x128xf32, #tpu.memory_space<vmem>>, vector<64x128xf32>,
    return
  }
  func.func @transform_0(%arg0: i32) -> (i32, i32) {
    %c0_i32 = arith.constant 0 : i32
    %c0_i32_0 = arith.constant 0 : i32
    %c0_i32_1 = arith.constant 0 : i32
    return %c0_i32, %c0_i32_0 : i32, i32
  }
  func.func @transform_1(%arg0: i32) -> (i32, i32) {
    %c0_i32 = arith.constant 0 : i32
    %c0_i32_0 = arith.constant 0 : i32
    %c0_i32_1 = arith.constant 0 : i32
    return %c0_i32, %c0_i32_0 : i32, i32
  }
  func.func @transform_2(%arg0: i32) -> (i32, i32) {
    %c0_i32 = arith.constant 0 : i32
    %c0_i32_0 = arith.constant 0 : i32
    %c0_i32_1 = arith.constant 0 : i32
    return %c0_i32, %c0_i32_0 : i32, i32
  }
  func.func @transform_3(%arg0: i32) -> (i32, i32) {
    %c0_i32 = arith.constant 0 : i32
    %c0_i32_0 = arith.constant 0 : i32
    %c0_i32_1 = arith.constant 0 : i32
    return %c0_i32, %c0_i32_0 : i32, i32
  }
  func.func @transform_4(%arg0: i32) -> (i32, i32) {
    %c0_i32 = arith.constant 0 : i32
    %c0_i32_0 = arith.constant 0 : i32
    %c0_i32_1 = arith.constant 0 : i32
    return %c0_i32, %c0_i32_0 : i32, i32
  }
  func.func @transform_5(%arg0: i32) -> (i32, i32) {
    %c0_i32 = arith.constant 0 : i32
    %c0_i32_0 = arith.constant 0 : i32
    %c0_i32_1 = arith.constant 0 : i32
    return %c0_i32, %c0_i32_0 : i32, i32
  }
  func.func @transform_6(%arg0: i32) -> (i32, i32) {
    %c0_i32 = arith.constant 0 : i32
    %c0_i32_0 = arith.constant 0 : i32
    %c0_i32_1 = arith.constant 0 : i32
    return %c0_i32, %c0_i32_0 : i32, i32
  }
  func.func @transform_7(%arg0: i32) -> (i32, i32) {
    %c0_i32 = arith.constant 0 : i32
    %c0_i32_0 = arith.constant 0 : i32
    %c0_i32_1 = arith.constant 0 : i32
    return %c0_i32, %c0_i32_0 : i32, i32
  }
}

</mosaic_0001>

<llo_original>
// kernel: tpu_custom_call.1
$region0: #{tpu_custom_call.1}
  #allocation0 [shape = 'u32[]', space=smem, size = 0x4, offset = 0x4, fixed_abs, tag = 'smem constant byte address 0x4 - core index']
  #allocation1 [shape = 'u32[144,128]{1,0:T(1,128)}', space=vmem, size = 0x12000, scoped, tag = 'internal scratch']
  %s0 = inlined_call_operand.hbm [shape: f32[64,128], index: 0, kind: input, shape index: {}]
  %s1 = inlined_call_operand.hbm [shape: f32[128,256], index: 1, kind: input, shape index: {}]
  %s2 = inlined_call_operand.hbm [shape: f32[8,128], index: 2, kind: input, shape index: {}]
  %s3 = inlined_call_operand.hbm [shape: f32[128,256], index: 3, kind: input, shape index: {}]
  %s4 = inlined_call_operand.hbm [shape: f32[8,128], index: 4, kind: input, shape index: {}]
  %s5 = inlined_call_operand.hbm [shape: f32[128,256], index: 5, kind: input, shape index: {}]
  %s6 = inlined_call_operand.hbm [shape: f32[8,128], index: 6, kind: input, shape index: {}]
  %s7 = inlined_call_operand.hbm [shape: f32[64,128], index: 7, kind: output, shape index: {}]
  %s8 = sld [smem:[#allocation0]]
  $region66: #{tpu_custom_call.1} parent=0
    _
  %s10 = ssub.s32 1, %s8
  %s11 = scalar_select 0, %s10, %s8
  $region1: #{tpu_custom_call.1} parent=0
    #allocation2 [shape = 'u8[32768]{0}', space=vmem, size = 0x8000, scoped, tag = 'input window, operand 0, single buffered']
    #allocation3 [shape = 's32[1]{0}', space=sflag, size = 0x4, scoped, tag = 'scoped memory for tpu_custom_call.1']
    #allocation4 [shape = 's32[1]{0}', space=sflag, size = 0x4, scoped, tag = 'scoped memory for tpu_custom_call.1']
    #allocation5 [shape = 'u8[131072]{0}', space=vmem, size = 0x20000, scoped, tag = 'input window, operand 1, single buffered']
    #allocation6 [shape = 's32[1]{0}', space=sflag, size = 0x4, scoped, tag = 'scoped memory for tpu_custom_call.1']
    #allocation7 [shape = 'u8[4096]{0}', space=vmem, size = 0x1000, scoped, tag = 'input window, operand 2, single buffered']
    #allocation8 [shape = 'u8[131072]{0}', space=vmem, size = 0x20000, scoped, tag = 'input window, operand 3, single buffered']
    #allocation9 [shape = 's32[1]{0}', space=sflag, size = 0x4, scoped, tag = 'scoped memory for tpu_custom_call.1']
    #allocation10 [shape = 'u8[4096]{0}', space=vmem, size = 0x1000, scoped, tag = 'input window, operand 4, single buffered']
    #allocation11 [shape = 'u8[131072]{0}', space=vmem, size = 0x20000, scoped, tag = 'input window, operand 5, single buffered']
    #allocation12 [shape = 's32[1]{0}', space=sflag, size = 0x4, scoped, tag = 'scoped memory for tpu_custom_call.1']
    #allocation13 [shape = 'u8[4096]{0}', space=vmem, size = 0x1000, scoped, tag = 'input window, operand 6, single buffered']
    #allocation14 [shape = 'u8[32768]{0}', space=vmem, size = 0x8000, scoped, tag = 'output window, operand 0, single buffered']
    %12 = vsyncpa [#allocation3], 0
    %13 = vsyncpa [#allocation6], 0
    %14 = vsyncpa [#allocation9], 0
    %15 = vsyncpa [#allocation12], 0
    %16 = vsyncpa [#allocation4], 0
    // Predicated region
    $region2: #{tpu_custom_call.1} parent=1 // pred_check
      _
    $region3: #{tpu_custom_call.1} parent=1 // pred_check_branch
      %18 = sbr.rel (0) target = $region5
    $region4: #{tpu_custom_call.1} parent=1 // pred_region
      %s20 = ssub.s32 1024, 1024
      %21 = vsyncadd [#allocation3], %s20
      %s22 = sshll.u32 [#allocation2], 4
      %s23 = int_to_ptr.vmem [resolvable:$true] %s22
      %28 = dma.hbm_to_vmem [thread:$0]  %s0, 1024, %s23, [#allocation3], 128, 128, 8
    $region5: #{tpu_custom_call.1} parent=1 // pred_fallthru
      _
    // Predicated region
    $region6: #{tpu_custom_call.1} parent=1 // pred_check
      _
    $region7: #{tpu_custom_call.1} parent=1 // pred_check_branch
      %30 = sbr.rel (0) target = $region9
    $region8: #{tpu_custom_call.1} parent=1 // pred_region
      %s32 = ssub.s32 4096, 4096
      %33 = vsyncadd [#allocation6], %s32
      %s34 = sshll.u32 [#allocation5], 4
      %s35 = int_to_ptr.vmem [resolvable:$true] %s34
      %40 = dma.hbm_to_vmem [thread:$0]  %s1, 4096, %s35, [#allocation6], 256, 256, 16
    $region9: #{tpu_custom_call.1} parent=1 // pred_fallthru
      _
    // Predicated region
    $region10: #{tpu_custom_call.1} parent=1 // pred_check
      _
    $region11: #{tpu_custom_call.1} parent=1 // pred_check_branch
      %42 = sbr.rel (0) target = $region13
    $region12: #{tpu_custom_call.1} parent=1 // pred_region
      %s44 = ssub.s32 128, 128
      %45 = vsyncadd [#allocation6], %s44
      %s47 = sshll.u32 [#allocation7], 4
      %s48 = int_to_ptr.vmem [resolvable:$true] %s47
      %50 = dma.hbm_to_vmem [thread:$0]  %s2, 128, %s48, [#allocation6]
    $region13: #{tpu_custom_call.1} parent=1 // pred_fallthru
      _
    // Predicated region
    $region14: #{tpu_custom_call.1} parent=1 // pred_check
      _
    $region15: #{tpu_custom_call.1} parent=1 // pred_check_branch
      %52 = sbr.rel (0) target = $region17
    $region16: #{tpu_custom_call.1} parent=1 // pred_region
      %s54 = ssub.s32 4096, 4096
      %55 = vsyncadd [#allocation9], %s54
      %s56 = sshll.u32 [#allocation8], 4
      %s57 = int_to_ptr.vmem [resolvable:$true] %s56
      %62 = dma.hbm_to_vmem [thread:$0]  %s3, 4096, %s57, [#allocation9], 256, 256, 16
    $region17: #{tpu_custom_call.1} parent=1 // pred_fallthru
      _
    // Predicated region
    $region18: #{tpu_custom_call.1} parent=1 // pred_check
      _
    $region19: #{tpu_custom_call.1} parent=1 // pred_check_branch
      %64 = sbr.rel (0) target = $region21
    $region20: #{tpu_custom_call.1} parent=1 // pred_region
      %s66 = ssub.s32 128, 128
      %67 = vsyncadd [#allocation9], %s66
      %s69 = sshll.u32 [#allocation10], 4
      %s70 = int_to_ptr.vmem [resolvable:$true] %s69
      %72 = dma.hbm_to_vmem [thread:$0]  %s4, 128, %s70, [#allocation9]
    $region21: #{tpu_custom_call.1} parent=1 // pred_fallthru
      _
    // Predicated region
    $region22: #{tpu_custom_call.1} parent=1 // pred_check
      _
    $region23: #{tpu_custom_call.1} parent=1 // pred_check_branch
      %74 = sbr.rel (0) target = $region25
    $region24: #{tpu_custom_call.1} parent=1 // pred_region
      %s76 = ssub.s32 4096, 4096
      %77 = vsyncadd [#allocation12], %s76
      %s78 = sshll.u32 [#allocation11], 4
      %s79 = int_to_ptr.vmem [resolvable:$true] %s78
      %84 = dma.hbm_to_vmem [thread:$0]  %s5, 4096, %s79, [#allocation12], 256, 256, 16
    $region25: #{tpu_custom_call.1} parent=1 // pred_fallthru
      _
    // Predicated region
    $region26: #{tpu_custom_call.1} parent=1 // pred_check
      _
    $region27: #{tpu_custom_call.1} parent=1 // pred_check_branch
      %86 = sbr.rel (0) target = $region29
    $region28: #{tpu_custom_call.1} parent=1 // pred_region
      %s88 = ssub.s32 128, 128
      %89 = vsyncadd [#allocation12], %s88
      %s91 = sshll.u32 [#allocation13], 4
      %s92 = int_to_ptr.vmem [resolvable:$true] %s91
      %94 = dma.hbm_to_vmem [thread:$0]  %s6, 128, %s92, [#allocation12]
    $region29: #{tpu_custom_call.1} parent=1 // pred_fallthru
      _
    // Predicated region
    $region30: #{tpu_custom_call.1} parent=1 // pred_check
      _
    $region31: #{tpu_custom_call.1} parent=1 // pred_check_branch
      %96 = sbr.rel (0) target = $region33
    $region32: #{tpu_custom_call.1} parent=1 // pred_region
      %97 = dma.done [#allocation3], 1024
    $region33: #{tpu_custom_call.1} parent=1 // pred_fallthru
      _
    // Predicated region
    $region34: #{tpu_custom_call.1} parent=1 // pred_check
      _
    $region35: #{tpu_custom_call.1} parent=1 // pred_check_branch
      %99 = sbr.rel (0) target = $region37
    $region36: #{tpu_custom_call.1} parent=1 // pred_region
      %100 = dma.done [#allocation6], 4096
    $region37: #{tpu_custom_call.1} parent=1 // pred_fallthru
      _
    // Predicated region
    $region38: #{tpu_custom_call.1} parent=1 // pred_check
      _
    $region39: #{tpu_custom_call.1} parent=1 // pred_check_branch
      %102 = sbr.rel (0) target = $region41
    $region40: #{tpu_custom_call.1} parent=1 // pred_region
      %103 = dma.done [#allocation6], 128
    $region41: #{tpu_custom_call.1} parent=1 // pred_fallthru
      _
    // Predicated region
    $region42: #{tpu_custom_call.1} parent=1 // pred_check
      _
    $region43: #{tpu_custom_call.1} parent=1 // pred_check_branch
      %105 = sbr.rel (0) target = $region45
    $region44: #{tpu_custom_call.1} parent=1 // pred_region
      %106 = dma.done [#allocation9], 4096
    $region45: #{tpu_custom_call.1} parent=1 // pred_fallthru
      _
    // Predicated region
    $region46: #{tpu_custom_call.1} parent=1 // pred_check
      _
    $region47: #{tpu_custom_call.1} parent=1 // pred_check_branch
      %108 = sbr.rel (0) target = $region49
    $region48: #{tpu_custom_call.1} parent=1 // pred_region
      %109 = dma.done [#allocation9], 128
    $region49: #{tpu_custom_call.1} parent=1 // pred_fallthru
      _
    // Predicated region
    $region50: #{tpu_custom_call.1} parent=1 // pred_check
      _
    $region51: #{tpu_custom_call.1} parent=1 // pred_check_branch
      %111 = sbr.rel (0) target = $region53
    $region52: #{tpu_custom_call.1} parent=1 // pred_region
      %112 = dma.done [#allocation12], 4096
    $region53: #{tpu_custom_call.1} parent=1 // pred_fallthru
      _
    // Predicated region
    $region54: #{tpu_custom_call.1} parent=1 // pred_check
      _
    $region55: #{tpu_custom_call.1} parent=1 // pred_check_branch
      %114 = sbr.rel (0) target = $region57
    $region56: #{tpu_custom_call.1} parent=1 // pred_region
      %115 = dma.done [#allocation12], 128
    $region57: #{tpu_custom_call.1} parent=1 // pred_fallthru
      _
    %v117 = vld [vmem:[#allocation2] sm:$0xff]
    %v118 = vld [vmem:[#allocation2 + $0x8] sm:$0xff]
    %v119 = vld [vmem:[#allocation2 + $0x10] sm:$0xff]
    %v120 = vld [vmem:[#allocation2 + $0x18] sm:$0xff]
    %v121 = vld [vmem:[#allocation2 + $0x20] sm:$0xff]
    %v122 = vld [vmem:[#allocation2 + $0x28] sm:$0xff]
    %v123 = vld [vmem:[#allocation2 + $0x30] sm:$0xff]
    %v124 = vld [vmem:[#allocation2 + $0x38] sm:$0xff]
    %v125 = vld [vmem:[#allocation5] sm:$0xff]
    %v126 = vld [vmem:[#allocation5 + $0x8] sm:$0xff]
    %v127 = vld [vmem:[#allocation5 + $0x10] sm:$0xff]
    %v128 = vld [vmem:[#allocation5 + $0x18] sm:$0xff]
    %v129 = vld [vmem:[#allocation5 + $0x20] sm:$0xff]
    %v130 = vld [vmem:[#allocation5 + $0x28] sm:$0xff]
    %v131 = vld [vmem:[#allocation5 + $0x30] sm:$0xff]
    %v132 = vld [vmem:[#allocation5 + $0x38] sm:$0xff]
    %v133 = vld [vmem:[#allocation5 + $0x40] sm:$0xff]
    %v134 = vld [vmem:[#allocation5 + $0x48] sm:$0xff]
    %v135 = vld [vmem:[#allocation5 + $0x50] sm:$0xff]
    %v136 = vld [vmem:[#allocation5 + $0x58] sm:$0xff]
    %v137 = vld [vmem:[#allocation5 + $0x60] sm:$0xff]
    %v138 = vld [vmem:[#allocation5 + $0x68] sm:$0xff]
    %v139 = vld [vmem:[#allocation5 + $0x70] sm:$0xff]
    %v140 = vld [vmem:[#allocation5 + $0x78] sm:$0xff]
    %v141 = vld [vmem:[#allocation5 + $0x80] sm:$0xff]
    %v142 = vld [vmem:[#allocation5 + $0x88] sm:$0xff]
    %v143 = vld [vmem:[#allocation5 + $0x90] sm:$0xff]
    %v144 = vld [vmem:[#allocation5 + $0x98] sm:$0xff]
    %v145 = vld [vmem:[#allocation5 + $0xa0] sm:$0xff]
    %v146 = vld [vmem:[#allocation5 + $0xa8] sm:$0xff]
    %v147 = vld [vmem:[#allocation5 + $0xb0] sm:$0xff]
    %v148 = vld [vmem:[#allocation5 + $0xb8] sm:$0xff]
    %v149 = vld [vmem:[#allocation5 + $0xc0] sm:$0xff]
    %v150 = vld [vmem:[#allocation5 + $0xc8] sm:$0xff]
    %v151 = vld [vmem:[#allocation5 + $0xd0] sm:$0xff]
    %v152 = vld [vmem:[#allocation5 + $0xd8] sm:$0xff]
    %v153 = vld [vmem:[#allocation5 + $0xe0] sm:$0xff]
    %v154 = vld [vmem:[#allocation5 + $0xe8] sm:$0xff]
    %v155 = vld [vmem:[#allocation5 + $0xf0] sm:$0xff]
    %v156 = vld [vmem:[#allocation5 + $0xf8] sm:$0xff]
    %v157 = vld [vmem:[#allocation7] sm:$0xff]
    %v158 = vpack.c.bf16 %v118, %v117
    %v159 = vpack.c.bf16 %v120, %v119
    %v160 = vpack.c.bf16 %v122, %v121
    %v161 = vpack.c.bf16 %v124, %v123
    %v162 = vunpack.c.l.bf16 %v158
    %v163 = vunpack.c.h.bf16 %v158
    %v164 = vunpack.c.l.bf16 %v159
    %v165 = vunpack.c.h.bf16 %v159
    %v166 = vunpack.c.l.bf16 %v160
    %v167 = vunpack.c.h.bf16 %v160
    %v168 = vunpack.c.l.bf16 %v161
    %v169 = vunpack.c.h.bf16 %v161
    %v170 = vmul.f32 %v162, %v162
    %v171 = vmul.f32 %v163, %v163
    %v172 = vmul.f32 %v164, %v164
    %v173 = vmul.f32 %v165, %v165
    %v174 = vmul.f32 %v166, %v166
    %v175 = vmul.f32 %v167, %v167
    %v176 = vmul.f32 %v168, %v168
    %v177 = vmul.f32 %v169, %v169
    %178 = vadd.xlane.f32.xlu0 %v170
    %v179 = vpop.xlane.xlu0 %178
    %180 = vadd.xlane.f32.xlu0 %v171
    %v181 = vpop.xlane.xlu0 %180
    %182 = vadd.xlane.f32.xlu0 %v172
    %v183 = vpop.xlane.xlu0 %182
    %184 = vadd.xlane.f32.xlu0 %v173
    %v185 = vpop.xlane.xlu0 %184
    %186 = vadd.xlane.f32.xlu0 %v174
    %v187 = vpop.xlane.xlu0 %186
    %188 = vadd.xlane.f32.xlu0 %v175
    %v189 = vpop.xlane.xlu0 %188
    %190 = vadd.xlane.f32.xlu0 %v176
    %v191 = vpop.xlane.xlu0 %190
    %192 = vadd.xlane.f32.xlu0 %v177
    %v193 = vpop.xlane.xlu0 %192
    %194 = vmatprep.subr.bf16.mxu0 0
    %195 = vmatpush1.bf16.xpose.msra.mxu0 %v158
    %196 = vmatprep.subr.bf16.mxu0 0
    %197 = vmatpush1.bf16.xpose.msra.mxu0 %v159
    %198 = vmatprep.subr.bf16.mxu0 0
    %199 = vmatpush1.bf16.xpose.msra.mxu0 %v160
    %200 = vmatprep.subr.bf16.mxu0 0
    %201 = vmatpush1.bf16.xpose.msra.mxu0 %v161
    %202 = vmatprep.subr.bf16.mxu0 0
    %203 = vmatpush1.bf16.xpose.msra.mxu0 0
    %204 = vmatprep.subr.bf16.mxu0 0
    %205 = vmatpush1.bf16.xpose.msra.mxu0 0
    %206 = vmatprep.subr.bf16.mxu0 0
    %207 = vmatpush1.bf16.xpose.msra.mxu0 0
    %208 = vmatprep.subr.bf16.mxu0 0
    %209 = vmatpush1.bf16.xpose.msra.mxu0 0
    %210 = vmatprep.subr.bf16.mxu0 0
    %211 = vmatpush1.bf16.xpose.msra.mxu0 0
    %212 = vmatprep.subr.bf16.mxu0 0
    %213 = vmatpush1.bf16.xpose.msra.mxu0 0
    %214 = vmatprep.subr.bf16.mxu0 0
    %215 = vmatpush1.bf16.xpose.msra.mxu0 0
    %216 = vmatprep.subr.bf16.mxu0 0
    %217 = vmatpush1.bf16.xpose.msra.mxu0 0
    %218 = vmatprep.subr.bf16.mxu0 0
    %219 = vmatpush1.bf16.xpose.msra.mxu0 0
    %220 = vmatprep.subr.bf16.mxu0 0
    %221 = vmatpush1.bf16.xpose.msra.mxu0 0
    %222 = vmatprep.subr.bf16.mxu0 0
    %223 = vmatpush1.bf16.xpose.msra.mxu0 0
    %224 = vmatprep.subr.bf16.mxu0 0
    %225 = vmatpush1.bf16.xpose.msra.mxu0 0
    %226 = vmatprep.mubr.bf16.mxu0 0
    %227 = vmatmul.mubr.bf16.gmra.mrb[0].mxu0 %v158
    %v228 = vpop.f32.mrb[0].mxu0
    %v229 = vadd.f32 0.0, %v228
    %v230 = vpop.f32.mrb[0].mxu0
    %v231 = vpop.f32.mrb[0].mxu0
    %v232 = vadd.f32 0.0, %v231
    %v233 = vpop.f32.mrb[0].mxu0
    %234 = vmatprep.mubr.bf16.mxu0 0
    %235 = vmatmul.mubr.bf16.gmra.mrb[0].mxu0 %v159
    %v236 = vpop.f32.mrb[0].mxu0
    %v237 = vadd.f32 0.0, %v236
    %v238 = vpop.f32.mrb[0].mxu0
    %v239 = vpop.f32.mrb[0].mxu0
    %v240 = vadd.f32 0.0, %v239
    %v241 = vpop.f32.mrb[0].mxu0
    %242 = vmatprep.mubr.bf16.mxu0 0
    %243 = vmatmul.mubr.bf16.gmra.mrb[0].mxu0 %v160
    %v244 = vpop.f32.mrb[0].mxu0
    %v245 = vadd.f32 0.0, %v244
    %v246 = vpop.f32.mrb[0].mxu0
    %v247 = vpop.f32.mrb[0].mxu0
    %v248 = vadd.f32 0.0, %v247
    %v249 = vpop.f32.mrb[0].mxu0
    %250 = vmatprep.mubr.bf16.mxu0 0
    %251 = vmatmul.mubr.bf16.gmra.mrb[0].mxu0 %v161
    %v252 = vpop.f32.mrb[0].mxu0
    %v253 = vadd.f32 0.0, %v252
    %v254 = vpop.f32.mrb[0].mxu0
    %v255 = vpop.f32.mrb[0].mxu0
    %v256 = vadd.f32 0.0, %v255
    %v257 = vpop.f32.mrb[0].mxu0
    %258 = vdwg.mxu0
    %259 = vxpose.xlu0.b32.start [1/16] %v179, 128
    %260 = vxpose.xlu0.b32.cont [2/16] %v181, 128
    %261 = vxpose.xlu0.b32.cont [3/16] %v183, 128
    %262 = vxpose.xlu0.b32.cont [4/16] %v185, 128
    %263 = vxpose.xlu0.b32.cont [5/16] %v187, 128
    %264 = vxpose.xlu0.b32.cont [6/16] %v189, 128
    %265 = vxpose.xlu0.b32.cont [7/16] %v191, 128
    %266 = vxpose.xlu0.b32.cont [8/16] %v193, 128
    %267 = vxpose.xlu0.b32.cont [9/16] 0.0, 128
    %268 = vxpose.xlu0.b32.cont [10/16] 0.0, 128
    %269 = vxpose.xlu0.b32.cont [11/16] 0.0, 128
    %270 = vxpose.xlu0.b32.cont [12/16] 0.0, 128
    %271 = vxpose.xlu0.b32.cont [13/16] 0.0, 128
    %272 = vxpose.xlu0.b32.cont [14/16] 0.0, 128
    %273 = vxpose.xlu0.b32.cont [15/16] 0.0, 128
    %274 = vxpose.xlu0.b32.end [16/16] 0.0, 128
    %v275 = vpop.trf.xlu0
    %v276 = vpop.trf.xlu0
    %v277 = vpop.trf.xlu0
    %v278 = vpop.trf.xlu0
    %v279 = vpop.trf.xlu0
    %v280 = vpop.trf.xlu0
    %v281 = vpop.trf.xlu0
    %v282 = vpop.trf.xlu0
    %v283 = vpop.trf.xlu0
    %v284 = vpop.trf.xlu0
    %v285 = vpop.trf.xlu0
    %v286 = vpop.trf.xlu0
    %v287 = vpop.trf.xlu0
    %v288 = vpop.trf.xlu0
    %v289 = vpop.trf.xlu0
    %v290 = vpop.trf.xlu0
    %v291 = vlaneseq
    %v292 = vshrl.u32 %v291, 7
    %v293 = vsub.s32 0, %v292
    %v294 = vrot.slane %v275, %v293
    %v295 = vadd.f32 %v179, %v294
    %v296 = vadd.f32 %v181, %v294
    %v297 = vadd.f32 %v183, %v294
    %v298 = vadd.f32 %v185, %v294
    %v299 = vadd.f32 %v187, %v294
    %v300 = vadd.f32 %v189, %v294
    %v301 = vadd.f32 %v191, %v294
    %v302 = vadd.f32 %v193, %v294
    %v303 = vmul.f32 %v229, 2.0
    %v304 = vmul.f32 %v232, 2.0
    %v305 = vmul.f32 %v237, 2.0
    %v306 = vmul.f32 %v240, 2.0
    %v307 = vmul.f32 %v245, 2.0
    %v308 = vmul.f32 %v248, 2.0
    %v309 = vmul.f32 %v253, 2.0
    %v310 = vmul.f32 %v256, 2.0
    %v311 = vsub.f32 %v295, %v303
    %v312 = vsub.f32 %v296, %v304
    %v313 = vsub.f32 %v297, %v305
    %v314 = vsub.f32 %v298, %v306
    %v315 = vsub.f32 %v299, %v307
    %v316 = vsub.f32 %v300, %v308
    %v317 = vsub.f32 %v301, %v309
    %v318 = vsub.f32 %v302, %v310
    %v319 = vmax.f32 %v311, 0.0
    %v320 = vmax.f32 %v312, 0.0
    %v321 = vmax.f32 %v313, 0.0
    %v322 = vmax.f32 %v314, 0.0
    %v323 = vmax.f32 %v315, 0.0
    %v324 = vmax.f32 %v316, 0.0
    %v325 = vmax.f32 %v317, 0.0
    %v326 = vmax.f32 %v318, 0.0
    %327 = vmatprep.subr.mxu0 %v126
    %328 = vmatpush1.msra.mxu0 %v125
    %329 = vmatprep.subr.mxu0 %v128
    %330 = vmatpush1.msra.mxu0 %v127
    %331 = vmatprep.subr.mxu0 %v130
    %332 = vmatpush1.msra.mxu0 %v129
    %333 = vmatprep.subr.mxu0 %v132
    %334 = vmatpush1.msra.mxu0 %v131
    %335 = vmatprep.subr.mxu0 %v134
    %336 = vmatpush1.msra.mxu0 %v133
    %337 = vmatprep.subr.mxu0 %v136
    %338 = vmatpush1.msra.mxu0 %v135
    %339 = vmatprep.subr.mxu0 %v138
    %340 = vmatpush1.msra.mxu0 %v137
    %341 = vmatprep.subr.mxu0 %v140
    %342 = vmatpush1.msra.mxu0 %v139
    %343 = vmatprep.subr.mxu0 %v142
    %344 = vmatpush1.msra.mxu0 %v141
    %345 = vmatprep.subr.mxu0 %v144
    %346 = vmatpush1.msra.mxu0 %v143
    %347 = vmatprep.subr.mxu0 %v146
    %348 = vmatpush1.msra.mxu0 %v145
    %349 = vmatprep.subr.mxu0 %v148
    %350 = vmatpush1.msra.mxu0 %v147
    %351 = vmatprep.subr.mxu0 %v150
    %352 = vmatpush1.msra.mxu0 %v149
    %353 = vmatprep.subr.mxu0 %v152
    %354 = vmatpush1.msra.mxu0 %v151
    %355 = vmatprep.subr.mxu0 %v154
    %356 = vmatpush1.msra.mxu0 %v153
    %357 = vmatprep.subr.mxu0 %v156
    %358 = vmatpush1.msra.mxu0 %v155
    %359 = vmatprep.subr.mxu0 0.0
    %360 = vmatpush1.msra.mxu0 0.0
    %361 = vmatprep.subr.mxu0 0.0
    %362 = vmatpush1.msra.mxu0 0.0
    %363 = vmatprep.subr.mxu0 0.0
    %364 = vmatpush1.msra.mxu0 0.0
    %365 = vmatprep.subr.mxu0 0.0
    %366 = vmatpush1.msra.mxu0 0.0
    %367 = vmatprep.subr.mxu0 0.0
    %368 = vmatpush1.msra.mxu0 0.0
    %369 = vmatprep.subr.mxu0 0.0
    %370 = vmatpush1.msra.mxu0 0.0
    %371 = vmatprep.subr.mxu0 0.0
    %372 = vmatpush1.msra.mxu0 0.0
    %373 = vmatprep.subr.mxu0 0.0
    %374 = vmatpush1.msra.mxu0 0.0
    %375 = vmatprep.subr.mxu0 0.0
    %376 = vmatpush1.msra.mxu0 0.0
    %377 = vmatprep.subr.mxu0 0.0
    %378 = vmatpush1.msra.mxu0 0.0
    %379 = vmatprep.subr.mxu0 0.0
    %380 = vmatpush1.msra.mxu0 0.0
    %381 = vmatprep.subr.mxu0 0.0
    %382 = vmatpush1.msra.mxu0 0.0
    %383 = vmatprep.subr.mxu0 0.0
    %384 = vmatpush1.msra.mxu0 0.0
    %385 = vmatprep.subr.mxu0 0.0
    %386 = vmatpush1.msra.mxu0 0.0
    %387 = vmatprep.subr.mxu0 0.0
    %388 = vmatpush1.msra.mxu0 0.0
    %389 = vmatprep.subr.mxu0 0.0
    %390 = vmatpush1.msra.mxu0 0.0
    %391 = vmatprep.mubr.f32.mxu0 0.0
    %392 = vmatmul.mubr.f32.gmra.mrb[0].mxu0 %v117
    %v393 = vpop.f32.mrb[0].mxu0
    %v394 = vadd.f32 0.0, %v393
    %v395 = vpop.f32.mrb[0].mxu0
    %v396 = vadd.f32 0.0, %v395
    %397 = vmatprep.mubr.f32.mxu0 0.0
    %398 = vmatmul.mubr.f32.gmra.mrb[0].mxu0 %v118
    %v399 = vpop.f32.mrb[0].mxu0
    %v400 = vadd.f32 0.0, %v399
    %v401 = vpop.f32.mrb[0].mxu0
    %v402 = vadd.f32 0.0, %v401
    %403 = vmatprep.mubr.f32.mxu0 0.0
    %404 = vmatmul.mubr.f32.gmra.mrb[0].mxu0 %v119
    %v405 = vpop.f32.mrb[0].mxu0
    %v406 = vadd.f32 0.0, %v405
    %v407 = vpop.f32.mrb[0].mxu0
    %v408 = vadd.f32 0.0, %v407
    %409 = vmatprep.mubr.f32.mxu0 0.0
    %410 = vmatmul.mubr.f32.gmra.mrb[0].mxu0 %v120
    %v411 = vpop.f32.mrb[0].mxu0
    %v412 = vadd.f32 0.0, %v411
    %v413 = vpop.f32.mrb[0].mxu0
    %v414 = vadd.f32 0.0, %v413
    %415 = vmatprep.mubr.f32.mxu0 0.0
    %416 = vmatmul.mubr.f32.gmra.mrb[0].mxu0 %v121
    %v417 = vpop.f32.mrb[0].mxu0
    %v418 = vadd.f32 0.0, %v417
    %v419 = vpop.f32.mrb[0].mxu0
    %v420 = vadd.f32 0.0, %v419
    %421 = vmatprep.mubr.f32.mxu0 0.0
    %422 = vmatmul.mubr.f32.gmra.mrb[0].mxu0 %v122
    %v423 = vpop.f32.mrb[0].mxu0
    %v424 = vadd.f32 0.0, %v423
    %v425 = vpop.f32.mrb[0].mxu0
    %v426 = vadd.f32 0.0, %v425
    %427 = vmatprep.mubr.f32.mxu0 0.0
    %428 = vmatmul.mubr.f32.gmra.mrb[0].mxu0 %v123
    %v429 = vpop.f32.mrb[0].mxu0
    %v430 = vadd.f32 0.0, %v429
    %v431 = vpop.f32.mrb[0].mxu0
    %v432 = vadd.f32 0.0, %v431
    %433 = vmatprep.mubr.f32.mxu0 0.0
    %434 = vmatmul.mubr.f32.gmra.mrb[0].mxu0 %v124
    %v435 = vpop.f32.mrb[0].mxu0
    %v436 = vadd.f32 0.0, %v435
    %v437 = vpop.f32.mrb[0].mxu0
    %v438 = vadd.f32 0.0, %v437
    %439 = vdwg.mxu0
    %v440 = vlaneseq
    %v441 = vshrl.u32 %v440, 7
    %v442 = vsub.s32 0, %v441
    %v443 = vrot.slane %v157, %v442
    %v444 = vadd.f32 %v394, %v443
    %v445 = vadd.f32 %v400, %v443
    %v446 = vadd.f32 %v406, %v443
    %v447 = vadd.f32 %v412, %v443
    %v448 = vadd.f32 %v418, %v443
    %v449 = vadd.f32 %v424, %v443
    %v450 = vadd.f32 %v430, %v443
    %v451 = vadd.f32 %v436, %v443
    %v452 = vlaneseq
    %v453 = vand.u32 %v452, 127
    %v462 = vand.u32 %v319, 4294967232
    %v463 = vand.u32 %v320, 4294967232
    %v464 = vand.u32 %v321, 4294967232
    %v465 = vand.u32 %v322, 4294967232
    %v466 = vand.u32 %v323, 4294967232
    %v467 = vand.u32 %v324, 4294967232
    %v468 = vand.u32 %v325, 4294967232
    %v469 = vand.u32 %v326, 4294967232
    %v470 = vor.u32 %v462, %v453
    %v471 = vor.u32 %v463, %v453
    %v472 = vor.u32 %v464, %v453
    %v473 = vor.u32 %v465, %v453
    %v474 = vor.u32 %v466, %v453
    %v475 = vor.u32 %v467, %v453
    %v476 = vor.u32 %v468, %v453
    %v477 = vor.u32 %v469, %v453
    %v478 = vpack.c.bf16 %v402, %v396
    %v479 = vpack.c.bf16 %v414, %v408
    %v480 = vpack.c.bf16 %v426, %v420
    %v481 = vpack.c.bf16 %v438, %v432
    %vm482 = vcmask 523264
    %v483 = vsel %vm482, %v470, 2147483647
    %v484 = vand.u32 %v483, 65535
    %v485 = vshra.s32 %v483, 16
    %v486 = vcvt.s32.f32 %v484
    %v487 = vcvt.s32.f32 %v485
    %488 = vmin.xlane.f32.xlu0 %v487
    %v489 = vpop.xlane.xlu0 %488
    %vm490 = vcmp.eq.f32.partialorder %v487, %v489
    %v491 = vsel %vm490, %v486, inf
    %492 = vmin.xlane.f32.xlu0 %v491
    %v493 = vpop.xlane.xlu0 %492
    %v494 = vcvt.f32.s32 %v493
    %v495 = vcvt.f32.s32 %v489
    %v496 = vshll.u32 %v495, 16
    %v497 = vadd.s32 %v496, %v494
    %v498 = vsel %vm482, %v471, 2147483647
    %v499 = vand.u32 %v498, 65535
    %v500 = vshra.s32 %v498, 16
    %v501 = vcvt.s32.f32 %v499
    %v502 = vcvt.s32.f32 %v500
    %503 = vmin.xlane.f32.xlu0 %v502
    %v504 = vpop.xlane.xlu0 %503
    %vm505 = vcmp.eq.f32.partialorder %v502, %v504
    %v506 = vsel %vm505, %v501, inf
    %507 = vmin.xlane.f32.xlu0 %v506
    %v508 = vpop.xlane.xlu0 %507
    %v509 = vcvt.f32.s32 %v508
    %v510 = vcvt.f32.s32 %v504
    %v511 = vshll.u32 %v510, 16
    %v512 = vadd.s32 %v511, %v509
    %v513 = vsel %vm482, %v472, 2147483647
    %v514 = vand.u32 %v513, 65535
    %v515 = vshra.s32 %v513, 16
    %v516 = vcvt.s32.f32 %v514
    %v517 = vcvt.s32.f32 %v515
    %518 = vmin.xlane.f32.xlu0 %v517
    %v519 = vpop.xlane.xlu0 %518
    %vm520 = vcmp.eq.f32.partialorder %v517, %v519
    %v521 = vsel %vm520, %v516, inf
    %522 = vmin.xlane.f32.xlu0 %v521
    %v523 = vpop.xlane.xlu0 %522
    %v524 = vcvt.f32.s32 %v523
    %v525 = vcvt.f32.s32 %v519
    %v526 = vshll.u32 %v525, 16
    %v527 = vadd.s32 %v526, %v524
    %v528 = vsel %vm482, %v473, 2147483647
    %v529 = vand.u32 %v528, 65535
    %v530 = vshra.s32 %v528, 16
    %v531 = vcvt.s32.f32 %v529
    %v532 = vcvt.s32.f32 %v530
    %533 = vmin.xlane.f32.xlu0 %v532
    %v534 = vpop.xlane.xlu0 %533
    %vm535 = vcmp.eq.f32.partialorder %v532, %v534
    %v536 = vsel %vm535, %v531, inf
    %537 = vmin.xlane.f32.xlu0 %v536
    %v538 = vpop.xlane.xlu0 %537
    %v539 = vcvt.f32.s32 %v538
    %v540 = vcvt.f32.s32 %v534
    %v541 = vshll.u32 %v540, 16
    %v542 = vadd.s32 %v541, %v539
    %v543 = vsel %vm482, %v474, 2147483647
    %v544 = vand.u32 %v543, 65535
    %v545 = vshra.s32 %v543, 16
    %v546 = vcvt.s32.f32 %v544
    %v547 = vcvt.s32.f32 %v545
    %548 = vmin.xlane.f32.xlu0 %v547
    %v549 = vpop.xlane.xlu0 %548
    %vm550 = vcmp.eq.f32.partialorder %v547, %v549
    %v551 = vsel %vm550, %v546, inf
    %552 = vmin.xlane.f32.xlu0 %v551
    %v553 = vpop.xlane.xlu0 %552
    %v554 = vcvt.f32.s32 %v553
    %v555 = vcvt.f32.s32 %v549
    %v556 = vshll.u32 %v555, 16
    %v557 = vadd.s32 %v556, %v554
    %v558 = vsel %vm482, %v475, 2147483647
    %v559 = vand.u32 %v558, 65535
    %v560 = vshra.s32 %v558, 16
    %v561 = vcvt.s32.f32 %v559
    %v562 = vcvt.s32.f32 %v560
    %563 = vmin.xlane.f32.xlu0 %v562
    %v564 = vpop.xlane.xlu0 %563
    %vm565 = vcmp.eq.f32.partialorder %v562, %v564
    %v566 = vsel %vm565, %v561, inf
    %567 = vmin.xlane.f32.xlu0 %v566
    %v568 = vpop.xlane.xlu0 %567
    %v569 = vcvt.f32.s32 %v568
    %v570 = vcvt.f32.s32 %v564
    %v571 = vshll.u32 %v570, 16
    %v572 = vadd.s32 %v571, %v569
    %v573 = vsel %vm482, %v476, 2147483647
    %v574 = vand.u32 %v573, 65535
    %v575 = vshra.s32 %v573, 16
    %v576 = vcvt.s32.f32 %v574
    %v577 = vcvt.s32.f32 %v575
    %578 = vmin.xlane.f32.xlu0 %v577
    %v579 = vpop.xlane.xlu0 %578
    %vm580 = vcmp.eq.f32.partialorder %v577, %v579
    %v581 = vsel %vm580, %v576, inf
    %582 = vmin.xlane.f32.xlu0 %v581
    %v583 = vpop.xlane.xlu0 %582
    %v584 = vcvt.f32.s32 %v583
    %v585 = vcvt.f32.s32 %v579
    %v586 = vshll.u32 %v585, 16
    %v587 = vadd.s32 %v586, %v584
    %v588 = vsel %vm482, %v477, 2147483647
    %v589 = vand.u32 %v588, 65535
    %v590 = vshra.s32 %v588, 16
    %v591 = vcvt.s32.f32 %v589
    %v592 = vcvt.s32.f32 %v590
    %593 = vmin.xlane.f32.xlu0 %v592
    %v594 = vpop.xlane.xlu0 %593
    %vm595 = vcmp.eq.f32.partialorder %v592, %v594
    %v596 = vsel %vm595, %v591, inf
    %597 = vmin.xlane.f32.xlu0 %v596
    %v598 = vpop.xlane.xlu0 %597
    %v599 = vcvt.f32.s32 %v598
    %v600 = vcvt.f32.s32 %v594
    %v601 = vshll.u32 %v600, 16
    %v602 = vadd.s32 %v601, %v599
    %v603 = vand.u32 %v497, 63
    %v604 = vand.u32 %v512, 63
    %v605 = vand.u32 %v527, 63
    %v606 = vand.u32 %v542, 63
    %v607 = vand.u32 %v557, 63
    %v608 = vand.u32 %v572, 63
    %v609 = vand.u32 %v587, 63
    %v610 = vand.u32 %v602, 63
    %vm611 = vcmp.eq.s32.totalorder %v453, %v603
    %vm612 = vcmp.eq.s32.totalorder %v453, %v604
    %vm613 = vcmp.eq.s32.totalorder %v453, %v605
    %vm614 = vcmp.eq.s32.totalorder %v453, %v606
    %vm615 = vcmp.eq.s32.totalorder %v453, %v607
    %vm616 = vcmp.eq.s32.totalorder %v453, %v608
    %vm617 = vcmp.eq.s32.totalorder %v453, %v609
    %vm618 = vcmp.eq.s32.totalorder %v453, %v610
    %v619 = vsel %vm611, 1.0, 0.0
    %v620 = vsel %vm612, 1.0, 0.0
    %v621 = vsel %vm613, 1.0, 0.0
    %v622 = vsel %vm614, 1.0, 0.0
    %v623 = vsel %vm615, 1.0, 0.0
    %v624 = vsel %vm616, 1.0, 0.0
    %v625 = vsel %vm617, 1.0, 0.0
    %v626 = vsel %vm618, 1.0, 0.0
    %v627 = vpack.c.bf16 %v620, %v619
    %v628 = vpack.c.bf16 %v622, %v621
    %v629 = vpack.c.bf16 %v624, %v623
    %v630 = vpack.c.bf16 %v626, %v625
    %v632 = vsel %vm482, %v627, 0
    %v635 = vsel %vm482, %v628, 0
    %v638 = vsel %vm482, %v629, 0
    %v641 = vsel %vm482, %v630, 0
    %643 = vmatprep.subr.bf16.mxu0 0
    %644 = vmatpush1.bf16.msra.mxu0 %v478
    %645 = vmatprep.subr.bf16.mxu0 0
    %646 = vmatpush1.bf16.msra.mxu0 %v479
    %647 = vmatprep.subr.bf16.mxu0 0
    %648 = vmatpush1.bf16.msra.mxu0 %v480
    %649 = vmatprep.subr.bf16.mxu0 0
    %650 = vmatpush1.bf16.msra.mxu0 %v481
    %651 = vmatprep.subr.bf16.mxu0 0
    %652 = vmatpush1.bf16.msra.mxu0 0
    %653 = vmatprep.subr.bf16.mxu0 0
    %654 = vmatpush1.bf16.msra.mxu0 0
    %655 = vmatprep.subr.bf16.mxu0 0
    %656 = vmatpush1.bf16.msra.mxu0 0
    %657 = vmatprep.subr.bf16.mxu0 0
    %658 = vmatpush1.bf16.msra.mxu0 0
    %659 = vmatprep.subr.bf16.mxu0 0
    %660 = vmatpush1.bf16.msra.mxu0 0
    %661 = vmatprep.subr.bf16.mxu0 0
    %662 = vmatpush1.bf16.msra.mxu0 0
    %663 = vmatprep.subr.bf16.mxu0 0
    %664 = vmatpush1.bf16.msra.mxu0 0
    %665 = vmatprep.subr.bf16.mxu0 0
    %666 = vmatpush1.bf16.msra.mxu0 0
    %667 = vmatprep.subr.bf16.mxu0 0
    %668 = vmatpush1.bf16.msra.mxu0 0
    %669 = vmatprep.subr.bf16.mxu0 0
    %670 = vmatpush1.bf16.msra.mxu0 0
    %671 = vmatprep.subr.bf16.mxu0 0
    %672 = vmatpush1.bf16.msra.mxu0 0
    %673 = vmatprep.subr.bf16.mxu0 0
    %674 = vmatpush1.bf16.msra.mxu0 0
    %675 = vmatprep.mubr.bf16.mxu0 0
    %676 = vmatmul.mubr.bf16.gmra.mrb[0].mxu0 %v632
    %v677 = vpop.f32.mrb[0].mxu0
    %v678 = vadd.f32 0.0, %v677
    %v679 = vpop.f32.mrb[0].mxu0
    %v680 = vpop.f32.mrb[0].mxu0
    %v681 = vadd.f32 0.0, %v680
    %v682 = vpop.f32.mrb[0].mxu0
    %683 = vmatprep.mubr.bf16.mxu0 0
    %684 = vmatmul.mubr.bf16.gmra.mrb[0].mxu0 %v635
    %v685 = vpop.f32.mrb[0].mxu0
    %v686 = vadd.f32 0.0, %v685
    %v687 = vpop.f32.mrb[0].mxu0
    %v688 = vpop.f32.mrb[0].mxu0
    %v689 = vadd.f32 0.0, %v688
    %v690 = vpop.f32.mrb[0].mxu0
    %691 = vmatprep.mubr.bf16.mxu0 0
    %692 = vmatmul.mubr.bf16.gmra.mrb[0].mxu0 %v638
    %v693 = vpop.f32.mrb[0].mxu0
    %v694 = vadd.f32 0.0, %v693
    %v695 = vpop.f32.mrb[0].mxu0
    %v696 = vpop.f32.mrb[0].mxu0
    %v697 = vadd.f32 0.0, %v696
    %v698 = vpop.f32.mrb[0].mxu0
    %699 = vmatprep.mubr.bf16.mxu0 0
    %700 = vmatmul.mubr.bf16.gmra.mrb[0].mxu0 %v641
    %v701 = vpop.f32.mrb[0].mxu0
    %v702 = vadd.f32 0.0, %v701
    %v703 = vpop.f32.mrb[0].mxu0
    %v704 = vpop.f32.mrb[0].mxu0
    %v705 = vadd.f32 0.0, %v704
    %v706 = vpop.f32.mrb[0].mxu0
    %707 = vdwg.mxu0
    %v708 = vsel %vm611, 2147483647, %v470
    %v709 = vsel %vm612, 2147483647, %v471
    %v710 = vsel %vm613, 2147483647, %v472
    %v711 = vsel %vm614, 2147483647, %v473
    %v712 = vsel %vm615, 2147483647, %v474
    %v713 = vsel %vm616, 2147483647, %v475
    %v714 = vsel %vm617, 2147483647, %v476
    %v715 = vsel %vm618, 2147483647, %v477
    %v716 = vsel %vm482, %v708, 2147483647
    %v717 = vand.u32 %v716, 65535
    %v718 = vshra.s32 %v716, 16
    %v719 = vcvt.s32.f32 %v717
    %v720 = vcvt.s32.f32 %v718
    %721 = vmin.xlane.f32.xlu0 %v720
    %v722 = vpop.xlane.xlu0 %721
    %vm723 = vcmp.eq.f32.partialorder %v720, %v722
    %v724 = vsel %vm723, %v719, inf
    %725 = vmin.xlane.f32.xlu0 %v724
    %v726 = vpop.xlane.xlu0 %725
    %v727 = vcvt.f32.s32 %v726
    %v728 = vcvt.f32.s32 %v722
    %v729 = vshll.u32 %v728, 16
    %v730 = vadd.s32 %v729, %v727
    %v731 = vsel %vm482, %v709, 2147483647
    %v732 = vand.u32 %v731, 65535
    %v733 = vshra.s32 %v731, 16
    %v734 = vcvt.s32.f32 %v732
    %v735 = vcvt.s32.f32 %v733
    %736 = vmin.xlane.f32.xlu0 %v735
    %v737 = vpop.xlane.xlu0 %736
    %vm738 = vcmp.eq.f32.partialorder %v735, %v737
    %v739 = vsel %vm738, %v734, inf
    %740 = vmin.xlane.f32.xlu0 %v739
    %v741 = vpop.xlane.xlu0 %740
    %v742 = vcvt.f32.s32 %v741
    %v743 = vcvt.f32.s32 %v737
    %v744 = vshll.u32 %v743, 16
    %v745 = vadd.s32 %v744, %v742
    %v746 = vsel %vm482, %v710, 2147483647
    %v747 = vand.u32 %v746, 65535
    %v748 = vshra.s32 %v746, 16
    %v749 = vcvt.s32.f32 %v747
    %v750 = vcvt.s32.f32 %v748
    %751 = vmin.xlane.f32.xlu0 %v750
    %v752 = vpop.xlane.xlu0 %751
    %vm753 = vcmp.eq.f32.partialorder %v750, %v752
    %v754 = vsel %vm753, %v749, inf
    %755 = vmin.xlane.f32.xlu0 %v754
    %v756 = vpop.xlane.xlu0 %755
    %v757 = vcvt.f32.s32 %v756
    %v758 = vcvt.f32.s32 %v752
    %v759 = vshll.u32 %v758, 16
    %v760 = vadd.s32 %v759, %v757
    %v761 = vsel %vm482, %v711, 2147483647
    %v762 = vand.u32 %v761, 65535
    %v763 = vshra.s32 %v761, 16
    %v764 = vcvt.s32.f32 %v762
    %v765 = vcvt.s32.f32 %v763
    %766 = vmin.xlane.f32.xlu0 %v765
    %v767 = vpop.xlane.xlu0 %766
    %vm768 = vcmp.eq.f32.partialorder %v765, %v767
    %v769 = vsel %vm768, %v764, inf
    %770 = vmin.xlane.f32.xlu0 %v769
    %v771 = vpop.xlane.xlu0 %770
    %v772 = vcvt.f32.s32 %v771
    %v773 = vcvt.f32.s32 %v767
    %v774 = vshll.u32 %v773, 16
    %v775 = vadd.s32 %v774, %v772
    %v776 = vsel %vm482, %v712, 2147483647
    %v777 = vand.u32 %v776, 65535
    %v778 = vshra.s32 %v776, 16
    %v779 = vcvt.s32.f32 %v777
    %v780 = vcvt.s32.f32 %v778
    %781 = vmin.xlane.f32.xlu0 %v780
    %v782 = vpop.xlane.xlu0 %781
    %vm783 = vcmp.eq.f32.partialorder %v780, %v782
    %v784 = vsel %vm783, %v779, inf
    %785 = vmin.xlane.f32.xlu0 %v784
    %v786 = vpop.xlane.xlu0 %785
    %v787 = vcvt.f32.s32 %v786
    %v788 = vcvt.f32.s32 %v782
    %v789 = vshll.u32 %v788, 16
    %v790 = vadd.s32 %v789, %v787
    %v791 = vsel %vm482, %v713, 2147483647
    %v792 = vand.u32 %v791, 65535
    %v793 = vshra.s32 %v791, 16
    %v794 = vcvt.s32.f32 %v792
    %v795 = vcvt.s32.f32 %v793
    %796 = vmin.xlane.f32.xlu0 %v795
    %v797 = vpop.xlane.xlu0 %796
    %vm798 = vcmp.eq.f32.partialorder %v795, %v797
    %v799 = vsel %vm798, %v794, inf
    %800 = vmin.xlane.f32.xlu0 %v799
    %v801 = vpop.xlane.xlu0 %800
    %v802 = vcvt.f32.s32 %v801
    %v803 = vcvt.f32.s32 %v797
    %v804 = vshll.u32 %v803, 16
    %v805 = vadd.s32 %v804, %v802
    %v806 = vsel %vm482, %v714, 2147483647
    %v807 = vand.u32 %v806, 65535
    %v808 = vshra.s32 %v806, 16
    %v809 = vcvt.s32.f32 %v807
    %v810 = vcvt.s32.f32 %v808
    %811 = vmin.xlane.f32.xlu0 %v810
    %v812 = vpop.xlane.xlu0 %811
    %vm813 = vcmp.eq.f32.partialorder %v810, %v812
    %v814 = vsel %vm813, %v809, inf
    %815 = vmin.xlane.f32.xlu0 %v814
    %v816 = vpop.xlane.xlu0 %815
    %v817 = vcvt.f32.s32 %v816
    %v818 = vcvt.f32.s32 %v812
    %v819 = vshll.u32 %v818, 16
    %v820 = vadd.s32 %v819, %v817
    %v821 = vsel %vm482, %v715, 2147483647
    %v822 = vand.u32 %v821, 65535
    %v823 = vshra.s32 %v821, 16
    %v824 = vcvt.s32.f32 %v822
    %v825 = vcvt.s32.f32 %v823
    %826 = vmin.xlane.f32.xlu0 %v825
    %v827 = vpop.xlane.xlu0 %826
    %vm828 = vcmp.eq.f32.partialorder %v825, %v827
    %v829 = vsel %vm828, %v824, inf
    %830 = vmin.xlane.f32.xlu0 %v829
    %v831 = vpop.xlane.xlu0 %830
    %v832 = vcvt.f32.s32 %v831
    %v833 = vcvt.f32.s32 %v827
    %v834 = vshll.u32 %v833, 16
    %v835 = vadd.s32 %v834, %v832
    %v836 = vand.u32 %v730, 63
    %v837 = vand.u32 %v745, 63
    %v838 = vand.u32 %v760, 63
    %v839 = vand.u32 %v775, 63
    %v840 = vand.u32 %v790, 63
    %v841 = vand.u32 %v805, 63
    %v842 = vand.u32 %v820, 63
    %v843 = vand.u32 %v835, 63
    %vm844 = vcmp.eq.s32.totalorder %v453, %v836
    %vm845 = vcmp.eq.s32.totalorder %v453, %v837
    %vm846 = vcmp.eq.s32.totalorder %v453, %v838
    %vm847 = vcmp.eq.s32.totalorder %v453, %v839
    %vm848 = vcmp.eq.s32.totalorder %v453, %v840
    %vm849 = vcmp.eq.s32.totalorder %v453, %v841
    %vm850 = vcmp.eq.s32.totalorder %v453, %v842
    %vm851 = vcmp.eq.s32.totalorder %v453, %v843
    %v852 = vsel %vm844, 1.0, 0.0
    %v853 = vsel %vm845, 1.0, 0.0
    %v854 = vsel %vm846, 1.0, 0.0
    %v855 = vsel %vm847, 1.0, 0.0
    %v856 = vsel %vm848, 1.0, 0.0
    %v857 = vsel %vm849, 1.0, 0.0
    %v858 = vsel %vm850, 1.0, 0.0
    %v859 = vsel %vm851, 1.0, 0.0
    %v860 = vpack.c.bf16 %v853, %v852
    %v861 = vpack.c.bf16 %v855, %v854
    %v862 = vpack.c.bf16 %v857, %v856
    %v863 = vpack.c.bf16 %v859, %v858
    %v865 = vsel %vm482, %v860, 0
    %v868 = vsel %vm482, %v861, 0
    %v871 = vsel %vm482, %v862, 0
    %v874 = vsel %vm482, %v863, 0
    %876 = vmatprep.subr.bf16.mxu0 0
    %877 = vmatpush1.bf16.msra.mxu0 %v478
    %878 = vmatprep.subr.bf16.mxu0 0
    %879 = vmatpush1.bf16.msra.mxu0 %v479
    %880 = vmatprep.subr.bf16.mxu0 0
    %881 = vmatpush1.bf16.msra.mxu0 %v480
    %882 = vmatprep.subr.bf16.mxu0 0
    %883 = vmatpush1.bf16.msra.mxu0 %v481
    %884 = vmatprep.subr.bf16.mxu0 0
    %885 = vmatpush1.bf16.msra.mxu0 0
    %886 = vmatprep.subr.bf16.mxu0 0
    %887 = vmatpush1.bf16.msra.mxu0 0
    %888 = vmatprep.subr.bf16.mxu0 0
    %889 = vmatpush1.bf16.msra.mxu0 0
    %890 = vmatprep.subr.bf16.mxu0 0
    %891 = vmatpush1.bf16.msra.mxu0 0
    %892 = vmatprep.subr.bf16.mxu0 0
    %893 = vmatpush1.bf16.msra.mxu0 0
    %894 = vmatprep.subr.bf16.mxu0 0
    %895 = vmatpush1.bf16.msra.mxu0 0
    %896 = vmatprep.subr.bf16.mxu0 0
    %897 = vmatpush1.bf16.msra.mxu0 0
    %898 = vmatprep.subr.bf16.mxu0 0
    %899 = vmatpush1.bf16.msra.mxu0 0
    %900 = vmatprep.subr.bf16.mxu0 0
    %901 = vmatpush1.bf16.msra.mxu0 0
    %902 = vmatprep.subr.bf16.mxu0 0
    %903 = vmatpush1.bf16.msra.mxu0 0
    %904 = vmatprep.subr.bf16.mxu0 0
    %905 = vmatpush1.bf16.msra.mxu0 0
    %906 = vmatprep.subr.bf16.mxu0 0
    %907 = vmatpush1.bf16.msra.mxu0 0
    %908 = vmatprep.mubr.bf16.mxu0 0
    %909 = vmatmul.mubr.bf16.gmra.mrb[0].mxu0 %v865
    %v910 = vpop.f32.mrb[0].mxu0
    %v911 = vadd.f32 0.0, %v910
    %v912 = vpop.f32.mrb[0].mxu0
    %v913 = vpop.f32.mrb[0].mxu0
    %v914 = vadd.f32 0.0, %v913
    %v915 = vpop.f32.mrb[0].mxu0
    %916 = vmatprep.mubr.bf16.mxu0 0
    %917 = vmatmul.mubr.bf16.gmra.mrb[0].mxu0 %v868
    %v918 = vpop.f32.mrb[0].mxu0
    %v919 = vadd.f32 0.0, %v918
    %v920 = vpop.f32.mrb[0].mxu0
    %v921 = vpop.f32.mrb[0].mxu0
    %v922 = vadd.f32 0.0, %v921
    %v923 = vpop.f32.mrb[0].mxu0
    %924 = vmatprep.mubr.bf16.mxu0 0
    %925 = vmatmul.mubr.bf16.gmra.mrb[0].mxu0 %v871
    %v926 = vpop.f32.mrb[0].mxu0
    %v927 = vadd.f32 0.0, %v926
    %v928 = vpop.f32.mrb[0].mxu0
    %v929 = vpop.f32.mrb[0].mxu0
    %v930 = vadd.f32 0.0, %v929
    %v931 = vpop.f32.mrb[0].mxu0
    %932 = vmatprep.mubr.bf16.mxu0 0
    %933 = vmatmul.mubr.bf16.gmra.mrb[0].mxu0 %v874
    %v934 = vpop.f32.mrb[0].mxu0
    %v935 = vadd.f32 0.0, %v934
    %v936 = vpop.f32.mrb[0].mxu0
    %v937 = vpop.f32.mrb[0].mxu0
    %v938 = vadd.f32 0.0, %v937
    %v939 = vpop.f32.mrb[0].mxu0
    %940 = vdwg.mxu0
    %v941 = vmax.f32 %v678, %v911
    %v942 = vmax.f32 %v681, %v914
    %v943 = vmax.f32 %v686, %v919
    %v944 = vmax.f32 %v689, %v922
    %v945 = vmax.f32 %v694, %v927
    %v946 = vmax.f32 %v697, %v930
    %v947 = vmax.f32 %v702, %v935
    %v948 = vmax.f32 %v705, %v938
    %v949 = vsel %vm844, 2147483647, %v708
    %v950 = vsel %vm845, 2147483647, %v709
    %v951 = vsel %vm846, 2147483647, %v710
    %v952 = vsel %vm847, 2147483647, %v711
    %v953 = vsel %vm848, 2147483647, %v712
    %v954 = vsel %vm849, 2147483647, %v713
    %v955 = vsel %vm850, 2147483647, %v714
    %v956 = vsel %vm851, 2147483647, %v715
    %v957 = vsel %vm482, %v949, 2147483647
    %v958 = vand.u32 %v957, 65535
    %v959 = vshra.s32 %v957, 16
    %v960 = vcvt.s32.f32 %v958
    %v961 = vcvt.s32.f32 %v959
    %962 = vmin.xlane.f32.xlu0 %v961
    %v963 = vpop.xlane.xlu0 %962
    %vm964 = vcmp.eq.f32.partialorder %v961, %v963
    %v965 = vsel %vm964, %v960, inf
    %966 = vmin.xlane.f32.xlu0 %v965
    %v967 = vpop.xlane.xlu0 %966
    %v968 = vcvt.f32.s32 %v967
    %v969 = vcvt.f32.s32 %v963
    %v970 = vshll.u32 %v969, 16
    %v971 = vadd.s32 %v970, %v968
    %v972 = vsel %vm482, %v950, 2147483647
    %v973 = vand.u32 %v972, 65535
    %v974 = vshra.s32 %v972, 16
    %v975 = vcvt.s32.f32 %v973
    %v976 = vcvt.s32.f32 %v974
    %977 = vmin.xlane.f32.xlu0 %v976
    %v978 = vpop.xlane.xlu0 %977
    %vm979 = vcmp.eq.f32.partialorder %v976, %v978
    %v980 = vsel %vm979, %v975, inf
    %981 = vmin.xlane.f32.xlu0 %v980
    %v982 = vpop.xlane.xlu0 %981
    %v983 = vcvt.f32.s32 %v982
    %v984 = vcvt.f32.s32 %v978
    %v985 = vshll.u32 %v984, 16
    %v986 = vadd.s32 %v985, %v983
    %v987 = vsel %vm482, %v951, 2147483647
    %v988 = vand.u32 %v987, 65535
    %v989 = vshra.s32 %v987, 16
    %v990 = vcvt.s32.f32 %v988
    %v991 = vcvt.s32.f32 %v989
    %992 = vmin.xlane.f32.xlu0 %v991
    %v993 = vpop.xlane.xlu0 %992
    %vm994 = vcmp.eq.f32.partialorder %v991, %v993
    %v995 = vsel %vm994, %v990, inf
    %996 = vmin.xlane.f32.xlu0 %v995
    %v997 = vpop.xlane.xlu0 %996
    %v998 = vcvt.f32.s32 %v997
    %v999 = vcvt.f32.s32 %v993
    %v1000 = vshll.u32 %v999, 16
    %v1001 = vadd.s32 %v1000, %v998
    %v1002 = vsel %vm482, %v952, 2147483647
    %v1003 = vand.u32 %v1002, 65535
    %v1004 = vshra.s32 %v1002, 16
    %v1005 = vcvt.s32.f32 %v1003
    %v1006 = vcvt.s32.f32 %v1004
    %1007 = vmin.xlane.f32.xlu0 %v1006
    %v1008 = vpop.xlane.xlu0 %1007
    %vm1009 = vcmp.eq.f32.partialorder %v1006, %v1008
    %v1010 = vsel %vm1009, %v1005, inf
    %1011 = vmin.xlane.f32.xlu0 %v1010
    %v1012 = vpop.xlane.xlu0 %1011
    %v1013 = vcvt.f32.s32 %v1012
    %v1014 = vcvt.f32.s32 %v1008
    %v1015 = vshll.u32 %v1014, 16
    %v1016 = vadd.s32 %v1015, %v1013
    %v1017 = vsel %vm482, %v953, 2147483647
    %v1018 = vand.u32 %v1017, 65535
    %v1019 = vshra.s32 %v1017, 16
    %v1020 = vcvt.s32.f32 %v1018
    %v1021 = vcvt.s32.f32 %v1019
    %1022 = vmin.xlane.f32.xlu0 %v1021
    %v1023 = vpop.xlane.xlu0 %1022
    %vm1024 = vcmp.eq.f32.partialorder %v1021, %v1023
    %v1025 = vsel %vm1024, %v1020, inf
    %1026 = vmin.xlane.f32.xlu0 %v1025
    %v1027 = vpop.xlane.xlu0 %1026
    %v1028 = vcvt.f32.s32 %v1027
    %v1029 = vcvt.f32.s32 %v1023
    %v1030 = vshll.u32 %v1029, 16
    %v1031 = vadd.s32 %v1030, %v1028
    %v1032 = vsel %vm482, %v954, 2147483647
    %v1033 = vand.u32 %v1032, 65535
    %v1034 = vshra.s32 %v1032, 16
    %v1035 = vcvt.s32.f32 %v1033
    %v1036 = vcvt.s32.f32 %v1034
    %1037 = vmin.xlane.f32.xlu0 %v1036
    %v1038 = vpop.xlane.xlu0 %1037
    %vm1039 = vcmp.eq.f32.partialorder %v1036, %v1038
    %v1040 = vsel %vm1039, %v1035, inf
    %1041 = vmin.xlane.f32.xlu0 %v1040
    %v1042 = vpop.xlane.xlu0 %1041
    %v1043 = vcvt.f32.s32 %v1042
    %v1044 = vcvt.f32.s32 %v1038
    %v1045 = vshll.u32 %v1044, 16
    %v1046 = vadd.s32 %v1045, %v1043
    %v1047 = vsel %vm482, %v955, 2147483647
    %v1048 = vand.u32 %v1047, 65535
    %v1049 = vshra.s32 %v1047, 16
    %v1050 = vcvt.s32.f32 %v1048
    %v1051 = vcvt.s32.f32 %v1049
    %1052 = vmin.xlane.f32.xlu0 %v1051
    %v1053 = vpop.xlane.xlu0 %1052
    %vm1054 = vcmp.eq.f32.partialorder %v1051, %v1053
    %v1055 = vsel %vm1054, %v1050, inf
    %1056 = vmin.xlane.f32.xlu0 %v1055
    %v1057 = vpop.xlane.xlu0 %1056
    %v1058 = vcvt.f32.s32 %v1057
    %v1059 = vcvt.f32.s32 %v1053
    %v1060 = vshll.u32 %v1059, 16
    %v1061 = vadd.s32 %v1060, %v1058
    %v1062 = vsel %vm482, %v956, 2147483647
    %v1063 = vand.u32 %v1062, 65535
    %v1064 = vshra.s32 %v1062, 16
    %v1065 = vcvt.s32.f32 %v1063
    %v1066 = vcvt.s32.f32 %v1064
    %1067 = vmin.xlane.f32.xlu0 %v1066
    %v1068 = vpop.xlane.xlu0 %1067
    %vm1069 = vcmp.eq.f32.partialorder %v1066, %v1068
    %v1070 = vsel %vm1069, %v1065, inf
    %1071 = vmin.xlane.f32.xlu0 %v1070
    %v1072 = vpop.xlane.xlu0 %1071
    %v1073 = vcvt.f32.s32 %v1072
    %v1074 = vcvt.f32.s32 %v1068
    %v1075 = vshll.u32 %v1074, 16
    %v1076 = vadd.s32 %v1075, %v1073
    %v1077 = vand.u32 %v971, 63
    %v1078 = vand.u32 %v986, 63
    %v1079 = vand.u32 %v1001, 63
    %v1080 = vand.u32 %v1016, 63
    %v1081 = vand.u32 %v1031, 63
    %v1082 = vand.u32 %v1046, 63
    %v1083 = vand.u32 %v1061, 63
    %v1084 = vand.u32 %v1076, 63
    %vm1085 = vcmp.eq.s32.totalorder %v453, %v1077
    %vm1086 = vcmp.eq.s32.totalorder %v453, %v1078
    %vm1087 = vcmp.eq.s32.totalorder %v453, %v1079
    %vm1088 = vcmp.eq.s32.totalorder %v453, %v1080
    %vm1089 = vcmp.eq.s32.totalorder %v453, %v1081
    %vm1090 = vcmp.eq.s32.totalorder %v453, %v1082
    %vm1091 = vcmp.eq.s32.totalorder %v453, %v1083
    %vm1092 = vcmp.eq.s32.totalorder %v453, %v1084
    %v1093 = vsel %vm1085, 1.0, 0.0
    %v1094 = vsel %vm1086, 1.0, 0.0
    %v1095 = vsel %vm1087, 1.0, 0.0
    %v1096 = vsel %vm1088, 1.0, 0.0
    %v1097 = vsel %vm1089, 1.0, 0.0
    %v1098 = vsel %vm1090, 1.0, 0.0
    %v1099 = vsel %vm1091, 1.0, 0.0
    %v1100 = vsel %vm1092, 1.0, 0.0
    %v1101 = vpack.c.bf16 %v1094, %v1093
    %v1102 = vpack.c.bf16 %v1096, %v1095
    %v1103 = vpack.c.bf16 %v1098, %v1097
    %v1104 = vpack.c.bf16 %v1100, %v1099
    %v1106 = vsel %vm482, %v1101, 0
    %v1109 = vsel %vm482, %v1102, 0
    %v1112 = vsel %vm482, %v1103, 0
    %v1115 = vsel %vm482, %v1104, 0
    %1117 = vmatprep.subr.bf16.mxu0 0
    %1118 = vmatpush1.bf16.msra.mxu0 %v478
    %1119 = vmatprep.subr.bf16.mxu0 0
    %1120 = vmatpush1.bf16.msra.mxu0 %v479
    %1121 = vmatprep.subr.bf16.mxu0 0
    %1122 = vmatpush1.bf16.msra.mxu0 %v480
    %1123 = vmatprep.subr.bf16.mxu0 0
    %1124 = vmatpush1.bf16.msra.mxu0 %v481
    %1125 = vmatprep.subr.bf16.mxu0 0
    %1126 = vmatpush1.bf16.msra.mxu0 0
    %1127 = vmatprep.subr.bf16.mxu0 0
    %1128 = vmatpush1.bf16.msra.mxu0 0
    %1129 = vmatprep.subr.bf16.mxu0 0
    %1130 = vmatpush1.bf16.msra.mxu0 0
    %1131 = vmatprep.subr.bf16.mxu0 0
    %1132 = vmatpush1.bf16.msra.mxu0 0
    %1133 = vmatprep.subr.bf16.mxu0 0
    %1134 = vmatpush1.bf16.msra.mxu0 0
    %1135 = vmatprep.subr.bf16.mxu0 0
    %1136 = vmatpush1.bf16.msra.mxu0 0
    %1137 = vmatprep.subr.bf16.mxu0 0
    %1138 = vmatpush1.bf16.msra.mxu0 0
    %1139 = vmatprep.subr.bf16.mxu0 0
    %1140 = vmatpush1.bf16.msra.mxu0 0
    %1141 = vmatprep.subr.bf16.mxu0 0
    %1142 = vmatpush1.bf16.msra.mxu0 0
    %1143 = vmatprep.subr.bf16.mxu0 0
    %1144 = vmatpush1.bf16.msra.mxu0 0
    %1145 = vmatprep.subr.bf16.mxu0 0
    %1146 = vmatpush1.bf16.msra.mxu0 0
    %1147 = vmatprep.subr.bf16.mxu0 0
    %1148 = vmatpush1.bf16.msra.mxu0 0
    %1149 = vmatprep.mubr.bf16.mxu0 0
    %1150 = vmatmul.mubr.bf16.gmra.mrb[0].mxu0 %v1106
    %v1151 = vpop.f32.mrb[0].mxu0
    %v1152 = vadd.f32 0.0, %v1151
    %v1153 = vpop.f32.mrb[0].mxu0
    %v1154 = vpop.f32.mrb[0].mxu0
    %v1155 = vadd.f32 0.0, %v1154
    %v1156 = vpop.f32.mrb[0].mxu0
    %1157 = vmatprep.mubr.bf16.mxu0 0
    %1158 = vmatmul.mubr.bf16.gmra.mrb[0].mxu0 %v1109
    %v1159 = vpop.f32.mrb[0].mxu0
    %v1160 = vadd.f32 0.0, %v1159
    %v1161 = vpop.f32.mrb[0].mxu0
    %v1162 = vpop.f32.mrb[0].mxu0
    %v1163 = vadd.f32 0.0, %v1162
    %v1164 = vpop.f32.mrb[0].mxu0
    %1165 = vmatprep.mubr.bf16.mxu0 0
    %1166 = vmatmul.mubr.bf16.gmra.mrb[0].mxu0 %v1112
    %v1167 = vpop.f32.mrb[0].mxu0
    %v1168 = vadd.f32 0.0, %v1167
    %v1169 = vpop.f32.mrb[0].mxu0
    %v1170 = vpop.f32.mrb[0].mxu0
    %v1171 = vadd.f32 0.0, %v1170
    %v1172 = vpop.f32.mrb[0].mxu0
    %1173 = vmatprep.mubr.bf16.mxu0 0
    %1174 = vmatmul.mubr.bf16.gmra.mrb[0].mxu0 %v1115
    %v1175 = vpop.f32.mrb[0].mxu0
    %v1176 = vadd.f32 0.0, %v1175
    %v1177 = vpop.f32.mrb[0].mxu0
    %v1178 = vpop.f32.mrb[0].mxu0
    %v1179 = vadd.f32 0.0, %v1178
    %v1180 = vpop.f32.mrb[0].mxu0
    %1181 = vdwg.mxu0
    %v1182 = vmax.f32 %v941, %v1152
    %v1183 = vmax.f32 %v942, %v1155
    %v1184 = vmax.f32 %v943, %v1160
    %v1185 = vmax.f32 %v944, %v1163
    %v1186 = vmax.f32 %v945, %v1168
    %v1187 = vmax.f32 %v946, %v1171
    %v1188 = vmax.f32 %v947, %v1176
    %v1189 = vmax.f32 %v948, %v1179
    %v1190 = vsel %vm1085, 2147483647, %v949
    %v1191 = vsel %vm1086, 2147483647, %v950
    %v1192 = vsel %vm1087, 2147483647, %v951
    %v1193 = vsel %vm1088, 2147483647, %v952
    %v1194 = vsel %vm1089, 2147483647, %v953
    %v1195 = vsel %vm1090, 2147483647, %v954
    %v1196 = vsel %vm1091, 2147483647, %v955
    %v1197 = vsel %vm1092, 2147483647, %v956
    %v1198 = vsel %vm482, %v1190, 2147483647
    %v1199 = vand.u32 %v1198, 65535
    %v1200 = vshra.s32 %v1198, 16
    %v1201 = vcvt.s32.f32 %v1199
    %v1202 = vcvt.s32.f32 %v1200
    %1203 = vmin.xlane.f32.xlu0 %v1202
    %v1204 = vpop.xlane.xlu0 %1203
    %vm1205 = vcmp.eq.f32.partialorder %v1202, %v1204
    %v1206 = vsel %vm1205, %v1201, inf
    %1207 = vmin.xlane.f32.xlu0 %v1206
    %v1208 = vpop.xlane.xlu0 %1207
    %v1209 = vcvt.f32.s32 %v1208
    %v1210 = vcvt.f32.s32 %v1204
    %v1211 = vshll.u32 %v1210, 16
    %v1212 = vadd.s32 %v1211, %v1209
    %v1213 = vsel %vm482, %v1191, 2147483647
    %v1214 = vand.u32 %v1213, 65535
    %v1215 = vshra.s32 %v1213, 16
    %v1216 = vcvt.s32.f32 %v1214
    %v1217 = vcvt.s32.f32 %v1215
    %1218 = vmin.xlane.f32.xlu0 %v1217
    %v1219 = vpop.xlane.xlu0 %1218
    %vm1220 = vcmp.eq.f32.partialorder %v1217, %v1219
    %v1221 = vsel %vm1220, %v1216, inf
    %1222 = vmin.xlane.f32.xlu0 %v1221
    %v1223 = vpop.xlane.xlu0 %1222
    %v1224 = vcvt.f32.s32 %v1223
    %v1225 = vcvt.f32.s32 %v1219
    %v1226 = vshll.u32 %v1225, 16
    %v1227 = vadd.s32 %v1226, %v1224
    %v1228 = vsel %vm482, %v1192, 2147483647
    %v1229 = vand.u32 %v1228, 65535
    %v1230 = vshra.s32 %v1228, 16
    %v1231 = vcvt.s32.f32 %v1229
    %v1232 = vcvt.s32.f32 %v1230
    %1233 = vmin.xlane.f32.xlu0 %v1232
    %v1234 = vpop.xlane.xlu0 %1233
    %vm1235 = vcmp.eq.f32.partialorder %v1232, %v1234
    %v1236 = vsel %vm1235, %v1231, inf
    %1237 = vmin.xlane.f32.xlu0 %v1236
    %v1238 = vpop.xlane.xlu0 %1237
    %v1239 = vcvt.f32.s32 %v1238
    %v1240 = vcvt.f32.s32 %v1234
    %v1241 = vshll.u32 %v1240, 16
    %v1242 = vadd.s32 %v1241, %v1239
    %v1243 = vsel %vm482, %v1193, 2147483647
    %v1244 = vand.u32 %v1243, 65535
    %v1245 = vshra.s32 %v1243, 16
    %v1246 = vcvt.s32.f32 %v1244
    %v1247 = vcvt.s32.f32 %v1245
    %1248 = vmin.xlane.f32.xlu0 %v1247
    %v1249 = vpop.xlane.xlu0 %1248
    %vm1250 = vcmp.eq.f32.partialorder %v1247, %v1249
    %v1251 = vsel %vm1250, %v1246, inf
    %1252 = vmin.xlane.f32.xlu0 %v1251
    %v1253 = vpop.xlane.xlu0 %1252
    %v1254 = vcvt.f32.s32 %v1253
    %v1255 = vcvt.f32.s32 %v1249
    %v1256 = vshll.u32 %v1255, 16
    %v1257 = vadd.s32 %v1256, %v1254
    %v1258 = vsel %vm482, %v1194, 2147483647
    %v1259 = vand.u32 %v1258, 65535
    %v1260 = vshra.s32 %v1258, 16
    %v1261 = vcvt.s32.f32 %v1259
    %v1262 = vcvt.s32.f32 %v1260
    %1263 = vmin.xlane.f32.xlu0 %v1262
    %v1264 = vpop.xlane.xlu0 %1263
    %vm1265 = vcmp.eq.f32.partialorder %v1262, %v1264
    %v1266 = vsel %vm1265, %v1261, inf
    %1267 = vmin.xlane.f32.xlu0 %v1266
    %v1268 = vpop.xlane.xlu0 %1267
    %v1269 = vcvt.f32.s32 %v1268
    %v1270 = vcvt.f32.s32 %v1264
    %v1271 = vshll.u32 %v1270, 16
    %v1272 = vadd.s32 %v1271, %v1269
    %v1273 = vsel %vm482, %v1195, 2147483647
    %v1274 = vand.u32 %v1273, 65535
    %v1275 = vshra.s32 %v1273, 16
    %v1276 = vcvt.s32.f32 %v1274
    %v1277 = vcvt.s32.f32 %v1275
    %1278 = vmin.xlane.f32.xlu0 %v1277
    %v1279 = vpop.xlane.xlu0 %1278
    %vm1280 = vcmp.eq.f32.partialorder %v1277, %v1279
    %v1281 = vsel %vm1280, %v1276, inf
    %1282 = vmin.xlane.f32.xlu0 %v1281
    %v1283 = vpop.xlane.xlu0 %1282
    %v1284 = vcvt.f32.s32 %v1283
    %v1285 = vcvt.f32.s32 %v1279
    %v1286 = vshll.u32 %v1285, 16
    %v1287 = vadd.s32 %v1286, %v1284
    %v1288 = vsel %vm482, %v1196, 2147483647
    %v1289 = vand.u32 %v1288, 65535
    %v1290 = vshra.s32 %v1288, 16
    %v1291 = vcvt.s32.f32 %v1289
    %v1292 = vcvt.s32.f32 %v1290
    %1293 = vmin.xlane.f32.xlu0 %v1292
    %v1294 = vpop.xlane.xlu0 %1293
    %vm1295 = vcmp.eq.f32.partialorder %v1292, %v1294
    %v1296 = vsel %vm1295, %v1291, inf
    %1297 = vmin.xlane.f32.xlu0 %v1296
    %v1298 = vpop.xlane.xlu0 %1297
    %v1299 = vcvt.f32.s32 %v1298
    %v1300 = vcvt.f32.s32 %v1294
    %v1301 = vshll.u32 %v1300, 16
    %v1302 = vadd.s32 %v1301, %v1299
    %v1303 = vsel %vm482, %v1197, 2147483647
    %v1304 = vand.u32 %v1303, 65535
    %v1305 = vshra.s32 %v1303, 16
    %v1306 = vcvt.s32.f32 %v1304
    %v1307 = vcvt.s32.f32 %v1305
    %1308 = vmin.xlane.f32.xlu0 %v1307
    %v1309 = vpop.xlane.xlu0 %1308
    %vm1310 = vcmp.eq.f32.partialorder %v1307, %v1309
    %v1311 = vsel %vm1310, %v1306, inf
    %1312 = vmin.xlane.f32.xlu0 %v1311
    %v1313 = vpop.xlane.xlu0 %1312
    %v1314 = vcvt.f32.s32 %v1313
    %v1315 = vcvt.f32.s32 %v1309
    %v1316 = vshll.u32 %v1315, 16
    %v1317 = vadd.s32 %v1316, %v1314
    %v1318 = vand.u32 %v1212, 63
    %v1319 = vand.u32 %v1227, 63
    %v1320 = vand.u32 %v1242, 63
    %v1321 = vand.u32 %v1257, 63
    %v1322 = vand.u32 %v1272, 63
    %v1323 = vand.u32 %v1287, 63
    %v1324 = vand.u32 %v1302, 63
    %v1325 = vand.u32 %v1317, 63
    %vm1326 = vcmp.eq.s32.totalorder %v453, %v1318
    %vm1327 = vcmp.eq.s32.totalorder %v453, %v1319
    %vm1328 = vcmp.eq.s32.totalorder %v453, %v1320
    %vm1329 = vcmp.eq.s32.totalorder %v453, %v1321
    %vm1330 = vcmp.eq.s32.totalorder %v453, %v1322
    %vm1331 = vcmp.eq.s32.totalorder %v453, %v1323
    %vm1332 = vcmp.eq.s32.totalorder %v453, %v1324
    %vm1333 = vcmp.eq.s32.totalorder %v453, %v1325
    %v1334 = vsel %vm1326, 1.0, 0.0
    %v1335 = vsel %vm1327, 1.0, 0.0
    %v1336 = vsel %vm1328, 1.0, 0.0
    %v1337 = vsel %vm1329, 1.0, 0.0
    %v1338 = vsel %vm1330, 1.0, 0.0
    %v1339 = vsel %vm1331, 1.0, 0.0
    %v1340 = vsel %vm1332, 1.0, 0.0
    %v1341 = vsel %vm1333, 1.0, 0.0
    %v1342 = vpack.c.bf16 %v1335, %v1334
    %v1343 = vpack.c.bf16 %v1337, %v1336
    %v1344 = vpack.c.bf16 %v1339, %v1338
    %v1345 = vpack.c.bf16 %v1341, %v1340
    %v1347 = vsel %vm482, %v1342, 0
    %v1350 = vsel %vm482, %v1343, 0
    %v1353 = vsel %vm482, %v1344, 0
    %v1356 = vsel %vm482, %v1345, 0
    %1358 = vmatprep.subr.bf16.mxu0 0
    %1359 = vmatpush1.bf16.msra.mxu0 %v478
    %1360 = vmatprep.subr.bf16.mxu0 0
    %1361 = vmatpush1.bf16.msra.mxu0 %v479
    %1362 = vmatprep.subr.bf16.mxu0 0
    %1363 = vmatpush1.bf16.msra.mxu0 %v480
    %1364 = vmatprep.subr.bf16.mxu0 0
    %1365 = vmatpush1.bf16.msra.mxu0 %v481
    %1366 = vmatprep.subr.bf16.mxu0 0
    %1367 = vmatpush1.bf16.msra.mxu0 0
    %1368 = vmatprep.subr.bf16.mxu0 0
    %1369 = vmatpush1.bf16.msra.mxu0 0
    %1370 = vmatprep.subr.bf16.mxu0 0
    %1371 = vmatpush1.bf16.msra.mxu0 0
    %1372 = vmatprep.subr.bf16.mxu0 0
    %1373 = vmatpush1.bf16.msra.mxu0 0
    %1374 = vmatprep.subr.bf16.mxu0 0
    %1375 = vmatpush1.bf16.msra.mxu0 0
    %1376 = vmatprep.subr.bf16.mxu0 0
    %1377 = vmatpush1.bf16.msra.mxu0 0
    %1378 = vmatprep.subr.bf16.mxu0 0
    %1379 = vmatpush1.bf16.msra.mxu0 0
    %1380 = vmatprep.subr.bf16.mxu0 0
    %1381 = vmatpush1.bf16.msra.mxu0 0
    %1382 = vmatprep.subr.bf16.mxu0 0
    %1383 = vmatpush1.bf16.msra.mxu0 0
    %1384 = vmatprep.subr.bf16.mxu0 0
    %1385 = vmatpush1.bf16.msra.mxu0 0
    %1386 = vmatprep.subr.bf16.mxu0 0
    %1387 = vmatpush1.bf16.msra.mxu0 0
    %1388 = vmatprep.subr.bf16.mxu0 0
    %1389 = vmatpush1.bf16.msra.mxu0 0
    %1390 = vmatprep.mubr.bf16.mxu0 0
    %1391 = vmatmul.mubr.bf16.gmra.mrb[0].mxu0 %v1347
    %v1392 = vpop.f32.mrb[0].mxu0
    %v1393 = vadd.f32 0.0, %v1392
    %v1394 = vpop.f32.mrb[0].mxu0
    %v1395 = vpop.f32.mrb[0].mxu0
    %v1396 = vadd.f32 0.0, %v1395
    %v1397 = vpop.f32.mrb[0].mxu0
    %1398 = vmatprep.mubr.bf16.mxu0 0
    %1399 = vmatmul.mubr.bf16.gmra.mrb[0].mxu0 %v1350
    %v1400 = vpop.f32.mrb[0].mxu0
    %v1401 = vadd.f32 0.0, %v1400
    %v1402 = vpop.f32.mrb[0].mxu0
    %v1403 = vpop.f32.mrb[0].mxu0
    %v1404 = vadd.f32 0.0, %v1403
    %v1405 = vpop.f32.mrb[0].mxu0
    %1406 = vmatprep.mubr.bf16.mxu0 0
    %1407 = vmatmul.mubr.bf16.gmra.mrb[0].mxu0 %v1353
    %v1408 = vpop.f32.mrb[0].mxu0
    %v1409 = vadd.f32 0.0, %v1408
    %v1410 = vpop.f32.mrb[0].mxu0
    %v1411 = vpop.f32.mrb[0].mxu0
    %v1412 = vadd.f32 0.0, %v1411
    %v1413 = vpop.f32.mrb[0].mxu0
    %1414 = vmatprep.mubr.bf16.mxu0 0
    %1415 = vmatmul.mubr.bf16.gmra.mrb[0].mxu0 %v1356
    %v1416 = vpop.f32.mrb[0].mxu0
    %v1417 = vadd.f32 0.0, %v1416
    %v1418 = vpop.f32.mrb[0].mxu0
    %v1419 = vpop.f32.mrb[0].mxu0
    %v1420 = vadd.f32 0.0, %v1419
    %v1421 = vpop.f32.mrb[0].mxu0
    %1422 = vdwg.mxu0
    %v1423 = vmax.f32 %v1182, %v1393
    %v1424 = vmax.f32 %v1183, %v1396
    %v1425 = vmax.f32 %v1184, %v1401
    %v1426 = vmax.f32 %v1185, %v1404
    %v1427 = vmax.f32 %v1186, %v1409
    %v1428 = vmax.f32 %v1187, %v1412
    %v1429 = vmax.f32 %v1188, %v1417
    %v1430 = vmax.f32 %v1189, %v1420
    %v1431 = vsub.f32 %v444, %v396
    %v1432 = vsub.f32 %v445, %v402
    %v1433 = vsub.f32 %v446, %v408
    %v1434 = vsub.f32 %v447, %v414
    %v1435 = vsub.f32 %v448, %v420
    %v1436 = vsub.f32 %v449, %v426
    %v1437 = vsub.f32 %v450, %v432
    %v1438 = vsub.f32 %v451, %v438
    %v1439 = vadd.f32 %v1431, %v1423
    %v1440 = vadd.f32 %v1432, %v1424
    %v1441 = vadd.f32 %v1433, %v1425
    %v1442 = vadd.f32 %v1434, %v1426
    %v1443 = vadd.f32 %v1435, %v1427
    %v1444 = vadd.f32 %v1436, %v1428
    %v1445 = vadd.f32 %v1437, %v1429
    %v1446 = vadd.f32 %v1438, %v1430
    %vm1447 = vcmp.ge.f32.partialorder %v1439, 0.0
    %vm1448 = vcmp.ge.f32.partialorder %v1440, 0.0
    %vm1449 = vcmp.ge.f32.partialorder %v1441, 0.0
    %vm1450 = vcmp.ge.f32.partialorder %v1442, 0.0
    %vm1451 = vcmp.ge.f32.partialorder %v1443, 0.0
    %vm1452 = vcmp.ge.f32.partialorder %v1444, 0.0
    %vm1453 = vcmp.ge.f32.partialorder %v1445, 0.0
    %vm1454 = vcmp.ge.f32.partialorder %v1446, 0.0
    %v1455 = vmul.f32 %v1439, 0.2
    %v1456 = vmul.f32 %v1440, 0.2
    %v1457 = vmul.f32 %v1441, 0.2
    %v1458 = vmul.f32 %v1442, 0.2
    %v1459 = vmul.f32 %v1443, 0.2
    %v1460 = vmul.f32 %v1444, 0.2
    %v1461 = vmul.f32 %v1445, 0.2
    %v1462 = vmul.f32 %v1446, 0.2
    %v1463 = vsel %vm1447, %v1439, %v1455
    %v1464 = vsel %vm1448, %v1440, %v1456
    %v1465 = vsel %vm1449, %v1441, %v1457
    %v1466 = vsel %vm1450, %v1442, %v1458
    %v1467 = vsel %vm1451, %v1443, %v1459
    %v1468 = vsel %vm1452, %v1444, %v1460
    %v1469 = vsel %vm1453, %v1445, %v1461
    %v1470 = vsel %vm1454, %v1446, %v1462
    %v1471 = vlaneseq
    %v1472 = vshrl.u32 %v1471, 7
    %v1473 = vsub.s32 1, %v1472
    %v1474 = vrot.slane %v157, %v1473
    %v1475 = vmul.f32 %v1463, %v1474
    %v1476 = vmul.f32 %v1464, %v1474
    %v1477 = vmul.f32 %v1465, %v1474
    %v1478 = vmul.f32 %v1466, %v1474
    %v1479 = vmul.f32 %v1467, %v1474
    %v1480 = vmul.f32 %v1468, %v1474
    %v1481 = vmul.f32 %v1469, %v1474
    %v1482 = vmul.f32 %v1470, %v1474
    %v1483 = vlaneseq
    %v1484 = vshrl.u32 %v1483, 7
    %v1485 = vsub.s32 2, %v1484
    %v1486 = vrot.slane %v157, %v1485
    %v1487 = vadd.f32 %v1475, %v1486
    %v1488 = vadd.f32 %v1476, %v1486
    %v1489 = vadd.f32 %v1477, %v1486
    %v1490 = vadd.f32 %v1478, %v1486
    %v1491 = vadd.f32 %v1479, %v1486
    %v1492 = vadd.f32 %v1480, %v1486
    %v1493 = vadd.f32 %v1481, %v1486
    %v1494 = vadd.f32 %v1482, %v1486
    %v1495 = vld [vmem:[#allocation8] sm:$0xff]
    %v1496 = vld [vmem:[#allocation8 + $0x8] sm:$0xff]
    %v1497 = vld [vmem:[#allocation8 + $0x10] sm:$0xff]
    %v1498 = vld [vmem:[#allocation8 + $0x18] sm:$0xff]
    %v1499 = vld [vmem:[#allocation8 + $0x20] sm:$0xff]
    %v1500 = vld [vmem:[#allocation8 + $0x28] sm:$0xff]
    %v1501 = vld [vmem:[#allocation8 + $0x30] sm:$0xff]
    %v1502 = vld [vmem:[#allocation8 + $0x38] sm:$0xff]
    %v1503 = vld [vmem:[#allocation8 + $0x40] sm:$0xff]
    %v1504 = vld [vmem:[#allocation8 + $0x48] sm:$0xff]
    %v1505 = vld [vmem:[#allocation8 + $0x50] sm:$0xff]
    %v1506 = vld [vmem:[#allocation8 + $0x58] sm:$0xff]
    %v1507 = vld [vmem:[#allocation8 + $0x60] sm:$0xff]
    %v1508 = vld [vmem:[#allocation8 + $0x68] sm:$0xff]
    %v1509 = vld [vmem:[#allocation8 + $0x70] sm:$0xff]
    %v1510 = vld [vmem:[#allocation8 + $0x78] sm:$0xff]
    %v1511 = vld [vmem:[#allocation8 + $0x80] sm:$0xff]
    %v1512 = vld [vmem:[#allocation8 + $0x88] sm:$0xff]
    %v1513 = vld [vmem:[#allocation8 + $0x90] sm:$0xff]
    %v1514 = vld [vmem:[#allocation8 + $0x98] sm:$0xff]
    %v1515 = vld [vmem:[#allocation8 + $0xa0] sm:$0xff]
    %v1516 = vld [vmem:[#allocation8 + $0xa8] sm:$0xff]
    %v1517 = vld [vmem:[#allocation8 + $0xb0] sm:$0xff]
    %v1518 = vld [vmem:[#allocation8 + $0xb8] sm:$0xff]
    %v1519 = vld [vmem:[#allocation8 + $0xc0] sm:$0xff]
    %v1520 = vld [vmem:[#allocation8 + $0xc8] sm:$0xff]
    %v1521 = vld [vmem:[#allocation8 + $0xd0] sm:$0xff]
    %v1522 = vld [vmem:[#allocation8 + $0xd8] sm:$0xff]
    %v1523 = vld [vmem:[#allocation8 + $0xe0] sm:$0xff]
    %v1524 = vld [vmem:[#allocation8 + $0xe8] sm:$0xff]
    %v1525 = vld [vmem:[#allocation8 + $0xf0] sm:$0xff]
    %v1526 = vld [vmem:[#allocation8 + $0xf8] sm:$0xff]
    %v1527 = vld [vmem:[#allocation10] sm:$0xff]
    %v1528 = vpack.c.bf16 %v1488, %v1487
    %v1529 = vpack.c.bf16 %v1490, %v1489
    %v1530 = vpack.c.bf16 %v1492, %v1491
    %v1531 = vpack.c.bf16 %v1494, %v1493
    %v1532 = vunpack.c.l.bf16 %v1528
    %v1533 = vunpack.c.h.bf16 %v1528
    %v1534 = vunpack.c.l.bf16 %v1529
    %v1535 = vunpack.c.h.bf16 %v1529
    %v1536 = vunpack.c.l.bf16 %v1530
    %v1537 = vunpack.c.h.bf16 %v1530
    %v1538 = vunpack.c.l.bf16 %v1531
    %v1539 = vunpack.c.h.bf16 %v1531
    %v1540 = vmul.f32 %v1532, %v1532
    %v1541 = vmul.f32 %v1533, %v1533
    %v1542 = vmul.f32 %v1534, %v1534
    %v1543 = vmul.f32 %v1535, %v1535
    %v1544 = vmul.f32 %v1536, %v1536
    %v1545 = vmul.f32 %v1537, %v1537
    %v1546 = vmul.f32 %v1538, %v1538
    %v1547 = vmul.f32 %v1539, %v1539
    %1548 = vadd.xlane.f32.xlu0 %v1540
    %v1549 = vpop.xlane.xlu0 %1548
    %1550 = vadd.xlane.f32.xlu0 %v1541
    %v1551 = vpop.xlane.xlu0 %1550
    %1552 = vadd.xlane.f32.xlu0 %v1542
    %v1553 = vpop.xlane.xlu0 %1552
    %1554 = vadd.xlane.f32.xlu0 %v1543
    %v1555 = vpop.xlane.xlu0 %1554
    %1556 = vadd.xlane.f32.xlu0 %v1544
    %v1557 = vpop.xlane.xlu0 %1556
    %1558 = vadd.xlane.f32.xlu0 %v1545
    %v1559 = vpop.xlane.xlu0 %1558
    %1560 = vadd.xlane.f32.xlu0 %v1546
    %v1561 = vpop.xlane.xlu0 %1560
    %1562 = vadd.xlane.f32.xlu0 %v1547
    %v1563 = vpop.xlane.xlu0 %1562
    %1564 = vmatprep.subr.bf16.mxu0 0
    %1565 = vmatpush1.bf16.xpose.msra.mxu0 %v1528
    %1566 = vmatprep.subr.bf16.mxu0 0
    %1567 = vmatpush1.bf16.xpose.msra.mxu0 %v1529
    %1568 = vmatprep.subr.bf16.mxu0 0
    %1569 = vmatpush1.bf16.xpose.msra.mxu0 %v1530
    %1570 = vmatprep.subr.bf16.mxu0 0
    %1571 = vmatpush1.bf16.xpose.msra.mxu0 %v1531
    %1572 = vmatprep.subr.bf16.mxu0 0
    %1573 = vmatpush1.bf16.xpose.msra.mxu0 0
    %1574 = vmatprep.subr.bf16.mxu0 0
    %1575 = vmatpush1.bf16.xpose.msra.mxu0 0
    %1576 = vmatprep.subr.bf16.mxu0 0
    %1577 = vmatpush1.bf16.xpose.msra.mxu0 0
    %1578 = vmatprep.subr.bf16.mxu0 0
    %1579 = vmatpush1.bf16.xpose.msra.mxu0 0
    %1580 = vmatprep.subr.bf16.mxu0 0
    %1581 = vmatpush1.bf16.xpose.msra.mxu0 0
    %1582 = vmatprep.subr.bf16.mxu0 0
    %1583 = vmatpush1.bf16.xpose.msra.mxu0 0
    %1584 = vmatprep.subr.bf16.mxu0 0
    %1585 = vmatpush1.bf16.xpose.msra.mxu0 0
    %1586 = vmatprep.subr.bf16.mxu0 0
    %1587 = vmatpush1.bf16.xpose.msra.mxu0 0
    %1588 = vmatprep.subr.bf16.mxu0 0
    %1589 = vmatpush1.bf16.xpose.msra.mxu0 0
    %1590 = vmatprep.subr.bf16.mxu0 0
    %1591 = vmatpush1.bf16.xpose.msra.mxu0 0
    %1592 = vmatprep.subr.bf16.mxu0 0
    %1593 = vmatpush1.bf16.xpose.msra.mxu0 0
    %1594 = vmatprep.subr.bf16.mxu0 0
    %1595 = vmatpush1.bf16.xpose.msra.mxu0 0
    %1596 = vmatprep.mubr.bf16.mxu0 0
    %1597 = vmatmul.mubr.bf16.gmra.mrb[0].mxu0 %v1528
    %v1598 = vpop.f32.mrb[0].mxu0
    %v1599 = vadd.f32 0.0, %v1598
    %v1600 = vpop.f32.mrb[0].mxu0
    %v1601 = vpop.f32.mrb[0].mxu0
    %v1602 = vadd.f32 0.0, %v1601
    %v1603 = vpop.f32.mrb[0].mxu0
    %1604 = vmatprep.mubr.bf16.mxu0 0
    %1605 = vmatmul.mubr.bf16.gmra.mrb[0].mxu0 %v1529
    %v1606 = vpop.f32.mrb[0].mxu0
    %v1607 = vadd.f32 0.0, %v1606
    %v1608 = vpop.f32.mrb[0].mxu0
    %v1609 = vpop.f32.mrb[0].mxu0
    %v1610 = vadd.f32 0.0, %v1609
    %v1611 = vpop.f32.mrb[0].mxu0
    %1612 = vmatprep.mubr.bf16.mxu0 0
    %1613 = vmatmul.mubr.bf16.gmra.mrb[0].mxu0 %v1530
    %v1614 = vpop.f32.mrb[0].mxu0
    %v1615 = vadd.f32 0.0, %v1614
    %v1616 = vpop.f32.mrb[0].mxu0
    %v1617 = vpop.f32.mrb[0].mxu0
    %v1618 = vadd.f32 0.0, %v1617
    %v1619 = vpop.f32.mrb[0].mxu0
    %1620 = vmatprep.mubr.bf16.mxu0 0
    %1621 = vmatmul.mubr.bf16.gmra.mrb[0].mxu0 %v1531
    %v1622 = vpop.f32.mrb[0].mxu0
    %v1623 = vadd.f32 0.0, %v1622
    %v1624 = vpop.f32.mrb[0].mxu0
    %v1625 = vpop.f32.mrb[0].mxu0
    %v1626 = vadd.f32 0.0, %v1625
    %v1627 = vpop.f32.mrb[0].mxu0
    %1628 = vdwg.mxu0
    %1629 = vxpose.xlu0.b32.start [1/16] %v1549, 128
    %1630 = vxpose.xlu0.b32.cont [2/16] %v1551, 128
    %1631 = vxpose.xlu0.b32.cont [3/16] %v1553, 128
    %1632 = vxpose.xlu0.b32.cont [4/16] %v1555, 128
    %1633 = vxpose.xlu0.b32.cont [5/16] %v1557, 128
    %1634 = vxpose.xlu0.b32.cont [6/16] %v1559, 128
    %1635 = vxpose.xlu0.b32.cont [7/16] %v1561, 128
    %1636 = vxpose.xlu0.b32.cont [8/16] %v1563, 128
    %1637 = vxpose.xlu0.b32.cont [9/16] 0.0, 128
    %1638 = vxpose.xlu0.b32.cont [10/16] 0.0, 128
    %1639 = vxpose.xlu0.b32.cont [11/16] 0.0, 128
    %1640 = vxpose.xlu0.b32.cont [12/16] 0.0, 128
    %1641 = vxpose.xlu0.b32.cont [13/16] 0.0, 128
    %1642 = vxpose.xlu0.b32.cont [14/16] 0.0, 128
    %1643 = vxpose.xlu0.b32.cont [15/16] 0.0, 128
    %1644 = vxpose.xlu0.b32.end [16/16] 0.0, 128
    %v1645 = vpop.trf.xlu0
    %v1646 = vpop.trf.xlu0
    %v1647 = vpop.trf.xlu0
    %v1648 = vpop.trf.xlu0
    %v1649 = vpop.trf.xlu0
    %v1650 = vpop.trf.xlu0
    %v1651 = vpop.trf.xlu0
    %v1652 = vpop.trf.xlu0
    %v1653 = vpop.trf.xlu0
    %v1654 = vpop.trf.xlu0
    %v1655 = vpop.trf.xlu0
    %v1656 = vpop.trf.xlu0
    %v1657 = vpop.trf.xlu0
    %v1658 = vpop.trf.xlu0
    %v1659 = vpop.trf.xlu0
    %v1660 = vpop.trf.xlu0
    %v1661 = vlaneseq
    %v1662 = vshrl.u32 %v1661, 7
    %v1663 = vsub.s32 0, %v1662
    %v1664 = vrot.slane %v1645, %v1663
    %v1665 = vadd.f32 %v1549, %v1664
    %v1666 = vadd.f32 %v1551, %v1664
    %v1667 = vadd.f32 %v1553, %v1664
    %v1668 = vadd.f32 %v1555, %v1664
    %v1669 = vadd.f32 %v1557, %v1664
    %v1670 = vadd.f32 %v1559, %v1664
    %v1671 = vadd.f32 %v1561, %v1664
    %v1672 = vadd.f32 %v1563, %v1664
    %v1673 = vmul.f32 %v1599, 2.0
    %v1674 = vmul.f32 %v1602, 2.0
    %v1675 = vmul.f32 %v1607, 2.0
    %v1676 = vmul.f32 %v1610, 2.0
    %v1677 = vmul.f32 %v1615, 2.0
    %v1678 = vmul.f32 %v1618, 2.0
    %v1679 = vmul.f32 %v1623, 2.0
    %v1680 = vmul.f32 %v1626, 2.0
    %v1681 = vsub.f32 %v1665, %v1673
    %v1682 = vsub.f32 %v1666, %v1674
    %v1683 = vsub.f32 %v1667, %v1675
    %v1684 = vsub.f32 %v1668, %v1676
    %v1685 = vsub.f32 %v1669, %v1677
    %v1686 = vsub.f32 %v1670, %v1678
    %v1687 = vsub.f32 %v1671, %v1679
    %v1688 = vsub.f32 %v1672, %v1680
    %v1689 = vmax.f32 %v1681, 0.0
    %v1690 = vmax.f32 %v1682, 0.0
    %v1691 = vmax.f32 %v1683, 0.0
    %v1692 = vmax.f32 %v1684, 0.0
    %v1693 = vmax.f32 %v1685, 0.0
    %v1694 = vmax.f32 %v1686, 0.0
    %v1695 = vmax.f32 %v1687, 0.0
    %v1696 = vmax.f32 %v1688, 0.0
    %1697 = vmatprep.subr.mxu0 %v1496
    %1698 = vmatpush1.msra.mxu0 %v1495
    %1699 = vmatprep.subr.mxu0 %v1498
    %1700 = vmatpush1.msra.mxu0 %v1497
    %1701 = vmatprep.subr.mxu0 %v1500
    %1702 = vmatpush1.msra.mxu0 %v1499
    %1703 = vmatprep.subr.mxu0 %v1502
    %1704 = vmatpush1.msra.mxu0 %v1501
    %1705 = vmatprep.subr.mxu0 %v1504
    %1706 = vmatpush1.msra.mxu0 %v1503
    %1707 = vmatprep.subr.mxu0 %v1506
    %1708 = vmatpush1.msra.mxu0 %v1505
    %1709 = vmatprep.subr.mxu0 %v1508
    %1710 = vmatpush1.msra.mxu0 %v1507
    %1711 = vmatprep.subr.mxu0 %v1510
    %1712 = vmatpush1.msra.mxu0 %v1509
    %1713 = vmatprep.subr.mxu0 %v1512
    %1714 = vmatpush1.msra.mxu0 %v1511
    %1715 = vmatprep.subr.mxu0 %v1514
    %1716 = vmatpush1.msra.mxu0 %v1513
    %1717 = vmatprep.subr.mxu0 %v1516
    %1718 = vmatpush1.msra.mxu0 %v1515
    %1719 = vmatprep.subr.mxu0 %v1518
    %1720 = vmatpush1.msra.mxu0 %v1517
    %1721 = vmatprep.subr.mxu0 %v1520
    %1722 = vmatpush1.msra.mxu0 %v1519
    %1723 = vmatprep.subr.mxu0 %v1522
    %1724 = vmatpush1.msra.mxu0 %v1521
    %1725 = vmatprep.subr.mxu0 %v1524
    %1726 = vmatpush1.msra.mxu0 %v1523
    %1727 = vmatprep.subr.mxu0 %v1526
    %1728 = vmatpush1.msra.mxu0 %v1525
    %1729 = vmatprep.subr.mxu0 0.0
    %1730 = vmatpush1.msra.mxu0 0.0
    %1731 = vmatprep.subr.mxu0 0.0
    %1732 = vmatpush1.msra.mxu0 0.0
    %1733 = vmatprep.subr.mxu0 0.0
    %1734 = vmatpush1.msra.mxu0 0.0
    %1735 = vmatprep.subr.mxu0 0.0
    %1736 = vmatpush1.msra.mxu0 0.0
    %1737 = vmatprep.subr.mxu0 0.0
    %1738 = vmatpush1.msra.mxu0 0.0
    %1739 = vmatprep.subr.mxu0 0.0
    %1740 = vmatpush1.msra.mxu0 0.0
    %1741 = vmatprep.subr.mxu0 0.0
    %1742 = vmatpush1.msra.mxu0 0.0
    %1743 = vmatprep.subr.mxu0 0.0
    %1744 = vmatpush1.msra.mxu0 0.0
    %1745 = vmatprep.subr.mxu0 0.0
    %1746 = vmatpush1.msra.mxu0 0.0
    %1747 = vmatprep.subr.mxu0 0.0
    %1748 = vmatpush1.msra.mxu0 0.0
    %1749 = vmatprep.subr.mxu0 0.0
    %1750 = vmatpush1.msra.mxu0 0.0
    %1751 = vmatprep.subr.mxu0 0.0
    %1752 = vmatpush1.msra.mxu0 0.0
    %1753 = vmatprep.subr.mxu0 0.0
    %1754 = vmatpush1.msra.mxu0 0.0
    %1755 = vmatprep.subr.mxu0 0.0
    %1756 = vmatpush1.msra.mxu0 0.0
    %1757 = vmatprep.subr.mxu0 0.0
    %1758 = vmatpush1.msra.mxu0 0.0
    %1759 = vmatprep.subr.mxu0 0.0
    %1760 = vmatpush1.msra.mxu0 0.0
    %1761 = vmatprep.mubr.f32.mxu0 0.0
    %1762 = vmatmul.mubr.f32.gmra.mrb[0].mxu0 %v1487
    %v1763 = vpop.f32.mrb[0].mxu0
    %v1764 = vadd.f32 0.0, %v1763
    %v1765 = vpop.f32.mrb[0].mxu0
    %v1766 = vadd.f32 0.0, %v1765
    %1767 = vmatprep.mubr.f32.mxu0 0.0
    %1768 = vmatmul.mubr.f32.gmra.mrb[0].mxu0 %v1488
    %v1769 = vpop.f32.mrb[0].mxu0
    %v1770 = vadd.f32 0.0, %v1769
    %v1771 = vpop.f32.mrb[0].mxu0
    %v1772 = vadd.f32 0.0, %v1771
    %1773 = vmatprep.mubr.f32.mxu0 0.0
    %1774 = vmatmul.mubr.f32.gmra.mrb[0].mxu0 %v1489
    %v1775 = vpop.f32.mrb[0].mxu0
    %v1776 = vadd.f32 0.0, %v1775
    %v1777 = vpop.f32.mrb[0].mxu0
    %v1778 = vadd.f32 0.0, %v1777
    %1779 = vmatprep.mubr.f32.mxu0 0.0
    %1780 = vmatmul.mubr.f32.gmra.mrb[0].mxu0 %v1490
    %v1781 = vpop.f32.mrb[0].mxu0
    %v1782 = vadd.f32 0.0, %v1781
    %v1783 = vpop.f32.mrb[0].mxu0
    %v1784 = vadd.f32 0.0, %v1783
    %1785 = vmatprep.mubr.f32.mxu0 0.0
    %1786 = vmatmul.mubr.f32.gmra.mrb[0].mxu0 %v1491
    %v1787 = vpop.f32.mrb[0].mxu0
    %v1788 = vadd.f32 0.0, %v1787
    %v1789 = vpop.f32.mrb[0].mxu0
    %v1790 = vadd.f32 0.0, %v1789
    %1791 = vmatprep.mubr.f32.mxu0 0.0
    %1792 = vmatmul.mubr.f32.gmra.mrb[0].mxu0 %v1492
    %v1793 = vpop.f32.mrb[0].mxu0
    %v1794 = vadd.f32 0.0, %v1793
    %v1795 = vpop.f32.mrb[0].mxu0
    %v1796 = vadd.f32 0.0, %v1795
    %1797 = vmatprep.mubr.f32.mxu0 0.0
    %1798 = vmatmul.mubr.f32.gmra.mrb[0].mxu0 %v1493
    %v1799 = vpop.f32.mrb[0].mxu0
    %v1800 = vadd.f32 0.0, %v1799
    %v1801 = vpop.f32.mrb[0].mxu0
    %v1802 = vadd.f32 0.0, %v1801
    %1803 = vmatprep.mubr.f32.mxu0 0.0
    %1804 = vmatmul.mubr.f32.gmra.mrb[0].mxu0 %v1494
    %v1805 = vpop.f32.mrb[0].mxu0
    %v1806 = vadd.f32 0.0, %v1805
    %v1807 = vpop.f32.mrb[0].mxu0
    %v1808 = vadd.f32 0.0, %v1807
    %1809 = vdwg.mxu0
    %v1810 = vlaneseq
    %v1811 = vshrl.u32 %v1810, 7
    %v1812 = vsub.s32 0, %v1811
    %v1813 = vrot.slane %v1527, %v1812
    %v1814 = vadd.f32 %v1764, %v1813
    %v1815 = vadd.f32 %v1770, %v1813
    %v1816 = vadd.f32 %v1776, %v1813
    %v1817 = vadd.f32 %v1782, %v1813
    %v1818 = vadd.f32 %v1788, %v1813
    %v1819 = vadd.f32 %v1794, %v1813
    %v1820 = vadd.f32 %v1800, %v1813
    %v1821 = vadd.f32 %v1806, %v1813
    %v1830 = vand.u32 %v1689, 4294967232
    %v1831 = vand.u32 %v1690, 4294967232
    %v1832 = vand.u32 %v1691, 4294967232
    %v1833 = vand.u32 %v1692, 4294967232
    %v1834 = vand.u32 %v1693, 4294967232
    %v1835 = vand.u32 %v1694, 4294967232
    %v1836 = vand.u32 %v1695, 4294967232
    %v1837 = vand.u32 %v1696, 4294967232
    %v1838 = vor.u32 %v1830, %v453
    %v1839 = vor.u32 %v1831, %v453
    %v1840 = vor.u32 %v1832, %v453
    %v1841 = vor.u32 %v1833, %v453
    %v1842 = vor.u32 %v1834, %v453
    %v1843 = vor.u32 %v1835, %v453
    %v1844 = vor.u32 %v1836, %v453
    %v1845 = vor.u32 %v1837, %v453
    %v1846 = vpack.c.bf16 %v1772, %v1766
    %v1847 = vpack.c.bf16 %v1784, %v1778
    %v1848 = vpack.c.bf16 %v1796, %v1790
    %v1849 = vpack.c.bf16 %v1808, %v1802
    %v1850 = vsel %vm482, %v1838, 2147483647
    %v1851 = vand.u32 %v1850, 65535
    %v1852 = vshra.s32 %v1850, 16
    %v1853 = vcvt.s32.f32 %v1851
    %v1854 = vcvt.s32.f32 %v1852
    %1855 = vmin.xlane.f32.xlu0 %v1854
    %v1856 = vpop.xlane.xlu0 %1855
    %vm1857 = vcmp.eq.f32.partialorder %v1854, %v1856
    %v1858 = vsel %vm1857, %v1853, inf
    %1859 = vmin.xlane.f32.xlu0 %v1858
    %v1860 = vpop.xlane.xlu0 %1859
    %v1861 = vcvt.f32.s32 %v1860
    %v1862 = vcvt.f32.s32 %v1856
    %v1863 = vshll.u32 %v1862, 16
    %v1864 = vadd.s32 %v1863, %v1861
    %v1865 = vsel %vm482, %v1839, 2147483647
    %v1866 = vand.u32 %v1865, 65535
    %v1867 = vshra.s32 %v1865, 16
    %v1868 = vcvt.s32.f32 %v1866
    %v1869 = vcvt.s32.f32 %v1867
    %1870 = vmin.xlane.f32.xlu0 %v1869
    %v1871 = vpop.xlane.xlu0 %1870
    %vm1872 = vcmp.eq.f32.partialorder %v1869, %v1871
    %v1873 = vsel %vm1872, %v1868, inf
    %1874 = vmin.xlane.f32.xlu0 %v1873
    %v1875 = vpop.xlane.xlu0 %1874
    %v1876 = vcvt.f32.s32 %v1875
    %v1877 = vcvt.f32.s32 %v1871
    %v1878 = vshll.u32 %v1877, 16
    %v1879 = vadd.s32 %v1878, %v1876
    %v1880 = vsel %vm482, %v1840, 2147483647
    %v1881 = vand.u32 %v1880, 65535
    %v1882 = vshra.s32 %v1880, 16
    %v1883 = vcvt.s32.f32 %v1881
    %v1884 = vcvt.s32.f32 %v1882
    %1885 = vmin.xlane.f32.xlu0 %v1884
    %v1886 = vpop.xlane.xlu0 %1885
    %vm1887 = vcmp.eq.f32.partialorder %v1884, %v1886
    %v1888 = vsel %vm1887, %v1883, inf
    %1889 = vmin.xlane.f32.xlu0 %v1888
    %v1890 = vpop.xlane.xlu0 %1889
    %v1891 = vcvt.f32.s32 %v1890
    %v1892 = vcvt.f32.s32 %v1886
    %v1893 = vshll.u32 %v1892, 16
    %v1894 = vadd.s32 %v1893, %v1891
    %v1895 = vsel %vm482, %v1841, 2147483647
    %v1896 = vand.u32 %v1895, 65535
    %v1897 = vshra.s32 %v1895, 16
    %v1898 = vcvt.s32.f32 %v1896
    %v1899 = vcvt.s32.f32 %v1897
    %1900 = vmin.xlane.f32.xlu0 %v1899
    %v1901 = vpop.xlane.xlu0 %1900
    %vm1902 = vcmp.eq.f32.partialorder %v1899, %v1901
    %v1903 = vsel %vm1902, %v1898, inf
    %1904 = vmin.xlane.f32.xlu0 %v1903
    %v1905 = vpop.xlane.xlu0 %1904
    %v1906 = vcvt.f32.s32 %v1905
    %v1907 = vcvt.f32.s32 %v1901
    %v1908 = vshll.u32 %v1907, 16
    %v1909 = vadd.s32 %v1908, %v1906
    %v1910 = vsel %vm482, %v1842, 2147483647
    %v1911 = vand.u32 %v1910, 65535
    %v1912 = vshra.s32 %v1910, 16
    %v1913 = vcvt.s32.f32 %v1911
    %v1914 = vcvt.s32.f32 %v1912
    %1915 = vmin.xlane.f32.xlu0 %v1914
    %v1916 = vpop.xlane.xlu0 %1915
    %vm1917 = vcmp.eq.f32.partialorder %v1914, %v1916
    %v1918 = vsel %vm1917, %v1913, inf
    %1919 = vmin.xlane.f32.xlu0 %v1918
    %v1920 = vpop.xlane.xlu0 %1919
    %v1921 = vcvt.f32.s32 %v1920
    %v1922 = vcvt.f32.s32 %v1916
    %v1923 = vshll.u32 %v1922, 16
    %v1924 = vadd.s32 %v1923, %v1921
    %v1925 = vsel %vm482, %v1843, 2147483647
    %v1926 = vand.u32 %v1925, 65535
    %v1927 = vshra.s32 %v1925, 16
    %v1928 = vcvt.s32.f32 %v1926
    %v1929 = vcvt.s32.f32 %v1927
    %1930 = vmin.xlane.f32.xlu0 %v1929
    %v1931 = vpop.xlane.xlu0 %1930
    %vm1932 = vcmp.eq.f32.partialorder %v1929, %v1931
    %v1933 = vsel %vm1932, %v1928, inf
    %1934 = vmin.xlane.f32.xlu0 %v1933
    %v1935 = vpop.xlane.xlu0 %1934
    %v1936 = vcvt.f32.s32 %v1935
    %v1937 = vcvt.f32.s32 %v1931
    %v1938 = vshll.u32 %v1937, 16
    %v1939 = vadd.s32 %v1938, %v1936
    %v1940 = vsel %vm482, %v1844, 2147483647
    %v1941 = vand.u32 %v1940, 65535
    %v1942 = vshra.s32 %v1940, 16
    %v1943 = vcvt.s32.f32 %v1941
    %v1944 = vcvt.s32.f32 %v1942
    %1945 = vmin.xlane.f32.xlu0 %v1944
    %v1946 = vpop.xlane.xlu0 %1945
    %vm1947 = vcmp.eq.f32.partialorder %v1944, %v1946
    %v1948 = vsel %vm1947, %v1943, inf
    %1949 = vmin.xlane.f32.xlu0 %v1948
    %v1950 = vpop.xlane.xlu0 %1949
    %v1951 = vcvt.f32.s32 %v1950
    %v1952 = vcvt.f32.s32 %v1946
    %v1953 = vshll.u32 %v1952, 16
    %v1954 = vadd.s32 %v1953, %v1951
    %v1955 = vsel %vm482, %v1845, 2147483647
    %v1956 = vand.u32 %v1955, 65535
    %v1957 = vshra.s32 %v1955, 16
    %v1958 = vcvt.s32.f32 %v1956
    %v1959 = vcvt.s32.f32 %v1957
    %1960 = vmin.xlane.f32.xlu0 %v1959
    %v1961 = vpop.xlane.xlu0 %1960
    %vm1962 = vcmp.eq.f32.partialorder %v1959, %v1961
    %v1963 = vsel %vm1962, %v1958, inf
    %1964 = vmin.xlane.f32.xlu0 %v1963
    %v1965 = vpop.xlane.xlu0 %1964
    %v1966 = vcvt.f32.s32 %v1965
    %v1967 = vcvt.f32.s32 %v1961
    %v1968 = vshll.u32 %v1967, 16
    %v1969 = vadd.s32 %v1968, %v1966
    %v1970 = vand.u32 %v1864, 63
    %v1971 = vand.u32 %v1879, 63
    %v1972 = vand.u32 %v1894, 63
    %v1973 = vand.u32 %v1909, 63
    %v1974 = vand.u32 %v1924, 63
    %v1975 = vand.u32 %v1939, 63
    %v1976 = vand.u32 %v1954, 63
    %v1977 = vand.u32 %v1969, 63
    %vm1978 = vcmp.eq.s32.totalorder %v453, %v1970
    %vm1979 = vcmp.eq.s32.totalorder %v453, %v1971
    %vm1980 = vcmp.eq.s32.totalorder %v453, %v1972
    %vm1981 = vcmp.eq.s32.totalorder %v453, %v1973
    %vm1982 = vcmp.eq.s32.totalorder %v453, %v1974
    %vm1983 = vcmp.eq.s32.totalorder %v453, %v1975
    %vm1984 = vcmp.eq.s32.totalorder %v453, %v1976
    %vm1985 = vcmp.eq.s32.totalorder %v453, %v1977
    %v1986 = vsel %vm1978, 1.0, 0.0
    %v1987 = vsel %vm1979, 1.0, 0.0
    %v1988 = vsel %vm1980, 1.0, 0.0
    %v1989 = vsel %vm1981, 1.0, 0.0
    %v1990 = vsel %vm1982, 1.0, 0.0
    %v1991 = vsel %vm1983, 1.0, 0.0
    %v1992 = vsel %vm1984, 1.0, 0.0
    %v1993 = vsel %vm1985, 1.0, 0.0
    %v1994 = vpack.c.bf16 %v1987, %v1986
    %v1995 = vpack.c.bf16 %v1989, %v1988
    %v1996 = vpack.c.bf16 %v1991, %v1990
    %v1997 = vpack.c.bf16 %v1993, %v1992
    %v1999 = vsel %vm482, %v1994, 0
    %v2002 = vsel %vm482, %v1995, 0
    %v2005 = vsel %vm482, %v1996, 0
    %v2008 = vsel %vm482, %v1997, 0
    %2010 = vmatprep.subr.bf16.mxu0 0
    %2011 = vmatpush1.bf16.msra.mxu0 %v1846
    %2012 = vmatprep.subr.bf16.mxu0 0
    %2013 = vmatpush1.bf16.msra.mxu0 %v1847
    %2014 = vmatprep.subr.bf16.mxu0 0
    %2015 = vmatpush1.bf16.msra.mxu0 %v1848
    %2016 = vmatprep.subr.bf16.mxu0 0
    %2017 = vmatpush1.bf16.msra.mxu0 %v1849
    %2018 = vmatprep.subr.bf16.mxu0 0
    %2019 = vmatpush1.bf16.msra.mxu0 0
    %2020 = vmatprep.subr.bf16.mxu0 0
    %2021 = vmatpush1.bf16.msra.mxu0 0
    %2022 = vmatprep.subr.bf16.mxu0 0
    %2023 = vmatpush1.bf16.msra.mxu0 0
    %2024 = vmatprep.subr.bf16.mxu0 0
    %2025 = vmatpush1.bf16.msra.mxu0 0
    %2026 = vmatprep.subr.bf16.mxu0 0
    %2027 = vmatpush1.bf16.msra.mxu0 0
    %2028 = vmatprep.subr.bf16.mxu0 0
    %2029 = vmatpush1.bf16.msra.mxu0 0
    %2030 = vmatprep.subr.bf16.mxu0 0
    %2031 = vmatpush1.bf16.msra.mxu0 0
    %2032 = vmatprep.subr.bf16.mxu0 0
    %2033 = vmatpush1.bf16.msra.mxu0 0
    %2034 = vmatprep.subr.bf16.mxu0 0
    %2035 = vmatpush1.bf16.msra.mxu0 0
    %2036 = vmatprep.subr.bf16.mxu0 0
    %2037 = vmatpush1.bf16.msra.mxu0 0
    %2038 = vmatprep.subr.bf16.mxu0 0
    %2039 = vmatpush1.bf16.msra.mxu0 0
    %2040 = vmatprep.subr.bf16.mxu0 0
    %2041 = vmatpush1.bf16.msra.mxu0 0
    %2042 = vmatprep.mubr.bf16.mxu0 0
    %2043 = vmatmul.mubr.bf16.gmra.mrb[0].mxu0 %v1999
    %v2044 = vpop.f32.mrb[0].mxu0
    %v2045 = vadd.f32 0.0, %v2044
    %v2046 = vpop.f32.mrb[0].mxu0
    %v2047 = vpop.f32.mrb[0].mxu0
    %v2048 = vadd.f32 0.0, %v2047
    %v2049 = vpop.f32.mrb[0].mxu0
    %2050 = vmatprep.mubr.bf16.mxu0 0
    %2051 = vmatmul.mubr.bf16.gmra.mrb[0].mxu0 %v2002
    %v2052 = vpop.f32.mrb[0].mxu0
    %v2053 = vadd.f32 0.0, %v2052
    %v2054 = vpop.f32.mrb[0].mxu0
    %v2055 = vpop.f32.mrb[0].mxu0
    %v2056 = vadd.f32 0.0, %v2055
    %v2057 = vpop.f32.mrb[0].mxu0
    %2058 = vmatprep.mubr.bf16.mxu0 0
    %2059 = vmatmul.mubr.bf16.gmra.mrb[0].mxu0 %v2005
    %v2060 = vpop.f32.mrb[0].mxu0
    %v2061 = vadd.f32 0.0, %v2060
    %v2062 = vpop.f32.mrb[0].mxu0
    %v2063 = vpop.f32.mrb[0].mxu0
    %v2064 = vadd.f32 0.0, %v2063
    %v2065 = vpop.f32.mrb[0].mxu0
    %2066 = vmatprep.mubr.bf16.mxu0 0
    %2067 = vmatmul.mubr.bf16.gmra.mrb[0].mxu0 %v2008
    %v2068 = vpop.f32.mrb[0].mxu0
    %v2069 = vadd.f32 0.0, %v2068
    %v2070 = vpop.f32.mrb[0].mxu0
    %v2071 = vpop.f32.mrb[0].mxu0
    %v2072 = vadd.f32 0.0, %v2071
    %v2073 = vpop.f32.mrb[0].mxu0
    %2074 = vdwg.mxu0
    %v2075 = vsel %vm1978, 2147483647, %v1838
    %v2076 = vsel %vm1979, 2147483647, %v1839
    %v2077 = vsel %vm1980, 2147483647, %v1840
    %v2078 = vsel %vm1981, 2147483647, %v1841
    %v2079 = vsel %vm1982, 2147483647, %v1842
    %v2080 = vsel %vm1983, 2147483647, %v1843
    %v2081 = vsel %vm1984, 2147483647, %v1844
    %v2082 = vsel %vm1985, 2147483647, %v1845
    %v2083 = vsel %vm482, %v2075, 2147483647
    %v2084 = vand.u32 %v2083, 65535
    %v2085 = vshra.s32 %v2083, 16
    %v2086 = vcvt.s32.f32 %v2084
    %v2087 = vcvt.s32.f32 %v2085
    %2088 = vmin.xlane.f32.xlu0 %v2087
    %v2089 = vpop.xlane.xlu0 %2088
    %vm2090 = vcmp.eq.f32.partialorder %v2087, %v2089
    %v2091 = vsel %vm2090, %v2086, inf
    %2092 = vmin.xlane.f32.xlu0 %v2091
    %v2093 = vpop.xlane.xlu0 %2092
    %v2094 = vcvt.f32.s32 %v2093
    %v2095 = vcvt.f32.s32 %v2089
    %v2096 = vshll.u32 %v2095, 16
    %v2097 = vadd.s32 %v2096, %v2094
    %v2098 = vsel %vm482, %v2076, 2147483647
    %v2099 = vand.u32 %v2098, 65535
    %v2100 = vshra.s32 %v2098, 16
    %v2101 = vcvt.s32.f32 %v2099
    %v2102 = vcvt.s32.f32 %v2100
    %2103 = vmin.xlane.f32.xlu0 %v2102
    %v2104 = vpop.xlane.xlu0 %2103
    %vm2105 = vcmp.eq.f32.partialorder %v2102, %v2104
    %v2106 = vsel %vm2105, %v2101, inf
    %2107 = vmin.xlane.f32.xlu0 %v2106
    %v2108 = vpop.xlane.xlu0 %2107
    %v2109 = vcvt.f32.s32 %v2108
    %v2110 = vcvt.f32.s32 %v2104
    %v2111 = vshll.u32 %v2110, 16
    %v2112 = vadd.s32 %v2111, %v2109
    %v2113 = vsel %vm482, %v2077, 2147483647
    %v2114 = vand.u32 %v2113, 65535
    %v2115 = vshra.s32 %v2113, 16
    %v2116 = vcvt.s32.f32 %v2114
    %v2117 = vcvt.s32.f32 %v2115
    %2118 = vmin.xlane.f32.xlu0 %v2117
    %v2119 = vpop.xlane.xlu0 %2118
    %vm2120 = vcmp.eq.f32.partialorder %v2117, %v2119
    %v2121 = vsel %vm2120, %v2116, inf
    %2122 = vmin.xlane.f32.xlu0 %v2121
    %v2123 = vpop.xlane.xlu0 %2122
    %v2124 = vcvt.f32.s32 %v2123
    %v2125 = vcvt.f32.s32 %v2119
    %v2126 = vshll.u32 %v2125, 16
    %v2127 = vadd.s32 %v2126, %v2124
    %v2128 = vsel %vm482, %v2078, 2147483647
    %v2129 = vand.u32 %v2128, 65535
    %v2130 = vshra.s32 %v2128, 16
    %v2131 = vcvt.s32.f32 %v2129
    %v2132 = vcvt.s32.f32 %v2130
    %2133 = vmin.xlane.f32.xlu0 %v2132
    %v2134 = vpop.xlane.xlu0 %2133
    %vm2135 = vcmp.eq.f32.partialorder %v2132, %v2134
    %v2136 = vsel %vm2135, %v2131, inf
    %2137 = vmin.xlane.f32.xlu0 %v2136
    %v2138 = vpop.xlane.xlu0 %2137
    %v2139 = vcvt.f32.s32 %v2138
    %v2140 = vcvt.f32.s32 %v2134
    %v2141 = vshll.u32 %v2140, 16
    %v2142 = vadd.s32 %v2141, %v2139
    %v2143 = vsel %vm482, %v2079, 2147483647
    %v2144 = vand.u32 %v2143, 65535
    %v2145 = vshra.s32 %v2143, 16
    %v2146 = vcvt.s32.f32 %v2144
    %v2147 = vcvt.s32.f32 %v2145
    %2148 = vmin.xlane.f32.xlu0 %v2147
    %v2149 = vpop.xlane.xlu0 %2148
    %vm2150 = vcmp.eq.f32.partialorder %v2147, %v2149
    %v2151 = vsel %vm2150, %v2146, inf
    %2152 = vmin.xlane.f32.xlu0 %v2151
    %v2153 = vpop.xlane.xlu0 %2152
    %v2154 = vcvt.f32.s32 %v2153
    %v2155 = vcvt.f32.s32 %v2149
    %v2156 = vshll.u32 %v2155, 16
    %v2157 = vadd.s32 %v2156, %v2154
    %v2158 = vsel %vm482, %v2080, 2147483647
    %v2159 = vand.u32 %v2158, 65535
    %v2160 = vshra.s32 %v2158, 16
    %v2161 = vcvt.s32.f32 %v2159
    %v2162 = vcvt.s32.f32 %v2160
    %2163 = vmin.xlane.f32.xlu0 %v2162
    %v2164 = vpop.xlane.xlu0 %2163
    %vm2165 = vcmp.eq.f32.partialorder %v2162, %v2164
    %v2166 = vsel %vm2165, %v2161, inf
    %2167 = vmin.xlane.f32.xlu0 %v2166
    %v2168 = vpop.xlane.xlu0 %2167
    %v2169 = vcvt.f32.s32 %v2168
    %v2170 = vcvt.f32.s32 %v2164
    %v2171 = vshll.u32 %v2170, 16
    %v2172 = vadd.s32 %v2171, %v2169
    %v2173 = vsel %vm482, %v2081, 2147483647
    %v2174 = vand.u32 %v2173, 65535
    %v2175 = vshra.s32 %v2173, 16
    %v2176 = vcvt.s32.f32 %v2174
    %v2177 = vcvt.s32.f32 %v2175
    %2178 = vmin.xlane.f32.xlu0 %v2177
    %v2179 = vpop.xlane.xlu0 %2178
    %vm2180 = vcmp.eq.f32.partialorder %v2177, %v2179
    %v2181 = vsel %vm2180, %v2176, inf
    %2182 = vmin.xlane.f32.xlu0 %v2181
    %v2183 = vpop.xlane.xlu0 %2182
    %v2184 = vcvt.f32.s32 %v2183
    %v2185 = vcvt.f32.s32 %v2179
    %v2186 = vshll.u32 %v2185, 16
    %v2187 = vadd.s32 %v2186, %v2184
    %v2188 = vsel %vm482, %v2082, 2147483647
    %v2189 = vand.u32 %v2188, 65535
    %v2190 = vshra.s32 %v2188, 16
    %v2191 = vcvt.s32.f32 %v2189
    %v2192 = vcvt.s32.f32 %v2190
    %2193 = vmin.xlane.f32.xlu0 %v2192
    %v2194 = vpop.xlane.xlu0 %2193
    %vm2195 = vcmp.eq.f32.partialorder %v2192, %v2194
    %v2196 = vsel %vm2195, %v2191, inf
    %2197 = vmin.xlane.f32.xlu0 %v2196
    %v2198 = vpop.xlane.xlu0 %2197
    %v2199 = vcvt.f32.s32 %v2198
    %v2200 = vcvt.f32.s32 %v2194
    %v2201 = vshll.u32 %v2200, 16
    %v2202 = vadd.s32 %v2201, %v2199
    %v2203 = vand.u32 %v2097, 63
    %v2204 = vand.u32 %v2112, 63
    %v2205 = vand.u32 %v2127, 63
    %v2206 = vand.u32 %v2142, 63
    %v2207 = vand.u32 %v2157, 63
    %v2208 = vand.u32 %v2172, 63
    %v2209 = vand.u32 %v2187, 63
    %v2210 = vand.u32 %v2202, 63
    %vm2211 = vcmp.eq.s32.totalorder %v453, %v2203
    %vm2212 = vcmp.eq.s32.totalorder %v453, %v2204
    %vm2213 = vcmp.eq.s32.totalorder %v453, %v2205
    %vm2214 = vcmp.eq.s32.totalorder %v453, %v2206
    %vm2215 = vcmp.eq.s32.totalorder %v453, %v2207
    %vm2216 = vcmp.eq.s32.totalorder %v453, %v2208
    %vm2217 = vcmp.eq.s32.totalorder %v453, %v2209
    %vm2218 = vcmp.eq.s32.totalorder %v453, %v2210
    %v2219 = vsel %vm2211, 1.0, 0.0
    %v2220 = vsel %vm2212, 1.0, 0.0
    %v2221 = vsel %vm2213, 1.0, 0.0
    %v2222 = vsel %vm2214, 1.0, 0.0
    %v2223 = vsel %vm2215, 1.0, 0.0
    %v2224 = vsel %vm2216, 1.0, 0.0
    %v2225 = vsel %vm2217, 1.0, 0.0
    %v2226 = vsel %vm2218, 1.0, 0.0
    %v2227 = vpack.c.bf16 %v2220, %v2219
    %v2228 = vpack.c.bf16 %v2222, %v2221
    %v2229 = vpack.c.bf16 %v2224, %v2223
    %v2230 = vpack.c.bf16 %v2226, %v2225
    %v2232 = vsel %vm482, %v2227, 0
    %v2235 = vsel %vm482, %v2228, 0
    %v2238 = vsel %vm482, %v2229, 0
    %v2241 = vsel %vm482, %v2230, 0
    %2243 = vmatprep.subr.bf16.mxu0 0
    %2244 = vmatpush1.bf16.msra.mxu0 %v1846
    %2245 = vmatprep.subr.bf16.mxu0 0
    %2246 = vmatpush1.bf16.msra.mxu0 %v1847
    %2247 = vmatprep.subr.bf16.mxu0 0
    %2248 = vmatpush1.bf16.msra.mxu0 %v1848
    %2249 = vmatprep.subr.bf16.mxu0 0
    %2250 = vmatpush1.bf16.msra.mxu0 %v1849
    %2251 = vmatprep.subr.bf16.mxu0 0
    %2252 = vmatpush1.bf16.msra.mxu0 0
    %2253 = vmatprep.subr.bf16.mxu0 0
    %2254 = vmatpush1.bf16.msra.mxu0 0
    %2255 = vmatprep.subr.bf16.mxu0 0
    %2256 = vmatpush1.bf16.msra.mxu0 0
    %2257 = vmatprep.subr.bf16.mxu0 0
    %2258 = vmatpush1.bf16.msra.mxu0 0
    %2259 = vmatprep.subr.bf16.mxu0 0
    %2260 = vmatpush1.bf16.msra.mxu0 0
    %2261 = vmatprep.subr.bf16.mxu0 0
    %2262 = vmatpush1.bf16.msra.mxu0 0
    %2263 = vmatprep.subr.bf16.mxu0 0
    %2264 = vmatpush1.bf16.msra.mxu0 0
    %2265 = vmatprep.subr.bf16.mxu0 0
    %2266 = vmatpush1.bf16.msra.mxu0 0
    %2267 = vmatprep.subr.bf16.mxu0 0
    %2268 = vmatpush1.bf16.msra.mxu0 0
    %2269 = vmatprep.subr.bf16.mxu0 0
    %2270 = vmatpush1.bf16.msra.mxu0 0
    %2271 = vmatprep.subr.bf16.mxu0 0
    %2272 = vmatpush1.bf16.msra.mxu0 0
    %2273 = vmatprep.subr.bf16.mxu0 0
    %2274 = vmatpush1.bf16.msra.mxu0 0
    %2275 = vmatprep.mubr.bf16.mxu0 0
    %2276 = vmatmul.mubr.bf16.gmra.mrb[0].mxu0 %v2232
    %v2277 = vpop.f32.mrb[0].mxu0
    %v2278 = vadd.f32 0.0, %v2277
    %v2279 = vpop.f32.mrb[0].mxu0
    %v2280 = vpop.f32.mrb[0].mxu0
    %v2281 = vadd.f32 0.0, %v2280
    %v2282 = vpop.f32.mrb[0].mxu0
    %2283 = vmatprep.mubr.bf16.mxu0 0
    %2284 = vmatmul.mubr.bf16.gmra.mrb[0].mxu0 %v2235
    %v2285 = vpop.f32.mrb[0].mxu0
    %v2286 = vadd.f32 0.0, %v2285
    %v2287 = vpop.f32.mrb[0].mxu0
    %v2288 = vpop.f32.mrb[0].mxu0
    %v2289 = vadd.f32 0.0, %v2288
    %v2290 = vpop.f32.mrb[0].mxu0
    %2291 = vmatprep.mubr.bf16.mxu0 0
    %2292 = vmatmul.mubr.bf16.gmra.mrb[0].mxu0 %v2238
    %v2293 = vpop.f32.mrb[0].mxu0
    %v2294 = vadd.f32 0.0, %v2293
    %v2295 = vpop.f32.mrb[0].mxu0
    %v2296 = vpop.f32.mrb[0].mxu0
    %v2297 = vadd.f32 0.0, %v2296
    %v2298 = vpop.f32.mrb[0].mxu0
    %2299 = vmatprep.mubr.bf16.mxu0 0
    %2300 = vmatmul.mubr.bf16.gmra.mrb[0].mxu0 %v2241
    %v2301 = vpop.f32.mrb[0].mxu0
    %v2302 = vadd.f32 0.0, %v2301
    %v2303 = vpop.f32.mrb[0].mxu0
    %v2304 = vpop.f32.mrb[0].mxu0
    %v2305 = vadd.f32 0.0, %v2304
    %v2306 = vpop.f32.mrb[0].mxu0
    %2307 = vdwg.mxu0
    %v2308 = vmax.f32 %v2045, %v2278
    %v2309 = vmax.f32 %v2048, %v2281
    %v2310 = vmax.f32 %v2053, %v2286
    %v2311 = vmax.f32 %v2056, %v2289
    %v2312 = vmax.f32 %v2061, %v2294
    %v2313 = vmax.f32 %v2064, %v2297
    %v2314 = vmax.f32 %v2069, %v2302
    %v2315 = vmax.f32 %v2072, %v2305
    %v2316 = vsel %vm2211, 2147483647, %v2075
    %v2317 = vsel %vm2212, 2147483647, %v2076
    %v2318 = vsel %vm2213, 2147483647, %v2077
    %v2319 = vsel %vm2214, 2147483647, %v2078
    %v2320 = vsel %vm2215, 2147483647, %v2079
    %v2321 = vsel %vm2216, 2147483647, %v2080
    %v2322 = vsel %vm2217, 2147483647, %v2081
    %v2323 = vsel %vm2218, 2147483647, %v2082
    %v2324 = vsel %vm482, %v2316, 2147483647
    %v2325 = vand.u32 %v2324, 65535
    %v2326 = vshra.s32 %v2324, 16
    %v2327 = vcvt.s32.f32 %v2325
    %v2328 = vcvt.s32.f32 %v2326
    %2329 = vmin.xlane.f32.xlu0 %v2328
    %v2330 = vpop.xlane.xlu0 %2329
    %vm2331 = vcmp.eq.f32.partialorder %v2328, %v2330
    %v2332 = vsel %vm2331, %v2327, inf
    %2333 = vmin.xlane.f32.xlu0 %v2332
    %v2334 = vpop.xlane.xlu0 %2333
    %v2335 = vcvt.f32.s32 %v2334
    %v2336 = vcvt.f32.s32 %v2330
    %v2337 = vshll.u32 %v2336, 16
    %v2338 = vadd.s32 %v2337, %v2335
    %v2339 = vsel %vm482, %v2317, 2147483647
    %v2340 = vand.u32 %v2339, 65535
    %v2341 = vshra.s32 %v2339, 16
    %v2342 = vcvt.s32.f32 %v2340
    %v2343 = vcvt.s32.f32 %v2341
    %2344 = vmin.xlane.f32.xlu0 %v2343
    %v2345 = vpop.xlane.xlu0 %2344
    %vm2346 = vcmp.eq.f32.partialorder %v2343, %v2345
    %v2347 = vsel %vm2346, %v2342, inf
    %2348 = vmin.xlane.f32.xlu0 %v2347
    %v2349 = vpop.xlane.xlu0 %2348
    %v2350 = vcvt.f32.s32 %v2349
    %v2351 = vcvt.f32.s32 %v2345
    %v2352 = vshll.u32 %v2351, 16
    %v2353 = vadd.s32 %v2352, %v2350
    %v2354 = vsel %vm482, %v2318, 2147483647
    %v2355 = vand.u32 %v2354, 65535
    %v2356 = vshra.s32 %v2354, 16
    %v2357 = vcvt.s32.f32 %v2355
    %v2358 = vcvt.s32.f32 %v2356
    %2359 = vmin.xlane.f32.xlu0 %v2358
    %v2360 = vpop.xlane.xlu0 %2359
    %vm2361 = vcmp.eq.f32.partialorder %v2358, %v2360
    %v2362 = vsel %vm2361, %v2357, inf
    %2363 = vmin.xlane.f32.xlu0 %v2362
    %v2364 = vpop.xlane.xlu0 %2363
    %v2365 = vcvt.f32.s32 %v2364
    %v2366 = vcvt.f32.s32 %v2360
    %v2367 = vshll.u32 %v2366, 16
    %v2368 = vadd.s32 %v2367, %v2365
    %v2369 = vsel %vm482, %v2319, 2147483647
    %v2370 = vand.u32 %v2369, 65535
    %v2371 = vshra.s32 %v2369, 16
    %v2372 = vcvt.s32.f32 %v2370
    %v2373 = vcvt.s32.f32 %v2371
    %2374 = vmin.xlane.f32.xlu0 %v2373
    %v2375 = vpop.xlane.xlu0 %2374
    %vm2376 = vcmp.eq.f32.partialorder %v2373, %v2375
    %v2377 = vsel %vm2376, %v2372, inf
    %2378 = vmin.xlane.f32.xlu0 %v2377
    %v2379 = vpop.xlane.xlu0 %2378
    %v2380 = vcvt.f32.s32 %v2379
    %v2381 = vcvt.f32.s32 %v2375
    %v2382 = vshll.u32 %v2381, 16
    %v2383 = vadd.s32 %v2382, %v2380
    %v2384 = vsel %vm482, %v2320, 2147483647
    %v2385 = vand.u32 %v2384, 65535
    %v2386 = vshra.s32 %v2384, 16
    %v2387 = vcvt.s32.f32 %v2385
    %v2388 = vcvt.s32.f32 %v2386
    %2389 = vmin.xlane.f32.xlu0 %v2388
    %v2390 = vpop.xlane.xlu0 %2389
    %vm2391 = vcmp.eq.f32.partialorder %v2388, %v2390
    %v2392 = vsel %vm2391, %v2387, inf
    %2393 = vmin.xlane.f32.xlu0 %v2392
    %v2394 = vpop.xlane.xlu0 %2393
    %v2395 = vcvt.f32.s32 %v2394
    %v2396 = vcvt.f32.s32 %v2390
    %v2397 = vshll.u32 %v2396, 16
    %v2398 = vadd.s32 %v2397, %v2395
    %v2399 = vsel %vm482, %v2321, 2147483647
    %v2400 = vand.u32 %v2399, 65535
    %v2401 = vshra.s32 %v2399, 16
    %v2402 = vcvt.s32.f32 %v2400
    %v2403 = vcvt.s32.f32 %v2401
    %2404 = vmin.xlane.f32.xlu0 %v2403
    %v2405 = vpop.xlane.xlu0 %2404
    %vm2406 = vcmp.eq.f32.partialorder %v2403, %v2405
    %v2407 = vsel %vm2406, %v2402, inf
    %2408 = vmin.xlane.f32.xlu0 %v2407
    %v2409 = vpop.xlane.xlu0 %2408
    %v2410 = vcvt.f32.s32 %v2409
    %v2411 = vcvt.f32.s32 %v2405
    %v2412 = vshll.u32 %v2411, 16
    %v2413 = vadd.s32 %v2412, %v2410
    %v2414 = vsel %vm482, %v2322, 2147483647
    %v2415 = vand.u32 %v2414, 65535
    %v2416 = vshra.s32 %v2414, 16
    %v2417 = vcvt.s32.f32 %v2415
    %v2418 = vcvt.s32.f32 %v2416
    %2419 = vmin.xlane.f32.xlu0 %v2418
    %v2420 = vpop.xlane.xlu0 %2419
    %vm2421 = vcmp.eq.f32.partialorder %v2418, %v2420
    %v2422 = vsel %vm2421, %v2417, inf
    %2423 = vmin.xlane.f32.xlu0 %v2422
    %v2424 = vpop.xlane.xlu0 %2423
    %v2425 = vcvt.f32.s32 %v2424
    %v2426 = vcvt.f32.s32 %v2420
    %v2427 = vshll.u32 %v2426, 16
    %v2428 = vadd.s32 %v2427, %v2425
    %v2429 = vsel %vm482, %v2323, 2147483647
    %v2430 = vand.u32 %v2429, 65535
    %v2431 = vshra.s32 %v2429, 16
    %v2432 = vcvt.s32.f32 %v2430
    %v2433 = vcvt.s32.f32 %v2431
    %2434 = vmin.xlane.f32.xlu0 %v2433
    %v2435 = vpop.xlane.xlu0 %2434
    %vm2436 = vcmp.eq.f32.partialorder %v2433, %v2435
    %v2437 = vsel %vm2436, %v2432, inf
    %2438 = vmin.xlane.f32.xlu0 %v2437
    %v2439 = vpop.xlane.xlu0 %2438
    %v2440 = vcvt.f32.s32 %v2439
    %v2441 = vcvt.f32.s32 %v2435
    %v2442 = vshll.u32 %v2441, 16
    %v2443 = vadd.s32 %v2442, %v2440
    %v2444 = vand.u32 %v2338, 63
    %v2445 = vand.u32 %v2353, 63
    %v2446 = vand.u32 %v2368, 63
    %v2447 = vand.u32 %v2383, 63
    %v2448 = vand.u32 %v2398, 63
    %v2449 = vand.u32 %v2413, 63
    %v2450 = vand.u32 %v2428, 63
    %v2451 = vand.u32 %v2443, 63
    %vm2452 = vcmp.eq.s32.totalorder %v453, %v2444
    %vm2453 = vcmp.eq.s32.totalorder %v453, %v2445
    %vm2454 = vcmp.eq.s32.totalorder %v453, %v2446
    %vm2455 = vcmp.eq.s32.totalorder %v453, %v2447
    %vm2456 = vcmp.eq.s32.totalorder %v453, %v2448
    %vm2457 = vcmp.eq.s32.totalorder %v453, %v2449
    %vm2458 = vcmp.eq.s32.totalorder %v453, %v2450
    %vm2459 = vcmp.eq.s32.totalorder %v453, %v2451
    %v2460 = vsel %vm2452, 1.0, 0.0
    %v2461 = vsel %vm2453, 1.0, 0.0
    %v2462 = vsel %vm2454, 1.0, 0.0
    %v2463 = vsel %vm2455, 1.0, 0.0
    %v2464 = vsel %vm2456, 1.0, 0.0
    %v2465 = vsel %vm2457, 1.0, 0.0
    %v2466 = vsel %vm2458, 1.0, 0.0
    %v2467 = vsel %vm2459, 1.0, 0.0
    %v2468 = vpack.c.bf16 %v2461, %v2460
    %v2469 = vpack.c.bf16 %v2463, %v2462
    %v2470 = vpack.c.bf16 %v2465, %v2464
    %v2471 = vpack.c.bf16 %v2467, %v2466
    %v2473 = vsel %vm482, %v2468, 0
    %v2476 = vsel %vm482, %v2469, 0
    %v2479 = vsel %vm482, %v2470, 0
    %v2482 = vsel %vm482, %v2471, 0
    %2484 = vmatprep.subr.bf16.mxu0 0
    %2485 = vmatpush1.bf16.msra.mxu0 %v1846
    %2486 = vmatprep.subr.bf16.mxu0 0
    %2487 = vmatpush1.bf16.msra.mxu0 %v1847
    %2488 = vmatprep.subr.bf16.mxu0 0
    %2489 = vmatpush1.bf16.msra.mxu0 %v1848
    %2490 = vmatprep.subr.bf16.mxu0 0
    %2491 = vmatpush1.bf16.msra.mxu0 %v1849
    %2492 = vmatprep.subr.bf16.mxu0 0
    %2493 = vmatpush1.bf16.msra.mxu0 0
    %2494 = vmatprep.subr.bf16.mxu0 0
    %2495 = vmatpush1.bf16.msra.mxu0 0
    %2496 = vmatprep.subr.bf16.mxu0 0
    %2497 = vmatpush1.bf16.msra.mxu0 0
    %2498 = vmatprep.subr.bf16.mxu0 0
    %2499 = vmatpush1.bf16.msra.mxu0 0
    %2500 = vmatprep.subr.bf16.mxu0 0
    %2501 = vmatpush1.bf16.msra.mxu0 0
    %2502 = vmatprep.subr.bf16.mxu0 0
    %2503 = vmatpush1.bf16.msra.mxu0 0
    %2504 = vmatprep.subr.bf16.mxu0 0
    %2505 = vmatpush1.bf16.msra.mxu0 0
    %2506 = vmatprep.subr.bf16.mxu0 0
    %2507 = vmatpush1.bf16.msra.mxu0 0
    %2508 = vmatprep.subr.bf16.mxu0 0
    %2509 = vmatpush1.bf16.msra.mxu0 0
    %2510 = vmatprep.subr.bf16.mxu0 0
    %2511 = vmatpush1.bf16.msra.mxu0 0
    %2512 = vmatprep.subr.bf16.mxu0 0
    %2513 = vmatpush1.bf16.msra.mxu0 0
    %2514 = vmatprep.subr.bf16.mxu0 0
    %2515 = vmatpush1.bf16.msra.mxu0 0
    %2516 = vmatprep.mubr.bf16.mxu0 0
    %2517 = vmatmul.mubr.bf16.gmra.mrb[0].mxu0 %v2473
    %v2518 = vpop.f32.mrb[0].mxu0
    %v2519 = vadd.f32 0.0, %v2518
    %v2520 = vpop.f32.mrb[0].mxu0
    %v2521 = vpop.f32.mrb[0].mxu0
    %v2522 = vadd.f32 0.0, %v2521
    %v2523 = vpop.f32.mrb[0].mxu0
    %2524 = vmatprep.mubr.bf16.mxu0 0
    %2525 = vmatmul.mubr.bf16.gmra.mrb[0].mxu0 %v2476
    %v2526 = vpop.f32.mrb[0].mxu0
    %v2527 = vadd.f32 0.0, %v2526
    %v2528 = vpop.f32.mrb[0].mxu0
    %v2529 = vpop.f32.mrb[0].mxu0
    %v2530 = vadd.f32 0.0, %v2529
    %v2531 = vpop.f32.mrb[0].mxu0
    %2532 = vmatprep.mubr.bf16.mxu0 0
    %2533 = vmatmul.mubr.bf16.gmra.mrb[0].mxu0 %v2479
    %v2534 = vpop.f32.mrb[0].mxu0
    %v2535 = vadd.f32 0.0, %v2534
    %v2536 = vpop.f32.mrb[0].mxu0
    %v2537 = vpop.f32.mrb[0].mxu0
    %v2538 = vadd.f32 0.0, %v2537
    %v2539 = vpop.f32.mrb[0].mxu0
    %2540 = vmatprep.mubr.bf16.mxu0 0
    %2541 = vmatmul.mubr.bf16.gmra.mrb[0].mxu0 %v2482
    %v2542 = vpop.f32.mrb[0].mxu0
    %v2543 = vadd.f32 0.0, %v2542
    %v2544 = vpop.f32.mrb[0].mxu0
    %v2545 = vpop.f32.mrb[0].mxu0
    %v2546 = vadd.f32 0.0, %v2545
    %v2547 = vpop.f32.mrb[0].mxu0
    %2548 = vdwg.mxu0
    %v2549 = vmax.f32 %v2308, %v2519
    %v2550 = vmax.f32 %v2309, %v2522
    %v2551 = vmax.f32 %v2310, %v2527
    %v2552 = vmax.f32 %v2311, %v2530
    %v2553 = vmax.f32 %v2312, %v2535
    %v2554 = vmax.f32 %v2313, %v2538
    %v2555 = vmax.f32 %v2314, %v2543
    %v2556 = vmax.f32 %v2315, %v2546
    %v2557 = vsel %vm2452, 2147483647, %v2316
    %v2558 = vsel %vm2453, 2147483647, %v2317
    %v2559 = vsel %vm2454, 2147483647, %v2318
    %v2560 = vsel %vm2455, 2147483647, %v2319
    %v2561 = vsel %vm2456, 2147483647, %v2320
    %v2562 = vsel %vm2457, 2147483647, %v2321
    %v2563 = vsel %vm2458, 2147483647, %v2322
    %v2564 = vsel %vm2459, 2147483647, %v2323
    %v2565 = vsel %vm482, %v2557, 2147483647
    %v2566 = vand.u32 %v2565, 65535
    %v2567 = vshra.s32 %v2565, 16
    %v2568 = vcvt.s32.f32 %v2566
    %v2569 = vcvt.s32.f32 %v2567
    %2570 = vmin.xlane.f32.xlu0 %v2569
    %v2571 = vpop.xlane.xlu0 %2570
    %vm2572 = vcmp.eq.f32.partialorder %v2569, %v2571
    %v2573 = vsel %vm2572, %v2568, inf
    %2574 = vmin.xlane.f32.xlu0 %v2573
    %v2575 = vpop.xlane.xlu0 %2574
    %v2576 = vcvt.f32.s32 %v2575
    %v2577 = vcvt.f32.s32 %v2571
    %v2578 = vshll.u32 %v2577, 16
    %v2579 = vadd.s32 %v2578, %v2576
    %v2580 = vsel %vm482, %v2558, 2147483647
    %v2581 = vand.u32 %v2580, 65535
    %v2582 = vshra.s32 %v2580, 16
    %v2583 = vcvt.s32.f32 %v2581
    %v2584 = vcvt.s32.f32 %v2582
    %2585 = vmin.xlane.f32.xlu0 %v2584
    %v2586 = vpop.xlane.xlu0 %2585
    %vm2587 = vcmp.eq.f32.partialorder %v2584, %v2586
    %v2588 = vsel %vm2587, %v2583, inf
    %2589 = vmin.xlane.f32.xlu0 %v2588
    %v2590 = vpop.xlane.xlu0 %2589
    %v2591 = vcvt.f32.s32 %v2590
    %v2592 = vcvt.f32.s32 %v2586
    %v2593 = vshll.u32 %v2592, 16
    %v2594 = vadd.s32 %v2593, %v2591
    %v2595 = vsel %vm482, %v2559, 2147483647
    %v2596 = vand.u32 %v2595, 65535
    %v2597 = vshra.s32 %v2595, 16
    %v2598 = vcvt.s32.f32 %v2596
    %v2599 = vcvt.s32.f32 %v2597
    %2600 = vmin.xlane.f32.xlu0 %v2599
    %v2601 = vpop.xlane.xlu0 %2600
    %vm2602 = vcmp.eq.f32.partialorder %v2599, %v2601
    %v2603 = vsel %vm2602, %v2598, inf
    %2604 = vmin.xlane.f32.xlu0 %v2603
    %v2605 = vpop.xlane.xlu0 %2604
    %v2606 = vcvt.f32.s32 %v2605
    %v2607 = vcvt.f32.s32 %v2601
    %v2608 = vshll.u32 %v2607, 16
    %v2609 = vadd.s32 %v2608, %v2606
    %v2610 = vsel %vm482, %v2560, 2147483647
    %v2611 = vand.u32 %v2610, 65535
    %v2612 = vshra.s32 %v2610, 16
    %v2613 = vcvt.s32.f32 %v2611
    %v2614 = vcvt.s32.f32 %v2612
    %2615 = vmin.xlane.f32.xlu0 %v2614
    %v2616 = vpop.xlane.xlu0 %2615
    %vm2617 = vcmp.eq.f32.partialorder %v2614, %v2616
    %v2618 = vsel %vm2617, %v2613, inf
    %2619 = vmin.xlane.f32.xlu0 %v2618
    %v2620 = vpop.xlane.xlu0 %2619
    %v2621 = vcvt.f32.s32 %v2620
    %v2622 = vcvt.f32.s32 %v2616
    %v2623 = vshll.u32 %v2622, 16
    %v2624 = vadd.s32 %v2623, %v2621
    %v2625 = vsel %vm482, %v2561, 2147483647
    %v2626 = vand.u32 %v2625, 65535
    %v2627 = vshra.s32 %v2625, 16
    %v2628 = vcvt.s32.f32 %v2626
    %v2629 = vcvt.s32.f32 %v2627
    %2630 = vmin.xlane.f32.xlu0 %v2629
    %v2631 = vpop.xlane.xlu0 %2630
    %vm2632 = vcmp.eq.f32.partialorder %v2629, %v2631
    %v2633 = vsel %vm2632, %v2628, inf
    %2634 = vmin.xlane.f32.xlu0 %v2633
    %v2635 = vpop.xlane.xlu0 %2634
    %v2636 = vcvt.f32.s32 %v2635
    %v2637 = vcvt.f32.s32 %v2631
    %v2638 = vshll.u32 %v2637, 16
    %v2639 = vadd.s32 %v2638, %v2636
    %v2640 = vsel %vm482, %v2562, 2147483647
    %v2641 = vand.u32 %v2640, 65535
    %v2642 = vshra.s32 %v2640, 16
    %v2643 = vcvt.s32.f32 %v2641
    %v2644 = vcvt.s32.f32 %v2642
    %2645 = vmin.xlane.f32.xlu0 %v2644
    %v2646 = vpop.xlane.xlu0 %2645
    %vm2647 = vcmp.eq.f32.partialorder %v2644, %v2646
    %v2648 = vsel %vm2647, %v2643, inf
    %2649 = vmin.xlane.f32.xlu0 %v2648
    %v2650 = vpop.xlane.xlu0 %2649
    %v2651 = vcvt.f32.s32 %v2650
    %v2652 = vcvt.f32.s32 %v2646
    %v2653 = vshll.u32 %v2652, 16
    %v2654 = vadd.s32 %v2653, %v2651
    %v2655 = vsel %vm482, %v2563, 2147483647
    %v2656 = vand.u32 %v2655, 65535
    %v2657 = vshra.s32 %v2655, 16
    %v2658 = vcvt.s32.f32 %v2656
    %v2659 = vcvt.s32.f32 %v2657
    %2660 = vmin.xlane.f32.xlu0 %v2659
    %v2661 = vpop.xlane.xlu0 %2660
    %vm2662 = vcmp.eq.f32.partialorder %v2659, %v2661
    %v2663 = vsel %vm2662, %v2658, inf
    %2664 = vmin.xlane.f32.xlu0 %v2663
    %v2665 = vpop.xlane.xlu0 %2664
    %v2666 = vcvt.f32.s32 %v2665
    %v2667 = vcvt.f32.s32 %v2661
    %v2668 = vshll.u32 %v2667, 16
    %v2669 = vadd.s32 %v2668, %v2666
    %v2670 = vsel %vm482, %v2564, 2147483647
    %v2671 = vand.u32 %v2670, 65535
    %v2672 = vshra.s32 %v2670, 16
    %v2673 = vcvt.s32.f32 %v2671
    %v2674 = vcvt.s32.f32 %v2672
    %2675 = vmin.xlane.f32.xlu0 %v2674
    %v2676 = vpop.xlane.xlu0 %2675
    %vm2677 = vcmp.eq.f32.partialorder %v2674, %v2676
    %v2678 = vsel %vm2677, %v2673, inf
    %2679 = vmin.xlane.f32.xlu0 %v2678
    %v2680 = vpop.xlane.xlu0 %2679
    %v2681 = vcvt.f32.s32 %v2680
    %v2682 = vcvt.f32.s32 %v2676
    %v2683 = vshll.u32 %v2682, 16
    %v2684 = vadd.s32 %v2683, %v2681
    %v2685 = vand.u32 %v2579, 63
    %v2686 = vand.u32 %v2594, 63
    %v2687 = vand.u32 %v2609, 63
    %v2688 = vand.u32 %v2624, 63
    %v2689 = vand.u32 %v2639, 63
    %v2690 = vand.u32 %v2654, 63
    %v2691 = vand.u32 %v2669, 63
    %v2692 = vand.u32 %v2684, 63
    %vm2693 = vcmp.eq.s32.totalorder %v453, %v2685
    %vm2694 = vcmp.eq.s32.totalorder %v453, %v2686
    %vm2695 = vcmp.eq.s32.totalorder %v453, %v2687
    %vm2696 = vcmp.eq.s32.totalorder %v453, %v2688
    %vm2697 = vcmp.eq.s32.totalorder %v453, %v2689
    %vm2698 = vcmp.eq.s32.totalorder %v453, %v2690
    %vm2699 = vcmp.eq.s32.totalorder %v453, %v2691
    %vm2700 = vcmp.eq.s32.totalorder %v453, %v2692
    %v2701 = vsel %vm2693, 1.0, 0.0
    %v2702 = vsel %vm2694, 1.0, 0.0
    %v2703 = vsel %vm2695, 1.0, 0.0
    %v2704 = vsel %vm2696, 1.0, 0.0
    %v2705 = vsel %vm2697, 1.0, 0.0
    %v2706 = vsel %vm2698, 1.0, 0.0
    %v2707 = vsel %vm2699, 1.0, 0.0
    %v2708 = vsel %vm2700, 1.0, 0.0
    %v2709 = vpack.c.bf16 %v2702, %v2701
    %v2710 = vpack.c.bf16 %v2704, %v2703
    %v2711 = vpack.c.bf16 %v2706, %v2705
    %v2712 = vpack.c.bf16 %v2708, %v2707
    %v2714 = vsel %vm482, %v2709, 0
    %v2717 = vsel %vm482, %v2710, 0
    %v2720 = vsel %vm482, %v2711, 0
    %v2723 = vsel %vm482, %v2712, 0
    %2725 = vmatprep.subr.bf16.mxu0 0
    %2726 = vmatpush1.bf16.msra.mxu0 %v1846
    %2727 = vmatprep.subr.bf16.mxu0 0
    %2728 = vmatpush1.bf16.msra.mxu0 %v1847
    %2729 = vmatprep.subr.bf16.mxu0 0
    %2730 = vmatpush1.bf16.msra.mxu0 %v1848
    %2731 = vmatprep.subr.bf16.mxu0 0
    %2732 = vmatpush1.bf16.msra.mxu0 %v1849
    %2733 = vmatprep.subr.bf16.mxu0 0
    %2734 = vmatpush1.bf16.msra.mxu0 0
    %2735 = vmatprep.subr.bf16.mxu0 0
    %2736 = vmatpush1.bf16.msra.mxu0 0
    %2737 = vmatprep.subr.bf16.mxu0 0
    %2738 = vmatpush1.bf16.msra.mxu0 0
    %2739 = vmatprep.subr.bf16.mxu0 0
    %2740 = vmatpush1.bf16.msra.mxu0 0
    %2741 = vmatprep.subr.bf16.mxu0 0
    %2742 = vmatpush1.bf16.msra.mxu0 0
    %2743 = vmatprep.subr.bf16.mxu0 0
    %2744 = vmatpush1.bf16.msra.mxu0 0
    %2745 = vmatprep.subr.bf16.mxu0 0
    %2746 = vmatpush1.bf16.msra.mxu0 0
    %2747 = vmatprep.subr.bf16.mxu0 0
    %2748 = vmatpush1.bf16.msra.mxu0 0
    %2749 = vmatprep.subr.bf16.mxu0 0
    %2750 = vmatpush1.bf16.msra.mxu0 0
    %2751 = vmatprep.subr.bf16.mxu0 0
    %2752 = vmatpush1.bf16.msra.mxu0 0
    %2753 = vmatprep.subr.bf16.mxu0 0
    %2754 = vmatpush1.bf16.msra.mxu0 0
    %2755 = vmatprep.subr.bf16.mxu0 0
    %2756 = vmatpush1.bf16.msra.mxu0 0
    %2757 = vmatprep.mubr.bf16.mxu0 0
    %2758 = vmatmul.mubr.bf16.gmra.mrb[0].mxu0 %v2714
    %v2759 = vpop.f32.mrb[0].mxu0
    %v2760 = vadd.f32 0.0, %v2759
    %v2761 = vpop.f32.mrb[0].mxu0
    %v2762 = vpop.f32.mrb[0].mxu0
    %v2763 = vadd.f32 0.0, %v2762
    %v2764 = vpop.f32.mrb[0].mxu0
    %2765 = vmatprep.mubr.bf16.mxu0 0
    %2766 = vmatmul.mubr.bf16.gmra.mrb[0].mxu0 %v2717
    %v2767 = vpop.f32.mrb[0].mxu0
    %v2768 = vadd.f32 0.0, %v2767
    %v2769 = vpop.f32.mrb[0].mxu0
    %v2770 = vpop.f32.mrb[0].mxu0
    %v2771 = vadd.f32 0.0, %v2770
    %v2772 = vpop.f32.mrb[0].mxu0
    %2773 = vmatprep.mubr.bf16.mxu0 0
    %2774 = vmatmul.mubr.bf16.gmra.mrb[0].mxu0 %v2720
    %v2775 = vpop.f32.mrb[0].mxu0
    %v2776 = vadd.f32 0.0, %v2775
    %v2777 = vpop.f32.mrb[0].mxu0
    %v2778 = vpop.f32.mrb[0].mxu0
    %v2779 = vadd.f32 0.0, %v2778
    %v2780 = vpop.f32.mrb[0].mxu0
    %2781 = vmatprep.mubr.bf16.mxu0 0
    %2782 = vmatmul.mubr.bf16.gmra.mrb[0].mxu0 %v2723
    %v2783 = vpop.f32.mrb[0].mxu0
    %v2784 = vadd.f32 0.0, %v2783
    %v2785 = vpop.f32.mrb[0].mxu0
    %v2786 = vpop.f32.mrb[0].mxu0
    %v2787 = vadd.f32 0.0, %v2786
    %v2788 = vpop.f32.mrb[0].mxu0
    %2789 = vdwg.mxu0
    %v2790 = vmax.f32 %v2549, %v2760
    %v2791 = vmax.f32 %v2550, %v2763
    %v2792 = vmax.f32 %v2551, %v2768
    %v2793 = vmax.f32 %v2552, %v2771
    %v2794 = vmax.f32 %v2553, %v2776
    %v2795 = vmax.f32 %v2554, %v2779
    %v2796 = vmax.f32 %v2555, %v2784
    %v2797 = vmax.f32 %v2556, %v2787
    %v2798 = vsub.f32 %v1814, %v1766
    %v2799 = vsub.f32 %v1815, %v1772
    %v2800 = vsub.f32 %v1816, %v1778
    %v2801 = vsub.f32 %v1817, %v1784
    %v2802 = vsub.f32 %v1818, %v1790
    %v2803 = vsub.f32 %v1819, %v1796
    %v2804 = vsub.f32 %v1820, %v1802
    %v2805 = vsub.f32 %v1821, %v1808
    %v2806 = vadd.f32 %v2798, %v2790
    %v2807 = vadd.f32 %v2799, %v2791
    %v2808 = vadd.f32 %v2800, %v2792
    %v2809 = vadd.f32 %v2801, %v2793
    %v2810 = vadd.f32 %v2802, %v2794
    %v2811 = vadd.f32 %v2803, %v2795
    %v2812 = vadd.f32 %v2804, %v2796
    %v2813 = vadd.f32 %v2805, %v2797
    %vm2814 = vcmp.ge.f32.partialorder %v2806, 0.0
    %vm2815 = vcmp.ge.f32.partialorder %v2807, 0.0
    %vm2816 = vcmp.ge.f32.partialorder %v2808, 0.0
    %vm2817 = vcmp.ge.f32.partialorder %v2809, 0.0
    %vm2818 = vcmp.ge.f32.partialorder %v2810, 0.0
    %vm2819 = vcmp.ge.f32.partialorder %v2811, 0.0
    %vm2820 = vcmp.ge.f32.partialorder %v2812, 0.0
    %vm2821 = vcmp.ge.f32.partialorder %v2813, 0.0
    %v2822 = vmul.f32 %v2806, 0.2
    %v2823 = vmul.f32 %v2807, 0.2
    %v2824 = vmul.f32 %v2808, 0.2
    %v2825 = vmul.f32 %v2809, 0.2
    %v2826 = vmul.f32 %v2810, 0.2
    %v2827 = vmul.f32 %v2811, 0.2
    %v2828 = vmul.f32 %v2812, 0.2
    %v2829 = vmul.f32 %v2813, 0.2
    %v2830 = vsel %vm2814, %v2806, %v2822
    %v2831 = vsel %vm2815, %v2807, %v2823
    %v2832 = vsel %vm2816, %v2808, %v2824
    %v2833 = vsel %vm2817, %v2809, %v2825
    %v2834 = vsel %vm2818, %v2810, %v2826
    %v2835 = vsel %vm2819, %v2811, %v2827
    %v2836 = vsel %vm2820, %v2812, %v2828
    %v2837 = vsel %vm2821, %v2813, %v2829
    %v2838 = vlaneseq
    %v2839 = vshrl.u32 %v2838, 7
    %v2840 = vsub.s32 1, %v2839
    %v2841 = vrot.slane %v1527, %v2840
    %v2842 = vmul.f32 %v2830, %v2841
    %v2843 = vmul.f32 %v2831, %v2841
    %v2844 = vmul.f32 %v2832, %v2841
    %v2845 = vmul.f32 %v2833, %v2841
    %v2846 = vmul.f32 %v2834, %v2841
    %v2847 = vmul.f32 %v2835, %v2841
    %v2848 = vmul.f32 %v2836, %v2841
    %v2849 = vmul.f32 %v2837, %v2841
    %v2850 = vlaneseq
    %v2851 = vshrl.u32 %v2850, 7
    %v2852 = vsub.s32 2, %v2851
    %v2853 = vrot.slane %v1527, %v2852
    %v2854 = vadd.f32 %v2842, %v2853
    %v2855 = vadd.f32 %v2843, %v2853
    %v2856 = vadd.f32 %v2844, %v2853
    %v2857 = vadd.f32 %v2845, %v2853
    %v2858 = vadd.f32 %v2846, %v2853
    %v2859 = vadd.f32 %v2847, %v2853
    %v2860 = vadd.f32 %v2848, %v2853
    %v2861 = vadd.f32 %v2849, %v2853
    %v2862 = vld [vmem:[#allocation11] sm:$0xff]
    %v2863 = vld [vmem:[#allocation11 + $0x8] sm:$0xff]
    %v2864 = vld [vmem:[#allocation11 + $0x10] sm:$0xff]
    %v2865 = vld [vmem:[#allocation11 + $0x18] sm:$0xff]
    %v2866 = vld [vmem:[#allocation11 + $0x20] sm:$0xff]
    %v2867 = vld [vmem:[#allocation11 + $0x28] sm:$0xff]
    %v2868 = vld [vmem:[#allocation11 + $0x30] sm:$0xff]
    %v2869 = vld [vmem:[#allocation11 + $0x38] sm:$0xff]
    %v2870 = vld [vmem:[#allocation11 + $0x40] sm:$0xff]
    %v2871 = vld [vmem:[#allocation11 + $0x48] sm:$0xff]
    %v2872 = vld [vmem:[#allocation11 + $0x50] sm:$0xff]
    %v2873 = vld [vmem:[#allocation11 + $0x58] sm:$0xff]
    %v2874 = vld [vmem:[#allocation11 + $0x60] sm:$0xff]
    %v2875 = vld [vmem:[#allocation11 + $0x68] sm:$0xff]
    %v2876 = vld [vmem:[#allocation11 + $0x70] sm:$0xff]
    %v2877 = vld [vmem:[#allocation11 + $0x78] sm:$0xff]
    %v2878 = vld [vmem:[#allocation11 + $0x80] sm:$0xff]
    %v2879 = vld [vmem:[#allocation11 + $0x88] sm:$0xff]
    %v2880 = vld [vmem:[#allocation11 + $0x90] sm:$0xff]
    %v2881 = vld [vmem:[#allocation11 + $0x98] sm:$0xff]
    %v2882 = vld [vmem:[#allocation11 + $0xa0] sm:$0xff]
    %v2883 = vld [vmem:[#allocation11 + $0xa8] sm:$0xff]
    %v2884 = vld [vmem:[#allocation11 + $0xb0] sm:$0xff]
    %v2885 = vld [vmem:[#allocation11 + $0xb8] sm:$0xff]
    %v2886 = vld [vmem:[#allocation11 + $0xc0] sm:$0xff]
    %v2887 = vld [vmem:[#allocation11 + $0xc8] sm:$0xff]
    %v2888 = vld [vmem:[#allocation11 + $0xd0] sm:$0xff]
    %v2889 = vld [vmem:[#allocation11 + $0xd8] sm:$0xff]
    %v2890 = vld [vmem:[#allocation11 + $0xe0] sm:$0xff]
    %v2891 = vld [vmem:[#allocation11 + $0xe8] sm:$0xff]
    %v2892 = vld [vmem:[#allocation11 + $0xf0] sm:$0xff]
    %v2893 = vld [vmem:[#allocation11 + $0xf8] sm:$0xff]
    %v2894 = vld [vmem:[#allocation13] sm:$0xff]
    %v2895 = vpack.c.bf16 %v2855, %v2854
    %v2896 = vpack.c.bf16 %v2857, %v2856
    %v2897 = vpack.c.bf16 %v2859, %v2858
    %v2898 = vpack.c.bf16 %v2861, %v2860
    %v2899 = vunpack.c.l.bf16 %v2895
    %v2900 = vunpack.c.h.bf16 %v2895
    %v2901 = vunpack.c.l.bf16 %v2896
    %v2902 = vunpack.c.h.bf16 %v2896
    %v2903 = vunpack.c.l.bf16 %v2897
    %v2904 = vunpack.c.h.bf16 %v2897
    %v2905 = vunpack.c.l.bf16 %v2898
    %v2906 = vunpack.c.h.bf16 %v2898
    %v2907 = vmul.f32 %v2899, %v2899
    %v2908 = vmul.f32 %v2900, %v2900
    %v2909 = vmul.f32 %v2901, %v2901
    %v2910 = vmul.f32 %v2902, %v2902
    %v2911 = vmul.f32 %v2903, %v2903
    %v2912 = vmul.f32 %v2904, %v2904
    %v2913 = vmul.f32 %v2905, %v2905
    %v2914 = vmul.f32 %v2906, %v2906
    %2915 = vadd.xlane.f32.xlu0 %v2907
    %v2916 = vpop.xlane.xlu0 %2915
    %2917 = vadd.xlane.f32.xlu0 %v2908
    %v2918 = vpop.xlane.xlu0 %2917
    %2919 = vadd.xlane.f32.xlu0 %v2909
    %v2920 = vpop.xlane.xlu0 %2919
    %2921 = vadd.xlane.f32.xlu0 %v2910
    %v2922 = vpop.xlane.xlu0 %2921
    %2923 = vadd.xlane.f32.xlu0 %v2911
    %v2924 = vpop.xlane.xlu0 %2923
    %2925 = vadd.xlane.f32.xlu0 %v2912
    %v2926 = vpop.xlane.xlu0 %2925
    %2927 = vadd.xlane.f32.xlu0 %v2913
    %v2928 = vpop.xlane.xlu0 %2927
    %2929 = vadd.xlane.f32.xlu0 %v2914
    %v2930 = vpop.xlane.xlu0 %2929
    %2931 = vmatprep.subr.bf16.mxu0 0
    %2932 = vmatpush1.bf16.xpose.msra.mxu0 %v2895
    %2933 = vmatprep.subr.bf16.mxu0 0
    %2934 = vmatpush1.bf16.xpose.msra.mxu0 %v2896
    %2935 = vmatprep.subr.bf16.mxu0 0
    %2936 = vmatpush1.bf16.xpose.msra.mxu0 %v2897
    %2937 = vmatprep.subr.bf16.mxu0 0
    %2938 = vmatpush1.bf16.xpose.msra.mxu0 %v2898
    %2939 = vmatprep.subr.bf16.mxu0 0
    %2940 = vmatpush1.bf16.xpose.msra.mxu0 0
    %2941 = vmatprep.subr.bf16.mxu0 0
    %2942 = vmatpush1.bf16.xpose.msra.mxu0 0
    %2943 = vmatprep.subr.bf16.mxu0 0
    %2944 = vmatpush1.bf16.xpose.msra.mxu0 0
    %2945 = vmatprep.subr.bf16.mxu0 0
    %2946 = vmatpush1.bf16.xpose.msra.mxu0 0
    %2947 = vmatprep.subr.bf16.mxu0 0
    %2948 = vmatpush1.bf16.xpose.msra.mxu0 0
    %2949 = vmatprep.subr.bf16.mxu0 0
    %2950 = vmatpush1.bf16.xpose.msra.mxu0 0
    %2951 = vmatprep.subr.bf16.mxu0 0
    %2952 = vmatpush1.bf16.xpose.msra.mxu0 0
    %2953 = vmatprep.subr.bf16.mxu0 0
    %2954 = vmatpush1.bf16.xpose.msra.mxu0 0
    %2955 = vmatprep.subr.bf16.mxu0 0
    %2956 = vmatpush1.bf16.xpose.msra.mxu0 0
    %2957 = vmatprep.subr.bf16.mxu0 0
    %2958 = vmatpush1.bf16.xpose.msra.mxu0 0
    %2959 = vmatprep.subr.bf16.mxu0 0
    %2960 = vmatpush1.bf16.xpose.msra.mxu0 0
    %2961 = vmatprep.subr.bf16.mxu0 0
    %2962 = vmatpush1.bf16.xpose.msra.mxu0 0
    %2963 = vmatprep.mubr.bf16.mxu0 0
    %2964 = vmatmul.mubr.bf16.gmra.mrb[0].mxu0 %v2895
    %v2965 = vpop.f32.mrb[0].mxu0
    %v2966 = vadd.f32 0.0, %v2965
    %v2967 = vpop.f32.mrb[0].mxu0
    %v2968 = vpop.f32.mrb[0].mxu0
    %v2969 = vadd.f32 0.0, %v2968
    %v2970 = vpop.f32.mrb[0].mxu0
    %2971 = vmatprep.mubr.bf16.mxu0 0
    %2972 = vmatmul.mubr.bf16.gmra.mrb[0].mxu0 %v2896
    %v2973 = vpop.f32.mrb[0].mxu0
    %v2974 = vadd.f32 0.0, %v2973
    %v2975 = vpop.f32.mrb[0].mxu0
    %v2976 = vpop.f32.mrb[0].mxu0
    %v2977 = vadd.f32 0.0, %v2976
    %v2978 = vpop.f32.mrb[0].mxu0
    %2979 = vmatprep.mubr.bf16.mxu0 0
    %2980 = vmatmul.mubr.bf16.gmra.mrb[0].mxu0 %v2897
    %v2981 = vpop.f32.mrb[0].mxu0
    %v2982 = vadd.f32 0.0, %v2981
    %v2983 = vpop.f32.mrb[0].mxu0
    %v2984 = vpop.f32.mrb[0].mxu0
    %v2985 = vadd.f32 0.0, %v2984
    %v2986 = vpop.f32.mrb[0].mxu0
    %2987 = vmatprep.mubr.bf16.mxu0 0
    %2988 = vmatmul.mubr.bf16.gmra.mrb[0].mxu0 %v2898
    %v2989 = vpop.f32.mrb[0].mxu0
    %v2990 = vadd.f32 0.0, %v2989
    %v2991 = vpop.f32.mrb[0].mxu0
    %v2992 = vpop.f32.mrb[0].mxu0
    %v2993 = vadd.f32 0.0, %v2992
    %v2994 = vpop.f32.mrb[0].mxu0
    %2995 = vdwg.mxu0
    %2996 = vxpose.xlu0.b32.start [1/16] %v2916, 128
    %2997 = vxpose.xlu0.b32.cont [2/16] %v2918, 128
    %2998 = vxpose.xlu0.b32.cont [3/16] %v2920, 128
    %2999 = vxpose.xlu0.b32.cont [4/16] %v2922, 128
    %3000 = vxpose.xlu0.b32.cont [5/16] %v2924, 128
    %3001 = vxpose.xlu0.b32.cont [6/16] %v2926, 128
    %3002 = vxpose.xlu0.b32.cont [7/16] %v2928, 128
    %3003 = vxpose.xlu0.b32.cont [8/16] %v2930, 128
    %3004 = vxpose.xlu0.b32.cont [9/16] 0.0, 128
    %3005 = vxpose.xlu0.b32.cont [10/16] 0.0, 128
    %3006 = vxpose.xlu0.b32.cont [11/16] 0.0, 128
    %3007 = vxpose.xlu0.b32.cont [12/16] 0.0, 128
    %3008 = vxpose.xlu0.b32.cont [13/16] 0.0, 128
    %3009 = vxpose.xlu0.b32.cont [14/16] 0.0, 128
    %3010 = vxpose.xlu0.b32.cont [15/16] 0.0, 128
    %3011 = vxpose.xlu0.b32.end [16/16] 0.0, 128
    %v3012 = vpop.trf.xlu0
    %v3013 = vpop.trf.xlu0
    %v3014 = vpop.trf.xlu0
    %v3015 = vpop.trf.xlu0
    %v3016 = vpop.trf.xlu0
    %v3017 = vpop.trf.xlu0
    %v3018 = vpop.trf.xlu0
    %v3019 = vpop.trf.xlu0
    %v3020 = vpop.trf.xlu0
    %v3021 = vpop.trf.xlu0
    %v3022 = vpop.trf.xlu0
    %v3023 = vpop.trf.xlu0
    %v3024 = vpop.trf.xlu0
    %v3025 = vpop.trf.xlu0
    %v3026 = vpop.trf.xlu0
    %v3027 = vpop.trf.xlu0
    %v3028 = vlaneseq
    %v3029 = vshrl.u32 %v3028, 7
    %v3030 = vsub.s32 0, %v3029
    %v3031 = vrot.slane %v3012, %v3030
    %v3032 = vadd.f32 %v2916, %v3031
    %v3033 = vadd.f32 %v2918, %v3031
    %v3034 = vadd.f32 %v2920, %v3031
    %v3035 = vadd.f32 %v2922, %v3031
    %v3036 = vadd.f32 %v2924, %v3031
    %v3037 = vadd.f32 %v2926, %v3031
    %v3038 = vadd.f32 %v2928, %v3031
    %v3039 = vadd.f32 %v2930, %v3031
    %v3040 = vmul.f32 %v2966, 2.0
    %v3041 = vmul.f32 %v2969, 2.0
    %v3042 = vmul.f32 %v2974, 2.0
    %v3043 = vmul.f32 %v2977, 2.0
    %v3044 = vmul.f32 %v2982, 2.0
    %v3045 = vmul.f32 %v2985, 2.0
    %v3046 = vmul.f32 %v2990, 2.0
    %v3047 = vmul.f32 %v2993, 2.0
    %v3048 = vsub.f32 %v3032, %v3040
    %v3049 = vsub.f32 %v3033, %v3041
    %v3050 = vsub.f32 %v3034, %v3042
    %v3051 = vsub.f32 %v3035, %v3043
    %v3052 = vsub.f32 %v3036, %v3044
    %v3053 = vsub.f32 %v3037, %v3045
    %v3054 = vsub.f32 %v3038, %v3046
    %v3055 = vsub.f32 %v3039, %v3047
    %v3056 = vmax.f32 %v3048, 0.0
    %v3057 = vmax.f32 %v3049, 0.0
    %v3058 = vmax.f32 %v3050, 0.0
    %v3059 = vmax.f32 %v3051, 0.0
    %v3060 = vmax.f32 %v3052, 0.0
    %v3061 = vmax.f32 %v3053, 0.0
    %v3062 = vmax.f32 %v3054, 0.0
    %v3063 = vmax.f32 %v3055, 0.0
    %3064 = vmatprep.subr.mxu0 %v2863
    %3065 = vmatpush1.msra.mxu0 %v2862
    %3066 = vmatprep.subr.mxu0 %v2865
    %3067 = vmatpush1.msra.mxu0 %v2864
    %3068 = vmatprep.subr.mxu0 %v2867
    %3069 = vmatpush1.msra.mxu0 %v2866
    %3070 = vmatprep.subr.mxu0 %v2869
    %3071 = vmatpush1.msra.mxu0 %v2868
    %3072 = vmatprep.subr.mxu0 %v2871
    %3073 = vmatpush1.msra.mxu0 %v2870
    %3074 = vmatprep.subr.mxu0 %v2873
    %3075 = vmatpush1.msra.mxu0 %v2872
    %3076 = vmatprep.subr.mxu0 %v2875
    %3077 = vmatpush1.msra.mxu0 %v2874
    %3078 = vmatprep.subr.mxu0 %v2877
    %3079 = vmatpush1.msra.mxu0 %v2876
    %3080 = vmatprep.subr.mxu0 %v2879
    %3081 = vmatpush1.msra.mxu0 %v2878
    %3082 = vmatprep.subr.mxu0 %v2881
    %3083 = vmatpush1.msra.mxu0 %v2880
    %3084 = vmatprep.subr.mxu0 %v2883
    %3085 = vmatpush1.msra.mxu0 %v2882
    %3086 = vmatprep.subr.mxu0 %v2885
    %3087 = vmatpush1.msra.mxu0 %v2884
    %3088 = vmatprep.subr.mxu0 %v2887
    %3089 = vmatpush1.msra.mxu0 %v2886
    %3090 = vmatprep.subr.mxu0 %v2889
    %3091 = vmatpush1.msra.mxu0 %v2888
    %3092 = vmatprep.subr.mxu0 %v2891
    %3093 = vmatpush1.msra.mxu0 %v2890
    %3094 = vmatprep.subr.mxu0 %v2893
    %3095 = vmatpush1.msra.mxu0 %v2892
    %3096 = vmatprep.subr.mxu0 0.0
    %3097 = vmatpush1.msra.mxu0 0.0
    %3098 = vmatprep.subr.mxu0 0.0
    %3099 = vmatpush1.msra.mxu0 0.0
    %3100 = vmatprep.subr.mxu0 0.0
    %3101 = vmatpush1.msra.mxu0 0.0
    %3102 = vmatprep.subr.mxu0 0.0
    %3103 = vmatpush1.msra.mxu0 0.0
    %3104 = vmatprep.subr.mxu0 0.0
    %3105 = vmatpush1.msra.mxu0 0.0
    %3106 = vmatprep.subr.mxu0 0.0
    %3107 = vmatpush1.msra.mxu0 0.0
    %3108 = vmatprep.subr.mxu0 0.0
    %3109 = vmatpush1.msra.mxu0 0.0
    %3110 = vmatprep.subr.mxu0 0.0
    %3111 = vmatpush1.msra.mxu0 0.0
    %3112 = vmatprep.subr.mxu0 0.0
    %3113 = vmatpush1.msra.mxu0 0.0
    %3114 = vmatprep.subr.mxu0 0.0
    %3115 = vmatpush1.msra.mxu0 0.0
    %3116 = vmatprep.subr.mxu0 0.0
    %3117 = vmatpush1.msra.mxu0 0.0
    %3118 = vmatprep.subr.mxu0 0.0
    %3119 = vmatpush1.msra.mxu0 0.0
    %3120 = vmatprep.subr.mxu0 0.0
    %3121 = vmatpush1.msra.mxu0 0.0
    %3122 = vmatprep.subr.mxu0 0.0
    %3123 = vmatpush1.msra.mxu0 0.0
    %3124 = vmatprep.subr.mxu0 0.0
    %3125 = vmatpush1.msra.mxu0 0.0
    %3126 = vmatprep.subr.mxu0 0.0
    %3127 = vmatpush1.msra.mxu0 0.0
    %3128 = vmatprep.mubr.f32.mxu0 0.0
    %3129 = vmatmul.mubr.f32.gmra.mrb[0].mxu0 %v2854
    %v3130 = vpop.f32.mrb[0].mxu0
    %v3131 = vadd.f32 0.0, %v3130
    %v3132 = vpop.f32.mrb[0].mxu0
    %v3133 = vadd.f32 0.0, %v3132
    %3134 = vmatprep.mubr.f32.mxu0 0.0
    %3135 = vmatmul.mubr.f32.gmra.mrb[0].mxu0 %v2855
    %v3136 = vpop.f32.mrb[0].mxu0
    %v3137 = vadd.f32 0.0, %v3136
    %v3138 = vpop.f32.mrb[0].mxu0
    %v3139 = vadd.f32 0.0, %v3138
    %3140 = vmatprep.mubr.f32.mxu0 0.0
    %3141 = vmatmul.mubr.f32.gmra.mrb[0].mxu0 %v2856
    %v3142 = vpop.f32.mrb[0].mxu0
    %v3143 = vadd.f32 0.0, %v3142
    %v3144 = vpop.f32.mrb[0].mxu0
    %v3145 = vadd.f32 0.0, %v3144
    %3146 = vmatprep.mubr.f32.mxu0 0.0
    %3147 = vmatmul.mubr.f32.gmra.mrb[0].mxu0 %v2857
    %v3148 = vpop.f32.mrb[0].mxu0
    %v3149 = vadd.f32 0.0, %v3148
    %v3150 = vpop.f32.mrb[0].mxu0
    %v3151 = vadd.f32 0.0, %v3150
    %3152 = vmatprep.mubr.f32.mxu0 0.0
    %3153 = vmatmul.mubr.f32.gmra.mrb[0].mxu0 %v2858
    %v3154 = vpop.f32.mrb[0].mxu0
    %v3155 = vadd.f32 0.0, %v3154
    %v3156 = vpop.f32.mrb[0].mxu0
    %v3157 = vadd.f32 0.0, %v3156
    %3158 = vmatprep.mubr.f32.mxu0 0.0
    %3159 = vmatmul.mubr.f32.gmra.mrb[0].mxu0 %v2859
    %v3160 = vpop.f32.mrb[0].mxu0
    %v3161 = vadd.f32 0.0, %v3160
    %v3162 = vpop.f32.mrb[0].mxu0
    %v3163 = vadd.f32 0.0, %v3162
    %3164 = vmatprep.mubr.f32.mxu0 0.0
    %3165 = vmatmul.mubr.f32.gmra.mrb[0].mxu0 %v2860
    %v3166 = vpop.f32.mrb[0].mxu0
    %v3167 = vadd.f32 0.0, %v3166
    %v3168 = vpop.f32.mrb[0].mxu0
    %v3169 = vadd.f32 0.0, %v3168
    %3170 = vmatprep.mubr.f32.mxu0 0.0
    %3171 = vmatmul.mubr.f32.gmra.mrb[0].mxu0 %v2861
    %v3172 = vpop.f32.mrb[0].mxu0
    %v3173 = vadd.f32 0.0, %v3172
    %v3174 = vpop.f32.mrb[0].mxu0
    %v3175 = vadd.f32 0.0, %v3174
    %3176 = vdwg.mxu0
    %v3177 = vlaneseq
    %v3178 = vshrl.u32 %v3177, 7
    %v3179 = vsub.s32 0, %v3178
    %v3180 = vrot.slane %v2894, %v3179
    %v3181 = vadd.f32 %v3131, %v3180
    %v3182 = vadd.f32 %v3137, %v3180
    %v3183 = vadd.f32 %v3143, %v3180
    %v3184 = vadd.f32 %v3149, %v3180
    %v3185 = vadd.f32 %v3155, %v3180
    %v3186 = vadd.f32 %v3161, %v3180
    %v3187 = vadd.f32 %v3167, %v3180
    %v3188 = vadd.f32 %v3173, %v3180
    %v3197 = vand.u32 %v3056, 4294967232
    %v3198 = vand.u32 %v3057, 4294967232
    %v3199 = vand.u32 %v3058, 4294967232
    %v3200 = vand.u32 %v3059, 4294967232
    %v3201 = vand.u32 %v3060, 4294967232
    %v3202 = vand.u32 %v3061, 4294967232
    %v3203 = vand.u32 %v3062, 4294967232
    %v3204 = vand.u32 %v3063, 4294967232
    %v3205 = vor.u32 %v3197, %v453
    %v3206 = vor.u32 %v3198, %v453
    %v3207 = vor.u32 %v3199, %v453
    %v3208 = vor.u32 %v3200, %v453
    %v3209 = vor.u32 %v3201, %v453
    %v3210 = vor.u32 %v3202, %v453
    %v3211 = vor.u32 %v3203, %v453
    %v3212 = vor.u32 %v3204, %v453
    %v3213 = vpack.c.bf16 %v3139, %v3133
    %v3214 = vpack.c.bf16 %v3151, %v3145
    %v3215 = vpack.c.bf16 %v3163, %v3157
    %v3216 = vpack.c.bf16 %v3175, %v3169
    %v3217 = vsel %vm482, %v3205, 2147483647
    %v3218 = vand.u32 %v3217, 65535
    %v3219 = vshra.s32 %v3217, 16
    %v3220 = vcvt.s32.f32 %v3218
    %v3221 = vcvt.s32.f32 %v3219
    %3222 = vmin.xlane.f32.xlu0 %v3221
    %v3223 = vpop.xlane.xlu0 %3222
    %vm3224 = vcmp.eq.f32.partialorder %v3221, %v3223
    %v3225 = vsel %vm3224, %v3220, inf
    %3226 = vmin.xlane.f32.xlu0 %v3225
    %v3227 = vpop.xlane.xlu0 %3226
    %v3228 = vcvt.f32.s32 %v3227
    %v3229 = vcvt.f32.s32 %v3223
    %v3230 = vshll.u32 %v3229, 16
    %v3231 = vadd.s32 %v3230, %v3228
    %v3232 = vsel %vm482, %v3206, 2147483647
    %v3233 = vand.u32 %v3232, 65535
    %v3234 = vshra.s32 %v3232, 16
    %v3235 = vcvt.s32.f32 %v3233
    %v3236 = vcvt.s32.f32 %v3234
    %3237 = vmin.xlane.f32.xlu0 %v3236
    %v3238 = vpop.xlane.xlu0 %3237
    %vm3239 = vcmp.eq.f32.partialorder %v3236, %v3238
    %v3240 = vsel %vm3239, %v3235, inf
    %3241 = vmin.xlane.f32.xlu0 %v3240
    %v3242 = vpop.xlane.xlu0 %3241
    %v3243 = vcvt.f32.s32 %v3242
    %v3244 = vcvt.f32.s32 %v3238
    %v3245 = vshll.u32 %v3244, 16
    %v3246 = vadd.s32 %v3245, %v3243
    %v3247 = vsel %vm482, %v3207, 2147483647
    %v3248 = vand.u32 %v3247, 65535
    %v3249 = vshra.s32 %v3247, 16
    %v3250 = vcvt.s32.f32 %v3248
    %v3251 = vcvt.s32.f32 %v3249
    %3252 = vmin.xlane.f32.xlu0 %v3251
    %v3253 = vpop.xlane.xlu0 %3252
    %vm3254 = vcmp.eq.f32.partialorder %v3251, %v3253
    %v3255 = vsel %vm3254, %v3250, inf
    %3256 = vmin.xlane.f32.xlu0 %v3255
    %v3257 = vpop.xlane.xlu0 %3256
    %v3258 = vcvt.f32.s32 %v3257
    %v3259 = vcvt.f32.s32 %v3253
    %v3260 = vshll.u32 %v3259, 16
    %v3261 = vadd.s32 %v3260, %v3258
    %v3262 = vsel %vm482, %v3208, 2147483647
    %v3263 = vand.u32 %v3262, 65535
    %v3264 = vshra.s32 %v3262, 16
    %v3265 = vcvt.s32.f32 %v3263
    %v3266 = vcvt.s32.f32 %v3264
    %3267 = vmin.xlane.f32.xlu0 %v3266
    %v3268 = vpop.xlane.xlu0 %3267
    %vm3269 = vcmp.eq.f32.partialorder %v3266, %v3268
    %v3270 = vsel %vm3269, %v3265, inf
    %3271 = vmin.xlane.f32.xlu0 %v3270
    %v3272 = vpop.xlane.xlu0 %3271
    %v3273 = vcvt.f32.s32 %v3272
    %v3274 = vcvt.f32.s32 %v3268
    %v3275 = vshll.u32 %v3274, 16
    %v3276 = vadd.s32 %v3275, %v3273
    %v3277 = vsel %vm482, %v3209, 2147483647
    %v3278 = vand.u32 %v3277, 65535
    %v3279 = vshra.s32 %v3277, 16
    %v3280 = vcvt.s32.f32 %v3278
    %v3281 = vcvt.s32.f32 %v3279
    %3282 = vmin.xlane.f32.xlu0 %v3281
    %v3283 = vpop.xlane.xlu0 %3282
    %vm3284 = vcmp.eq.f32.partialorder %v3281, %v3283
    %v3285 = vsel %vm3284, %v3280, inf
    %3286 = vmin.xlane.f32.xlu0 %v3285
    %v3287 = vpop.xlane.xlu0 %3286
    %v3288 = vcvt.f32.s32 %v3287
    %v3289 = vcvt.f32.s32 %v3283
    %v3290 = vshll.u32 %v3289, 16
    %v3291 = vadd.s32 %v3290, %v3288
    %v3292 = vsel %vm482, %v3210, 2147483647
    %v3293 = vand.u32 %v3292, 65535
    %v3294 = vshra.s32 %v3292, 16
    %v3295 = vcvt.s32.f32 %v3293
    %v3296 = vcvt.s32.f32 %v3294
    %3297 = vmin.xlane.f32.xlu0 %v3296
    %v3298 = vpop.xlane.xlu0 %3297
    %vm3299 = vcmp.eq.f32.partialorder %v3296, %v3298
    %v3300 = vsel %vm3299, %v3295, inf
    %3301 = vmin.xlane.f32.xlu0 %v3300
    %v3302 = vpop.xlane.xlu0 %3301
    %v3303 = vcvt.f32.s32 %v3302
    %v3304 = vcvt.f32.s32 %v3298
    %v3305 = vshll.u32 %v3304, 16
    %v3306 = vadd.s32 %v3305, %v3303
    %v3307 = vsel %vm482, %v3211, 2147483647
    %v3308 = vand.u32 %v3307, 65535
    %v3309 = vshra.s32 %v3307, 16
    %v3310 = vcvt.s32.f32 %v3308
    %v3311 = vcvt.s32.f32 %v3309
    %3312 = vmin.xlane.f32.xlu0 %v3311
    %v3313 = vpop.xlane.xlu0 %3312
    %vm3314 = vcmp.eq.f32.partialorder %v3311, %v3313
    %v3315 = vsel %vm3314, %v3310, inf
    %3316 = vmin.xlane.f32.xlu0 %v3315
    %v3317 = vpop.xlane.xlu0 %3316
    %v3318 = vcvt.f32.s32 %v3317
    %v3319 = vcvt.f32.s32 %v3313
    %v3320 = vshll.u32 %v3319, 16
    %v3321 = vadd.s32 %v3320, %v3318
    %v3322 = vsel %vm482, %v3212, 2147483647
    %v3323 = vand.u32 %v3322, 65535
    %v3324 = vshra.s32 %v3322, 16
    %v3325 = vcvt.s32.f32 %v3323
    %v3326 = vcvt.s32.f32 %v3324
    %3327 = vmin.xlane.f32.xlu0 %v3326
    %v3328 = vpop.xlane.xlu0 %3327
    %vm3329 = vcmp.eq.f32.partialorder %v3326, %v3328
    %v3330 = vsel %vm3329, %v3325, inf
    %3331 = vmin.xlane.f32.xlu0 %v3330
    %v3332 = vpop.xlane.xlu0 %3331
    %v3333 = vcvt.f32.s32 %v3332
    %v3334 = vcvt.f32.s32 %v3328
    %v3335 = vshll.u32 %v3334, 16
    %v3336 = vadd.s32 %v3335, %v3333
    %v3337 = vand.u32 %v3231, 63
    %v3338 = vand.u32 %v3246, 63
    %v3339 = vand.u32 %v3261, 63
    %v3340 = vand.u32 %v3276, 63
    %v3341 = vand.u32 %v3291, 63
    %v3342 = vand.u32 %v3306, 63
    %v3343 = vand.u32 %v3321, 63
    %v3344 = vand.u32 %v3336, 63
    %vm3345 = vcmp.eq.s32.totalorder %v453, %v3337
    %vm3346 = vcmp.eq.s32.totalorder %v453, %v3338
    %vm3347 = vcmp.eq.s32.totalorder %v453, %v3339
    %vm3348 = vcmp.eq.s32.totalorder %v453, %v3340
    %vm3349 = vcmp.eq.s32.totalorder %v453, %v3341
    %vm3350 = vcmp.eq.s32.totalorder %v453, %v3342
    %vm3351 = vcmp.eq.s32.totalorder %v453, %v3343
    %vm3352 = vcmp.eq.s32.totalorder %v453, %v3344
    %v3353 = vsel %vm3345, 1.0, 0.0
    %v3354 = vsel %vm3346, 1.0, 0.0
    %v3355 = vsel %vm3347, 1.0, 0.0
    %v3356 = vsel %vm3348, 1.0, 0.0
    %v3357 = vsel %vm3349, 1.0, 0.0
    %v3358 = vsel %vm3350, 1.0, 0.0
    %v3359 = vsel %vm3351, 1.0, 0.0
    %v3360 = vsel %vm3352, 1.0, 0.0
    %v3361 = vpack.c.bf16 %v3354, %v3353
    %v3362 = vpack.c.bf16 %v3356, %v3355
    %v3363 = vpack.c.bf16 %v3358, %v3357
    %v3364 = vpack.c.bf16 %v3360, %v3359
    %v3366 = vsel %vm482, %v3361, 0
    %v3369 = vsel %vm482, %v3362, 0
    %v3372 = vsel %vm482, %v3363, 0
    %v3375 = vsel %vm482, %v3364, 0
    %3377 = vmatprep.subr.bf16.mxu0 0
    %3378 = vmatpush1.bf16.msra.mxu0 %v3213
    %3379 = vmatprep.subr.bf16.mxu0 0
    %3380 = vmatpush1.bf16.msra.mxu0 %v3214
    %3381 = vmatprep.subr.bf16.mxu0 0
    %3382 = vmatpush1.bf16.msra.mxu0 %v3215
    %3383 = vmatprep.subr.bf16.mxu0 0
    %3384 = vmatpush1.bf16.msra.mxu0 %v3216
    %3385 = vmatprep.subr.bf16.mxu0 0
    %3386 = vmatpush1.bf16.msra.mxu0 0
    %3387 = vmatprep.subr.bf16.mxu0 0
    %3388 = vmatpush1.bf16.msra.mxu0 0
    %3389 = vmatprep.subr.bf16.mxu0 0
    %3390 = vmatpush1.bf16.msra.mxu0 0
    %3391 = vmatprep.subr.bf16.mxu0 0
    %3392 = vmatpush1.bf16.msra.mxu0 0
    %3393 = vmatprep.subr.bf16.mxu0 0
    %3394 = vmatpush1.bf16.msra.mxu0 0
    %3395 = vmatprep.subr.bf16.mxu0 0
    %3396 = vmatpush1.bf16.msra.mxu0 0
    %3397 = vmatprep.subr.bf16.mxu0 0
    %3398 = vmatpush1.bf16.msra.mxu0 0
    %3399 = vmatprep.subr.bf16.mxu0 0
    %3400 = vmatpush1.bf16.msra.mxu0 0
    %3401 = vmatprep.subr.bf16.mxu0 0
    %3402 = vmatpush1.bf16.msra.mxu0 0
    %3403 = vmatprep.subr.bf16.mxu0 0
    %3404 = vmatpush1.bf16.msra.mxu0 0
    %3405 = vmatprep.subr.bf16.mxu0 0
    %3406 = vmatpush1.bf16.msra.mxu0 0
    %3407 = vmatprep.subr.bf16.mxu0 0
    %3408 = vmatpush1.bf16.msra.mxu0 0
    %3409 = vmatprep.mubr.bf16.mxu0 0
    %3410 = vmatmul.mubr.bf16.gmra.mrb[0].mxu0 %v3366
    %v3411 = vpop.f32.mrb[0].mxu0
    %v3412 = vadd.f32 0.0, %v3411
    %v3413 = vpop.f32.mrb[0].mxu0
    %v3414 = vpop.f32.mrb[0].mxu0
    %v3415 = vadd.f32 0.0, %v3414
    %v3416 = vpop.f32.mrb[0].mxu0
    %3417 = vmatprep.mubr.bf16.mxu0 0
    %3418 = vmatmul.mubr.bf16.gmra.mrb[0].mxu0 %v3369
    %v3419 = vpop.f32.mrb[0].mxu0
    %v3420 = vadd.f32 0.0, %v3419
    %v3421 = vpop.f32.mrb[0].mxu0
    %v3422 = vpop.f32.mrb[0].mxu0
    %v3423 = vadd.f32 0.0, %v3422
    %v3424 = vpop.f32.mrb[0].mxu0
    %3425 = vmatprep.mubr.bf16.mxu0 0
    %3426 = vmatmul.mubr.bf16.gmra.mrb[0].mxu0 %v3372
    %v3427 = vpop.f32.mrb[0].mxu0
    %v3428 = vadd.f32 0.0, %v3427
    %v3429 = vpop.f32.mrb[0].mxu0
    %v3430 = vpop.f32.mrb[0].mxu0
    %v3431 = vadd.f32 0.0, %v3430
    %v3432 = vpop.f32.mrb[0].mxu0
    %3433 = vmatprep.mubr.bf16.mxu0 0
    %3434 = vmatmul.mubr.bf16.gmra.mrb[0].mxu0 %v3375
    %v3435 = vpop.f32.mrb[0].mxu0
    %v3436 = vadd.f32 0.0, %v3435
    %v3437 = vpop.f32.mrb[0].mxu0
    %v3438 = vpop.f32.mrb[0].mxu0
    %v3439 = vadd.f32 0.0, %v3438
    %v3440 = vpop.f32.mrb[0].mxu0
    %3441 = vdwg.mxu0
    %v3442 = vsel %vm3345, 2147483647, %v3205
    %v3443 = vsel %vm3346, 2147483647, %v3206
    %v3444 = vsel %vm3347, 2147483647, %v3207
    %v3445 = vsel %vm3348, 2147483647, %v3208
    %v3446 = vsel %vm3349, 2147483647, %v3209
    %v3447 = vsel %vm3350, 2147483647, %v3210
    %v3448 = vsel %vm3351, 2147483647, %v3211
    %v3449 = vsel %vm3352, 2147483647, %v3212
    %v3450 = vsel %vm482, %v3442, 2147483647
    %v3451 = vand.u32 %v3450, 65535
    %v3452 = vshra.s32 %v3450, 16
    %v3453 = vcvt.s32.f32 %v3451
    %v3454 = vcvt.s32.f32 %v3452
    %3455 = vmin.xlane.f32.xlu0 %v3454
    %v3456 = vpop.xlane.xlu0 %3455
    %vm3457 = vcmp.eq.f32.partialorder %v3454, %v3456
    %v3458 = vsel %vm3457, %v3453, inf
    %3459 = vmin.xlane.f32.xlu0 %v3458
    %v3460 = vpop.xlane.xlu0 %3459
    %v3461 = vcvt.f32.s32 %v3460
    %v3462 = vcvt.f32.s32 %v3456
    %v3463 = vshll.u32 %v3462, 16
    %v3464 = vadd.s32 %v3463, %v3461
    %v3465 = vsel %vm482, %v3443, 2147483647
    %v3466 = vand.u32 %v3465, 65535
    %v3467 = vshra.s32 %v3465, 16
    %v3468 = vcvt.s32.f32 %v3466
    %v3469 = vcvt.s32.f32 %v3467
    %3470 = vmin.xlane.f32.xlu0 %v3469
    %v3471 = vpop.xlane.xlu0 %3470
    %vm3472 = vcmp.eq.f32.partialorder %v3469, %v3471
    %v3473 = vsel %vm3472, %v3468, inf
    %3474 = vmin.xlane.f32.xlu0 %v3473
    %v3475 = vpop.xlane.xlu0 %3474
    %v3476 = vcvt.f32.s32 %v3475
    %v3477 = vcvt.f32.s32 %v3471
    %v3478 = vshll.u32 %v3477, 16
    %v3479 = vadd.s32 %v3478, %v3476
    %v3480 = vsel %vm482, %v3444, 2147483647
    %v3481 = vand.u32 %v3480, 65535
    %v3482 = vshra.s32 %v3480, 16
    %v3483 = vcvt.s32.f32 %v3481
    %v3484 = vcvt.s32.f32 %v3482
    %3485 = vmin.xlane.f32.xlu0 %v3484
    %v3486 = vpop.xlane.xlu0 %3485
    %vm3487 = vcmp.eq.f32.partialorder %v3484, %v3486
    %v3488 = vsel %vm3487, %v3483, inf
    %3489 = vmin.xlane.f32.xlu0 %v3488
    %v3490 = vpop.xlane.xlu0 %3489
    %v3491 = vcvt.f32.s32 %v3490
    %v3492 = vcvt.f32.s32 %v3486
    %v3493 = vshll.u32 %v3492, 16
    %v3494 = vadd.s32 %v3493, %v3491
    %v3495 = vsel %vm482, %v3445, 2147483647
    %v3496 = vand.u32 %v3495, 65535
    %v3497 = vshra.s32 %v3495, 16
    %v3498 = vcvt.s32.f32 %v3496
    %v3499 = vcvt.s32.f32 %v3497
    %3500 = vmin.xlane.f32.xlu0 %v3499
    %v3501 = vpop.xlane.xlu0 %3500
    %vm3502 = vcmp.eq.f32.partialorder %v3499, %v3501
    %v3503 = vsel %vm3502, %v3498, inf
    %3504 = vmin.xlane.f32.xlu0 %v3503
    %v3505 = vpop.xlane.xlu0 %3504
    %v3506 = vcvt.f32.s32 %v3505
    %v3507 = vcvt.f32.s32 %v3501
    %v3508 = vshll.u32 %v3507, 16
    %v3509 = vadd.s32 %v3508, %v3506
    %v3510 = vsel %vm482, %v3446, 2147483647
    %v3511 = vand.u32 %v3510, 65535
    %v3512 = vshra.s32 %v3510, 16
    %v3513 = vcvt.s32.f32 %v3511
    %v3514 = vcvt.s32.f32 %v3512
    %3515 = vmin.xlane.f32.xlu0 %v3514
    %v3516 = vpop.xlane.xlu0 %3515
    %vm3517 = vcmp.eq.f32.partialorder %v3514, %v3516
    %v3518 = vsel %vm3517, %v3513, inf
    %3519 = vmin.xlane.f32.xlu0 %v3518
    %v3520 = vpop.xlane.xlu0 %3519
    %v3521 = vcvt.f32.s32 %v3520
    %v3522 = vcvt.f32.s32 %v3516
    %v3523 = vshll.u32 %v3522, 16
    %v3524 = vadd.s32 %v3523, %v3521
    %v3525 = vsel %vm482, %v3447, 2147483647
    %v3526 = vand.u32 %v3525, 65535
    %v3527 = vshra.s32 %v3525, 16
    %v3528 = vcvt.s32.f32 %v3526
    %v3529 = vcvt.s32.f32 %v3527
    %3530 = vmin.xlane.f32.xlu0 %v3529
    %v3531 = vpop.xlane.xlu0 %3530
    %vm3532 = vcmp.eq.f32.partialorder %v3529, %v3531
    %v3533 = vsel %vm3532, %v3528, inf
    %3534 = vmin.xlane.f32.xlu0 %v3533
    %v3535 = vpop.xlane.xlu0 %3534
    %v3536 = vcvt.f32.s32 %v3535
    %v3537 = vcvt.f32.s32 %v3531
    %v3538 = vshll.u32 %v3537, 16
    %v3539 = vadd.s32 %v3538, %v3536
    %v3540 = vsel %vm482, %v3448, 2147483647
    %v3541 = vand.u32 %v3540, 65535
    %v3542 = vshra.s32 %v3540, 16
    %v3543 = vcvt.s32.f32 %v3541
    %v3544 = vcvt.s32.f32 %v3542
    %3545 = vmin.xlane.f32.xlu0 %v3544
    %v3546 = vpop.xlane.xlu0 %3545
    %vm3547 = vcmp.eq.f32.partialorder %v3544, %v3546
    %v3548 = vsel %vm3547, %v3543, inf
    %3549 = vmin.xlane.f32.xlu0 %v3548
    %v3550 = vpop.xlane.xlu0 %3549
    %v3551 = vcvt.f32.s32 %v3550
    %v3552 = vcvt.f32.s32 %v3546
    %v3553 = vshll.u32 %v3552, 16
    %v3554 = vadd.s32 %v3553, %v3551
    %v3555 = vsel %vm482, %v3449, 2147483647
    %v3556 = vand.u32 %v3555, 65535
    %v3557 = vshra.s32 %v3555, 16
    %v3558 = vcvt.s32.f32 %v3556
    %v3559 = vcvt.s32.f32 %v3557
    %3560 = vmin.xlane.f32.xlu0 %v3559
    %v3561 = vpop.xlane.xlu0 %3560
    %vm3562 = vcmp.eq.f32.partialorder %v3559, %v3561
    %v3563 = vsel %vm3562, %v3558, inf
    %3564 = vmin.xlane.f32.xlu0 %v3563
    %v3565 = vpop.xlane.xlu0 %3564
    %v3566 = vcvt.f32.s32 %v3565
    %v3567 = vcvt.f32.s32 %v3561
    %v3568 = vshll.u32 %v3567, 16
    %v3569 = vadd.s32 %v3568, %v3566
    %v3570 = vand.u32 %v3464, 63
    %v3571 = vand.u32 %v3479, 63
    %v3572 = vand.u32 %v3494, 63
    %v3573 = vand.u32 %v3509, 63
    %v3574 = vand.u32 %v3524, 63
    %v3575 = vand.u32 %v3539, 63
    %v3576 = vand.u32 %v3554, 63
    %v3577 = vand.u32 %v3569, 63
    %vm3578 = vcmp.eq.s32.totalorder %v453, %v3570
    %vm3579 = vcmp.eq.s32.totalorder %v453, %v3571
    %vm3580 = vcmp.eq.s32.totalorder %v453, %v3572
    %vm3581 = vcmp.eq.s32.totalorder %v453, %v3573
    %vm3582 = vcmp.eq.s32.totalorder %v453, %v3574
    %vm3583 = vcmp.eq.s32.totalorder %v453, %v3575
    %vm3584 = vcmp.eq.s32.totalorder %v453, %v3576
    %vm3585 = vcmp.eq.s32.totalorder %v453, %v3577
    %v3586 = vsel %vm3578, 1.0, 0.0
    %v3587 = vsel %vm3579, 1.0, 0.0
    %v3588 = vsel %vm3580, 1.0, 0.0
    %v3589 = vsel %vm3581, 1.0, 0.0
    %v3590 = vsel %vm3582, 1.0, 0.0
    %v3591 = vsel %vm3583, 1.0, 0.0
    %v3592 = vsel %vm3584, 1.0, 0.0
    %v3593 = vsel %vm3585, 1.0, 0.0
    %v3594 = vpack.c.bf16 %v3587, %v3586
    %v3595 = vpack.c.bf16 %v3589, %v3588
    %v3596 = vpack.c.bf16 %v3591, %v3590
    %v3597 = vpack.c.bf16 %v3593, %v3592
    %v3599 = vsel %vm482, %v3594, 0
    %v3602 = vsel %vm482, %v3595, 0
    %v3605 = vsel %vm482, %v3596, 0
    %v3608 = vsel %vm482, %v3597, 0
    %3610 = vmatprep.subr.bf16.mxu0 0
    %3611 = vmatpush1.bf16.msra.mxu0 %v3213
    %3612 = vmatprep.subr.bf16.mxu0 0
    %3613 = vmatpush1.bf16.msra.mxu0 %v3214
    %3614 = vmatprep.subr.bf16.mxu0 0
    %3615 = vmatpush1.bf16.msra.mxu0 %v3215
    %3616 = vmatprep.subr.bf16.mxu0 0
    %3617 = vmatpush1.bf16.msra.mxu0 %v3216
    %3618 = vmatprep.subr.bf16.mxu0 0
    %3619 = vmatpush1.bf16.msra.mxu0 0
    %3620 = vmatprep.subr.bf16.mxu0 0
    %3621 = vmatpush1.bf16.msra.mxu0 0
    %3622 = vmatprep.subr.bf16.mxu0 0
    %3623 = vmatpush1.bf16.msra.mxu0 0
    %3624 = vmatprep.subr.bf16.mxu0 0
    %3625 = vmatpush1.bf16.msra.mxu0 0
    %3626 = vmatprep.subr.bf16.mxu0 0
    %3627 = vmatpush1.bf16.msra.mxu0 0
    %3628 = vmatprep.subr.bf16.mxu0 0
    %3629 = vmatpush1.bf16.msra.mxu0 0
    %3630 = vmatprep.subr.bf16.mxu0 0
    %3631 = vmatpush1.bf16.msra.mxu0 0
    %3632 = vmatprep.subr.bf16.mxu0 0
    %3633 = vmatpush1.bf16.msra.mxu0 0
    %3634 = vmatprep.subr.bf16.mxu0 0
    %3635 = vmatpush1.bf16.msra.mxu0 0
    %3636 = vmatprep.subr.bf16.mxu0 0
    %3637 = vmatpush1.bf16.msra.mxu0 0
    %3638 = vmatprep.subr.bf16.mxu0 0
    %3639 = vmatpush1.bf16.msra.mxu0 0
    %3640 = vmatprep.subr.bf16.mxu0 0
    %3641 = vmatpush1.bf16.msra.mxu0 0
    %3642 = vmatprep.mubr.bf16.mxu0 0
    %3643 = vmatmul.mubr.bf16.gmra.mrb[0].mxu0 %v3599
    %v3644 = vpop.f32.mrb[0].mxu0
    %v3645 = vadd.f32 0.0, %v3644
    %v3646 = vpop.f32.mrb[0].mxu0
    %v3647 = vpop.f32.mrb[0].mxu0
    %v3648 = vadd.f32 0.0, %v3647
    %v3649 = vpop.f32.mrb[0].mxu0
    %3650 = vmatprep.mubr.bf16.mxu0 0
    %3651 = vmatmul.mubr.bf16.gmra.mrb[0].mxu0 %v3602
    %v3652 = vpop.f32.mrb[0].mxu0
    %v3653 = vadd.f32 0.0, %v3652
    %v3654 = vpop.f32.mrb[0].mxu0
    %v3655 = vpop.f32.mrb[0].mxu0
    %v3656 = vadd.f32 0.0, %v3655
    %v3657 = vpop.f32.mrb[0].mxu0
    %3658 = vmatprep.mubr.bf16.mxu0 0
    %3659 = vmatmul.mubr.bf16.gmra.mrb[0].mxu0 %v3605
    %v3660 = vpop.f32.mrb[0].mxu0
    %v3661 = vadd.f32 0.0, %v3660
    %v3662 = vpop.f32.mrb[0].mxu0
    %v3663 = vpop.f32.mrb[0].mxu0
    %v3664 = vadd.f32 0.0, %v3663
    %v3665 = vpop.f32.mrb[0].mxu0
    %3666 = vmatprep.mubr.bf16.mxu0 0
    %3667 = vmatmul.mubr.bf16.gmra.mrb[0].mxu0 %v3608
    %v3668 = vpop.f32.mrb[0].mxu0
    %v3669 = vadd.f32 0.0, %v3668
    %v3670 = vpop.f32.mrb[0].mxu0
    %v3671 = vpop.f32.mrb[0].mxu0
    %v3672 = vadd.f32 0.0, %v3671
    %v3673 = vpop.f32.mrb[0].mxu0
    %3674 = vdwg.mxu0
    %v3675 = vmax.f32 %v3412, %v3645
    %v3676 = vmax.f32 %v3415, %v3648
    %v3677 = vmax.f32 %v3420, %v3653
    %v3678 = vmax.f32 %v3423, %v3656
    %v3679 = vmax.f32 %v3428, %v3661
    %v3680 = vmax.f32 %v3431, %v3664
    %v3681 = vmax.f32 %v3436, %v3669
    %v3682 = vmax.f32 %v3439, %v3672
    %v3683 = vsel %vm3578, 2147483647, %v3442
    %v3684 = vsel %vm3579, 2147483647, %v3443
    %v3685 = vsel %vm3580, 2147483647, %v3444
    %v3686 = vsel %vm3581, 2147483647, %v3445
    %v3687 = vsel %vm3582, 2147483647, %v3446
    %v3688 = vsel %vm3583, 2147483647, %v3447
    %v3689 = vsel %vm3584, 2147483647, %v3448
    %v3690 = vsel %vm3585, 2147483647, %v3449
    %v3691 = vsel %vm482, %v3683, 2147483647
    %v3692 = vand.u32 %v3691, 65535
    %v3693 = vshra.s32 %v3691, 16
    %v3694 = vcvt.s32.f32 %v3692
    %v3695 = vcvt.s32.f32 %v3693
    %3696 = vmin.xlane.f32.xlu0 %v3695
    %v3697 = vpop.xlane.xlu0 %3696
    %vm3698 = vcmp.eq.f32.partialorder %v3695, %v3697
    %v3699 = vsel %vm3698, %v3694, inf
    %3700 = vmin.xlane.f32.xlu0 %v3699
    %v3701 = vpop.xlane.xlu0 %3700
    %v3702 = vcvt.f32.s32 %v3701
    %v3703 = vcvt.f32.s32 %v3697
    %v3704 = vshll.u32 %v3703, 16
    %v3705 = vadd.s32 %v3704, %v3702
    %v3706 = vsel %vm482, %v3684, 2147483647
    %v3707 = vand.u32 %v3706, 65535
    %v3708 = vshra.s32 %v3706, 16
    %v3709 = vcvt.s32.f32 %v3707
    %v3710 = vcvt.s32.f32 %v3708
    %3711 = vmin.xlane.f32.xlu0 %v3710
    %v3712 = vpop.xlane.xlu0 %3711
    %vm3713 = vcmp.eq.f32.partialorder %v3710, %v3712
    %v3714 = vsel %vm3713, %v3709, inf
    %3715 = vmin.xlane.f32.xlu0 %v3714
    %v3716 = vpop.xlane.xlu0 %3715
    %v3717 = vcvt.f32.s32 %v3716
    %v3718 = vcvt.f32.s32 %v3712
    %v3719 = vshll.u32 %v3718, 16
    %v3720 = vadd.s32 %v3719, %v3717
    %v3721 = vsel %vm482, %v3685, 2147483647
    %v3722 = vand.u32 %v3721, 65535
    %v3723 = vshra.s32 %v3721, 16
    %v3724 = vcvt.s32.f32 %v3722
    %v3725 = vcvt.s32.f32 %v3723
    %3726 = vmin.xlane.f32.xlu0 %v3725
    %v3727 = vpop.xlane.xlu0 %3726
    %vm3728 = vcmp.eq.f32.partialorder %v3725, %v3727
    %v3729 = vsel %vm3728, %v3724, inf
    %3730 = vmin.xlane.f32.xlu0 %v3729
    %v3731 = vpop.xlane.xlu0 %3730
    %v3732 = vcvt.f32.s32 %v3731
    %v3733 = vcvt.f32.s32 %v3727
    %v3734 = vshll.u32 %v3733, 16
    %v3735 = vadd.s32 %v3734, %v3732
    %v3736 = vsel %vm482, %v3686, 2147483647
    %v3737 = vand.u32 %v3736, 65535
    %v3738 = vshra.s32 %v3736, 16
    %v3739 = vcvt.s32.f32 %v3737
    %v3740 = vcvt.s32.f32 %v3738
    %3741 = vmin.xlane.f32.xlu0 %v3740
    %v3742 = vpop.xlane.xlu0 %3741
    %vm3743 = vcmp.eq.f32.partialorder %v3740, %v3742
    %v3744 = vsel %vm3743, %v3739, inf
    %3745 = vmin.xlane.f32.xlu0 %v3744
    %v3746 = vpop.xlane.xlu0 %3745
    %v3747 = vcvt.f32.s32 %v3746
    %v3748 = vcvt.f32.s32 %v3742
    %v3749 = vshll.u32 %v3748, 16
    %v3750 = vadd.s32 %v3749, %v3747
    %v3751 = vsel %vm482, %v3687, 2147483647
    %v3752 = vand.u32 %v3751, 65535
    %v3753 = vshra.s32 %v3751, 16
    %v3754 = vcvt.s32.f32 %v3752
    %v3755 = vcvt.s32.f32 %v3753
    %3756 = vmin.xlane.f32.xlu0 %v3755
    %v3757 = vpop.xlane.xlu0 %3756
    %vm3758 = vcmp.eq.f32.partialorder %v3755, %v3757
    %v3759 = vsel %vm3758, %v3754, inf
    %3760 = vmin.xlane.f32.xlu0 %v3759
    %v3761 = vpop.xlane.xlu0 %3760
    %v3762 = vcvt.f32.s32 %v3761
    %v3763 = vcvt.f32.s32 %v3757
    %v3764 = vshll.u32 %v3763, 16
    %v3765 = vadd.s32 %v3764, %v3762
    %v3766 = vsel %vm482, %v3688, 2147483647
    %v3767 = vand.u32 %v3766, 65535
    %v3768 = vshra.s32 %v3766, 16
    %v3769 = vcvt.s32.f32 %v3767
    %v3770 = vcvt.s32.f32 %v3768
    %3771 = vmin.xlane.f32.xlu0 %v3770
    %v3772 = vpop.xlane.xlu0 %3771
    %vm3773 = vcmp.eq.f32.partialorder %v3770, %v3772
    %v3774 = vsel %vm3773, %v3769, inf
    %3775 = vmin.xlane.f32.xlu0 %v3774
    %v3776 = vpop.xlane.xlu0 %3775
    %v3777 = vcvt.f32.s32 %v3776
    %v3778 = vcvt.f32.s32 %v3772
    %v3779 = vshll.u32 %v3778, 16
    %v3780 = vadd.s32 %v3779, %v3777
    %v3781 = vsel %vm482, %v3689, 2147483647
    %v3782 = vand.u32 %v3781, 65535
    %v3783 = vshra.s32 %v3781, 16
    %v3784 = vcvt.s32.f32 %v3782
    %v3785 = vcvt.s32.f32 %v3783
    %3786 = vmin.xlane.f32.xlu0 %v3785
    %v3787 = vpop.xlane.xlu0 %3786
    %vm3788 = vcmp.eq.f32.partialorder %v3785, %v3787
    %v3789 = vsel %vm3788, %v3784, inf
    %3790 = vmin.xlane.f32.xlu0 %v3789
    %v3791 = vpop.xlane.xlu0 %3790
    %v3792 = vcvt.f32.s32 %v3791
    %v3793 = vcvt.f32.s32 %v3787
    %v3794 = vshll.u32 %v3793, 16
    %v3795 = vadd.s32 %v3794, %v3792
    %v3796 = vsel %vm482, %v3690, 2147483647
    %v3797 = vand.u32 %v3796, 65535
    %v3798 = vshra.s32 %v3796, 16
    %v3799 = vcvt.s32.f32 %v3797
    %v3800 = vcvt.s32.f32 %v3798
    %3801 = vmin.xlane.f32.xlu0 %v3800
    %v3802 = vpop.xlane.xlu0 %3801
    %vm3803 = vcmp.eq.f32.partialorder %v3800, %v3802
    %v3804 = vsel %vm3803, %v3799, inf
    %3805 = vmin.xlane.f32.xlu0 %v3804
    %v3806 = vpop.xlane.xlu0 %3805
    %v3807 = vcvt.f32.s32 %v3806
    %v3808 = vcvt.f32.s32 %v3802
    %v3809 = vshll.u32 %v3808, 16
    %v3810 = vadd.s32 %v3809, %v3807
    %v3811 = vand.u32 %v3705, 63
    %v3812 = vand.u32 %v3720, 63
    %v3813 = vand.u32 %v3735, 63
    %v3814 = vand.u32 %v3750, 63
    %v3815 = vand.u32 %v3765, 63
    %v3816 = vand.u32 %v3780, 63
    %v3817 = vand.u32 %v3795, 63
    %v3818 = vand.u32 %v3810, 63
    %vm3819 = vcmp.eq.s32.totalorder %v453, %v3811
    %vm3820 = vcmp.eq.s32.totalorder %v453, %v3812
    %vm3821 = vcmp.eq.s32.totalorder %v453, %v3813
    %vm3822 = vcmp.eq.s32.totalorder %v453, %v3814
    %vm3823 = vcmp.eq.s32.totalorder %v453, %v3815
    %vm3824 = vcmp.eq.s32.totalorder %v453, %v3816
    %vm3825 = vcmp.eq.s32.totalorder %v453, %v3817
    %vm3826 = vcmp.eq.s32.totalorder %v453, %v3818
    %v3827 = vsel %vm3819, 1.0, 0.0
    %v3828 = vsel %vm3820, 1.0, 0.0
    %v3829 = vsel %vm3821, 1.0, 0.0
    %v3830 = vsel %vm3822, 1.0, 0.0
    %v3831 = vsel %vm3823, 1.0, 0.0
    %v3832 = vsel %vm3824, 1.0, 0.0
    %v3833 = vsel %vm3825, 1.0, 0.0
    %v3834 = vsel %vm3826, 1.0, 0.0
    %v3835 = vpack.c.bf16 %v3828, %v3827
    %v3836 = vpack.c.bf16 %v3830, %v3829
    %v3837 = vpack.c.bf16 %v3832, %v3831
    %v3838 = vpack.c.bf16 %v3834, %v3833
    %v3840 = vsel %vm482, %v3835, 0
    %v3843 = vsel %vm482, %v3836, 0
    %v3846 = vsel %vm482, %v3837, 0
    %v3849 = vsel %vm482, %v3838, 0
    %3851 = vmatprep.subr.bf16.mxu0 0
    %3852 = vmatpush1.bf16.msra.mxu0 %v3213
    %3853 = vmatprep.subr.bf16.mxu0 0
    %3854 = vmatpush1.bf16.msra.mxu0 %v3214
    %3855 = vmatprep.subr.bf16.mxu0 0
    %3856 = vmatpush1.bf16.msra.mxu0 %v3215
    %3857 = vmatprep.subr.bf16.mxu0 0
    %3858 = vmatpush1.bf16.msra.mxu0 %v3216
    %3859 = vmatprep.subr.bf16.mxu0 0
    %3860 = vmatpush1.bf16.msra.mxu0 0
    %3861 = vmatprep.subr.bf16.mxu0 0
    %3862 = vmatpush1.bf16.msra.mxu0 0
    %3863 = vmatprep.subr.bf16.mxu0 0
    %3864 = vmatpush1.bf16.msra.mxu0 0
    %3865 = vmatprep.subr.bf16.mxu0 0
    %3866 = vmatpush1.bf16.msra.mxu0 0
    %3867 = vmatprep.subr.bf16.mxu0 0
    %3868 = vmatpush1.bf16.msra.mxu0 0
    %3869 = vmatprep.subr.bf16.mxu0 0
    %3870 = vmatpush1.bf16.msra.mxu0 0
    %3871 = vmatprep.subr.bf16.mxu0 0
    %3872 = vmatpush1.bf16.msra.mxu0 0
    %3873 = vmatprep.subr.bf16.mxu0 0
    %3874 = vmatpush1.bf16.msra.mxu0 0
    %3875 = vmatprep.subr.bf16.mxu0 0
    %3876 = vmatpush1.bf16.msra.mxu0 0
    %3877 = vmatprep.subr.bf16.mxu0 0
    %3878 = vmatpush1.bf16.msra.mxu0 0
    %3879 = vmatprep.subr.bf16.mxu0 0
    %3880 = vmatpush1.bf16.msra.mxu0 0
    %3881 = vmatprep.subr.bf16.mxu0 0
    %3882 = vmatpush1.bf16.msra.mxu0 0
    %3883 = vmatprep.mubr.bf16.mxu0 0
    %3884 = vmatmul.mubr.bf16.gmra.mrb[0].mxu0 %v3840
    %v3885 = vpop.f32.mrb[0].mxu0
    %v3886 = vadd.f32 0.0, %v3885
    %v3887 = vpop.f32.mrb[0].mxu0
    %v3888 = vpop.f32.mrb[0].mxu0
    %v3889 = vadd.f32 0.0, %v3888
    %v3890 = vpop.f32.mrb[0].mxu0
    %3891 = vmatprep.mubr.bf16.mxu0 0
    %3892 = vmatmul.mubr.bf16.gmra.mrb[0].mxu0 %v3843
    %v3893 = vpop.f32.mrb[0].mxu0
    %v3894 = vadd.f32 0.0, %v3893
    %v3895 = vpop.f32.mrb[0].mxu0
    %v3896 = vpop.f32.mrb[0].mxu0
    %v3897 = vadd.f32 0.0, %v3896
    %v3898 = vpop.f32.mrb[0].mxu0
    %3899 = vmatprep.mubr.bf16.mxu0 0
    %3900 = vmatmul.mubr.bf16.gmra.mrb[0].mxu0 %v3846
    %v3901 = vpop.f32.mrb[0].mxu0
    %v3902 = vadd.f32 0.0, %v3901
    %v3903 = vpop.f32.mrb[0].mxu0
    %v3904 = vpop.f32.mrb[0].mxu0
    %v3905 = vadd.f32 0.0, %v3904
    %v3906 = vpop.f32.mrb[0].mxu0
    %3907 = vmatprep.mubr.bf16.mxu0 0
    %3908 = vmatmul.mubr.bf16.gmra.mrb[0].mxu0 %v3849
    %v3909 = vpop.f32.mrb[0].mxu0
    %v3910 = vadd.f32 0.0, %v3909
    %v3911 = vpop.f32.mrb[0].mxu0
    %v3912 = vpop.f32.mrb[0].mxu0
    %v3913 = vadd.f32 0.0, %v3912
    %v3914 = vpop.f32.mrb[0].mxu0
    %3915 = vdwg.mxu0
    %v3916 = vmax.f32 %v3675, %v3886
    %v3917 = vmax.f32 %v3676, %v3889
    %v3918 = vmax.f32 %v3677, %v3894
    %v3919 = vmax.f32 %v3678, %v3897
    %v3920 = vmax.f32 %v3679, %v3902
    %v3921 = vmax.f32 %v3680, %v3905
    %v3922 = vmax.f32 %v3681, %v3910
    %v3923 = vmax.f32 %v3682, %v3913
    %v3924 = vsel %vm3819, 2147483647, %v3683
    %v3925 = vsel %vm3820, 2147483647, %v3684
    %v3926 = vsel %vm3821, 2147483647, %v3685
    %v3927 = vsel %vm3822, 2147483647, %v3686
    %v3928 = vsel %vm3823, 2147483647, %v3687
    %v3929 = vsel %vm3824, 2147483647, %v3688
    %v3930 = vsel %vm3825, 2147483647, %v3689
    %v3931 = vsel %vm3826, 2147483647, %v3690
    %v3932 = vsel %vm482, %v3924, 2147483647
    %v3933 = vand.u32 %v3932, 65535
    %v3934 = vshra.s32 %v3932, 16
    %v3935 = vcvt.s32.f32 %v3933
    %v3936 = vcvt.s32.f32 %v3934
    %3937 = vmin.xlane.f32.xlu0 %v3936
    %v3938 = vpop.xlane.xlu0 %3937
    %vm3939 = vcmp.eq.f32.partialorder %v3936, %v3938
    %v3940 = vsel %vm3939, %v3935, inf
    %3941 = vmin.xlane.f32.xlu0 %v3940
    %v3942 = vpop.xlane.xlu0 %3941
    %v3943 = vcvt.f32.s32 %v3942
    %v3944 = vcvt.f32.s32 %v3938
    %v3945 = vshll.u32 %v3944, 16
    %v3946 = vadd.s32 %v3945, %v3943
    %v3947 = vsel %vm482, %v3925, 2147483647
    %v3948 = vand.u32 %v3947, 65535
    %v3949 = vshra.s32 %v3947, 16
    %v3950 = vcvt.s32.f32 %v3948
    %v3951 = vcvt.s32.f32 %v3949
    %3952 = vmin.xlane.f32.xlu0 %v3951
    %v3953 = vpop.xlane.xlu0 %3952
    %vm3954 = vcmp.eq.f32.partialorder %v3951, %v3953
    %v3955 = vsel %vm3954, %v3950, inf
    %3956 = vmin.xlane.f32.xlu0 %v3955
    %v3957 = vpop.xlane.xlu0 %3956
    %v3958 = vcvt.f32.s32 %v3957
    %v3959 = vcvt.f32.s32 %v3953
    %v3960 = vshll.u32 %v3959, 16
    %v3961 = vadd.s32 %v3960, %v3958
    %v3962 = vsel %vm482, %v3926, 2147483647
    %v3963 = vand.u32 %v3962, 65535
    %v3964 = vshra.s32 %v3962, 16
    %v3965 = vcvt.s32.f32 %v3963
    %v3966 = vcvt.s32.f32 %v3964
    %3967 = vmin.xlane.f32.xlu0 %v3966
    %v3968 = vpop.xlane.xlu0 %3967
    %vm3969 = vcmp.eq.f32.partialorder %v3966, %v3968
    %v3970 = vsel %vm3969, %v3965, inf
    %3971 = vmin.xlane.f32.xlu0 %v3970
    %v3972 = vpop.xlane.xlu0 %3971
    %v3973 = vcvt.f32.s32 %v3972
    %v3974 = vcvt.f32.s32 %v3968
    %v3975 = vshll.u32 %v3974, 16
    %v3976 = vadd.s32 %v3975, %v3973
    %v3977 = vsel %vm482, %v3927, 2147483647
    %v3978 = vand.u32 %v3977, 65535
    %v3979 = vshra.s32 %v3977, 16
    %v3980 = vcvt.s32.f32 %v3978
    %v3981 = vcvt.s32.f32 %v3979
    %3982 = vmin.xlane.f32.xlu0 %v3981
    %v3983 = vpop.xlane.xlu0 %3982
    %vm3984 = vcmp.eq.f32.partialorder %v3981, %v3983
    %v3985 = vsel %vm3984, %v3980, inf
    %3986 = vmin.xlane.f32.xlu0 %v3985
    %v3987 = vpop.xlane.xlu0 %3986
    %v3988 = vcvt.f32.s32 %v3987
    %v3989 = vcvt.f32.s32 %v3983
    %v3990 = vshll.u32 %v3989, 16
    %v3991 = vadd.s32 %v3990, %v3988
    %v3992 = vsel %vm482, %v3928, 2147483647
    %v3993 = vand.u32 %v3992, 65535
    %v3994 = vshra.s32 %v3992, 16
    %v3995 = vcvt.s32.f32 %v3993
    %v3996 = vcvt.s32.f32 %v3994
    %3997 = vmin.xlane.f32.xlu0 %v3996
    %v3998 = vpop.xlane.xlu0 %3997
    %vm3999 = vcmp.eq.f32.partialorder %v3996, %v3998
    %v4000 = vsel %vm3999, %v3995, inf
    %4001 = vmin.xlane.f32.xlu0 %v4000
    %v4002 = vpop.xlane.xlu0 %4001
    %v4003 = vcvt.f32.s32 %v4002
    %v4004 = vcvt.f32.s32 %v3998
    %v4005 = vshll.u32 %v4004, 16
    %v4006 = vadd.s32 %v4005, %v4003
    %v4007 = vsel %vm482, %v3929, 2147483647
    %v4008 = vand.u32 %v4007, 65535
    %v4009 = vshra.s32 %v4007, 16
    %v4010 = vcvt.s32.f32 %v4008
    %v4011 = vcvt.s32.f32 %v4009
    %4012 = vmin.xlane.f32.xlu0 %v4011
    %v4013 = vpop.xlane.xlu0 %4012
    %vm4014 = vcmp.eq.f32.partialorder %v4011, %v4013
    %v4015 = vsel %vm4014, %v4010, inf
    %4016 = vmin.xlane.f32.xlu0 %v4015
    %v4017 = vpop.xlane.xlu0 %4016
    %v4018 = vcvt.f32.s32 %v4017
    %v4019 = vcvt.f32.s32 %v4013
    %v4020 = vshll.u32 %v4019, 16
    %v4021 = vadd.s32 %v4020, %v4018
    %v4022 = vsel %vm482, %v3930, 2147483647
    %v4023 = vand.u32 %v4022, 65535
    %v4024 = vshra.s32 %v4022, 16
    %v4025 = vcvt.s32.f32 %v4023
    %v4026 = vcvt.s32.f32 %v4024
    %4027 = vmin.xlane.f32.xlu0 %v4026
    %v4028 = vpop.xlane.xlu0 %4027
    %vm4029 = vcmp.eq.f32.partialorder %v4026, %v4028
    %v4030 = vsel %vm4029, %v4025, inf
    %4031 = vmin.xlane.f32.xlu0 %v4030
    %v4032 = vpop.xlane.xlu0 %4031
    %v4033 = vcvt.f32.s32 %v4032
    %v4034 = vcvt.f32.s32 %v4028
    %v4035 = vshll.u32 %v4034, 16
    %v4036 = vadd.s32 %v4035, %v4033
    %v4037 = vsel %vm482, %v3931, 2147483647
    %v4038 = vand.u32 %v4037, 65535
    %v4039 = vshra.s32 %v4037, 16
    %v4040 = vcvt.s32.f32 %v4038
    %v4041 = vcvt.s32.f32 %v4039
    %4042 = vmin.xlane.f32.xlu0 %v4041
    %v4043 = vpop.xlane.xlu0 %4042
    %vm4044 = vcmp.eq.f32.partialorder %v4041, %v4043
    %v4045 = vsel %vm4044, %v4040, inf
    %4046 = vmin.xlane.f32.xlu0 %v4045
    %v4047 = vpop.xlane.xlu0 %4046
    %v4048 = vcvt.f32.s32 %v4047
    %v4049 = vcvt.f32.s32 %v4043
    %v4050 = vshll.u32 %v4049, 16
    %v4051 = vadd.s32 %v4050, %v4048
    %v4052 = vand.u32 %v3946, 63
    %v4053 = vand.u32 %v3961, 63
    %v4054 = vand.u32 %v3976, 63
    %v4055 = vand.u32 %v3991, 63
    %v4056 = vand.u32 %v4006, 63
    %v4057 = vand.u32 %v4021, 63
    %v4058 = vand.u32 %v4036, 63
    %v4059 = vand.u32 %v4051, 63
    %vm4060 = vcmp.eq.s32.totalorder %v453, %v4052
    %vm4061 = vcmp.eq.s32.totalorder %v453, %v4053
    %vm4062 = vcmp.eq.s32.totalorder %v453, %v4054
    %vm4063 = vcmp.eq.s32.totalorder %v453, %v4055
    %vm4064 = vcmp.eq.s32.totalorder %v453, %v4056
    %vm4065 = vcmp.eq.s32.totalorder %v453, %v4057
    %vm4066 = vcmp.eq.s32.totalorder %v453, %v4058
    %vm4067 = vcmp.eq.s32.totalorder %v453, %v4059
    %v4068 = vsel %vm4060, 1.0, 0.0
    %v4069 = vsel %vm4061, 1.0, 0.0
    %v4070 = vsel %vm4062, 1.0, 0.0
    %v4071 = vsel %vm4063, 1.0, 0.0
    %v4072 = vsel %vm4064, 1.0, 0.0
    %v4073 = vsel %vm4065, 1.0, 0.0
    %v4074 = vsel %vm4066, 1.0, 0.0
    %v4075 = vsel %vm4067, 1.0, 0.0
    %v4076 = vpack.c.bf16 %v4069, %v4068
    %v4077 = vpack.c.bf16 %v4071, %v4070
    %v4078 = vpack.c.bf16 %v4073, %v4072
    %v4079 = vpack.c.bf16 %v4075, %v4074
    %v4081 = vsel %vm482, %v4076, 0
    %v4084 = vsel %vm482, %v4077, 0
    %v4087 = vsel %vm482, %v4078, 0
    %v4090 = vsel %vm482, %v4079, 0
    %4092 = vmatprep.subr.bf16.mxu0 0
    %4093 = vmatpush1.bf16.msra.mxu0 %v3213
    %4094 = vmatprep.subr.bf16.mxu0 0
    %4095 = vmatpush1.bf16.msra.mxu0 %v3214
    %4096 = vmatprep.subr.bf16.mxu0 0
    %4097 = vmatpush1.bf16.msra.mxu0 %v3215
    %4098 = vmatprep.subr.bf16.mxu0 0
    %4099 = vmatpush1.bf16.msra.mxu0 %v3216
    %4100 = vmatprep.subr.bf16.mxu0 0
    %4101 = vmatpush1.bf16.msra.mxu0 0
    %4102 = vmatprep.subr.bf16.mxu0 0
    %4103 = vmatpush1.bf16.msra.mxu0 0
    %4104 = vmatprep.subr.bf16.mxu0 0
    %4105 = vmatpush1.bf16.msra.mxu0 0
    %4106 = vmatprep.subr.bf16.mxu0 0
    %4107 = vmatpush1.bf16.msra.mxu0 0
    %4108 = vmatprep.subr.bf16.mxu0 0
    %4109 = vmatpush1.bf16.msra.mxu0 0
    %4110 = vmatprep.subr.bf16.mxu0 0
    %4111 = vmatpush1.bf16.msra.mxu0 0
    %4112 = vmatprep.subr.bf16.mxu0 0
    %4113 = vmatpush1.bf16.msra.mxu0 0
    %4114 = vmatprep.subr.bf16.mxu0 0
    %4115 = vmatpush1.bf16.msra.mxu0 0
    %4116 = vmatprep.subr.bf16.mxu0 0
    %4117 = vmatpush1.bf16.msra.mxu0 0
    %4118 = vmatprep.subr.bf16.mxu0 0
    %4119 = vmatpush1.bf16.msra.mxu0 0
    %4120 = vmatprep.subr.bf16.mxu0 0
    %4121 = vmatpush1.bf16.msra.mxu0 0
    %4122 = vmatprep.subr.bf16.mxu0 0
    %4123 = vmatpush1.bf16.msra.mxu0 0
    %4124 = vmatprep.mubr.bf16.mxu0 0
    %4125 = vmatmul.mubr.bf16.gmra.mrb[0].mxu0 %v4081
    %v4126 = vpop.f32.mrb[0].mxu0
    %v4127 = vadd.f32 0.0, %v4126
    %v4128 = vpop.f32.mrb[0].mxu0
    %v4129 = vpop.f32.mrb[0].mxu0
    %v4130 = vadd.f32 0.0, %v4129
    %v4131 = vpop.f32.mrb[0].mxu0
    %4132 = vmatprep.mubr.bf16.mxu0 0
    %4133 = vmatmul.mubr.bf16.gmra.mrb[0].mxu0 %v4084
    %v4134 = vpop.f32.mrb[0].mxu0
    %v4135 = vadd.f32 0.0, %v4134
    %v4136 = vpop.f32.mrb[0].mxu0
    %v4137 = vpop.f32.mrb[0].mxu0
    %v4138 = vadd.f32 0.0, %v4137
    %v4139 = vpop.f32.mrb[0].mxu0
    %4140 = vmatprep.mubr.bf16.mxu0 0
    %4141 = vmatmul.mubr.bf16.gmra.mrb[0].mxu0 %v4087
    %v4142 = vpop.f32.mrb[0].mxu0
    %v4143 = vadd.f32 0.0, %v4142
    %v4144 = vpop.f32.mrb[0].mxu0
    %v4145 = vpop.f32.mrb[0].mxu0
    %v4146 = vadd.f32 0.0, %v4145
    %v4147 = vpop.f32.mrb[0].mxu0
    %4148 = vmatprep.mubr.bf16.mxu0 0
    %4149 = vmatmul.mubr.bf16.gmra.mrb[0].mxu0 %v4090
    %v4150 = vpop.f32.mrb[0].mxu0
    %v4151 = vadd.f32 0.0, %v4150
    %v4152 = vpop.f32.mrb[0].mxu0
    %v4153 = vpop.f32.mrb[0].mxu0
    %v4154 = vadd.f32 0.0, %v4153
    %v4155 = vpop.f32.mrb[0].mxu0
    %4156 = vdwg.mxu0
    %v4157 = vmax.f32 %v3916, %v4127
    %v4158 = vmax.f32 %v3917, %v4130
    %v4159 = vmax.f32 %v3918, %v4135
    %v4160 = vmax.f32 %v3919, %v4138
    %v4161 = vmax.f32 %v3920, %v4143
    %v4162 = vmax.f32 %v3921, %v4146
    %v4163 = vmax.f32 %v3922, %v4151
    %v4164 = vmax.f32 %v3923, %v4154
    %v4165 = vsub.f32 %v3181, %v3133
    %v4166 = vsub.f32 %v3182, %v3139
    %v4167 = vsub.f32 %v3183, %v3145
    %v4168 = vsub.f32 %v3184, %v3151
    %v4169 = vsub.f32 %v3185, %v3157
    %v4170 = vsub.f32 %v3186, %v3163
    %v4171 = vsub.f32 %v3187, %v3169
    %v4172 = vsub.f32 %v3188, %v3175
    %v4173 = vadd.f32 %v4165, %v4157
    %v4174 = vadd.f32 %v4166, %v4158
    %v4175 = vadd.f32 %v4167, %v4159
    %v4176 = vadd.f32 %v4168, %v4160
    %v4177 = vadd.f32 %v4169, %v4161
    %v4178 = vadd.f32 %v4170, %v4162
    %v4179 = vadd.f32 %v4171, %v4163
    %v4180 = vadd.f32 %v4172, %v4164
    %vm4181 = vcmp.ge.f32.partialorder %v4173, 0.0
    %vm4182 = vcmp.ge.f32.partialorder %v4174, 0.0
    %vm4183 = vcmp.ge.f32.partialorder %v4175, 0.0
    %vm4184 = vcmp.ge.f32.partialorder %v4176, 0.0
    %vm4185 = vcmp.ge.f32.partialorder %v4177, 0.0
    %vm4186 = vcmp.ge.f32.partialorder %v4178, 0.0
    %vm4187 = vcmp.ge.f32.partialorder %v4179, 0.0
    %vm4188 = vcmp.ge.f32.partialorder %v4180, 0.0
    %v4189 = vmul.f32 %v4173, 0.2
    %v4190 = vmul.f32 %v4174, 0.2
    %v4191 = vmul.f32 %v4175, 0.2
    %v4192 = vmul.f32 %v4176, 0.2
    %v4193 = vmul.f32 %v4177, 0.2
    %v4194 = vmul.f32 %v4178, 0.2
    %v4195 = vmul.f32 %v4179, 0.2
    %v4196 = vmul.f32 %v4180, 0.2
    %v4197 = vsel %vm4181, %v4173, %v4189
    %v4198 = vsel %vm4182, %v4174, %v4190
    %v4199 = vsel %vm4183, %v4175, %v4191
    %v4200 = vsel %vm4184, %v4176, %v4192
    %v4201 = vsel %vm4185, %v4177, %v4193
    %v4202 = vsel %vm4186, %v4178, %v4194
    %v4203 = vsel %vm4187, %v4179, %v4195
    %v4204 = vsel %vm4188, %v4180, %v4196
    %v4205 = vlaneseq
    %v4206 = vshrl.u32 %v4205, 7
    %v4207 = vsub.s32 1, %v4206
    %v4208 = vrot.slane %v2894, %v4207
    %v4209 = vmul.f32 %v4197, %v4208
    %v4210 = vmul.f32 %v4198, %v4208
    %v4211 = vmul.f32 %v4199, %v4208
    %v4212 = vmul.f32 %v4200, %v4208
    %v4213 = vmul.f32 %v4201, %v4208
    %v4214 = vmul.f32 %v4202, %v4208
    %v4215 = vmul.f32 %v4203, %v4208
    %v4216 = vmul.f32 %v4204, %v4208
    %v4217 = vlaneseq
    %v4218 = vshrl.u32 %v4217, 7
    %v4219 = vsub.s32 2, %v4218
    %v4220 = vrot.slane %v2894, %v4219
    %v4221 = vadd.f32 %v4209, %v4220
    %v4222 = vadd.f32 %v4210, %v4220
    %v4223 = vadd.f32 %v4211, %v4220
    %v4224 = vadd.f32 %v4212, %v4220
    %v4225 = vadd.f32 %v4213, %v4220
    %v4226 = vadd.f32 %v4214, %v4220
    %v4227 = vadd.f32 %v4215, %v4220
    %v4228 = vadd.f32 %v4216, %v4220
    %4229 = vst [vmem:[#allocation14] sm:$0xff] %v4221
    %4230 = vst [vmem:[#allocation14 + $0x8] sm:$0xff] %v4222
    %4231 = vst [vmem:[#allocation14 + $0x10] sm:$0xff] %v4223
    %4232 = vst [vmem:[#allocation14 + $0x18] sm:$0xff] %v4224
    %4233 = vst [vmem:[#allocation14 + $0x20] sm:$0xff] %v4225
    %4234 = vst [vmem:[#allocation14 + $0x28] sm:$0xff] %v4226
    %4235 = vst [vmem:[#allocation14 + $0x30] sm:$0xff] %v4227
    %4236 = vst [vmem:[#allocation14 + $0x38] sm:$0xff] %v4228
    // Predicated region
    $region58: #{tpu_custom_call.1} parent=1 // pred_check
      _
    $region59: #{tpu_custom_call.1} parent=1 // pred_check_branch
      %4238 = sbr.rel (0) target = $region61
    $region60: #{tpu_custom_call.1} parent=1 // pred_region
      %s4240 = ssub.s32 1024, 1024
      %4241 = vsyncadd [#allocation4], %s4240
      %s4242 = sshll.u32 [#allocation14], 4
      %s4243 = int_to_ptr.vmem [resolvable:$true] %s4242
      %4248 = dma.vmem_to_hbm [thread:$0]  %s4243, 1024, %s7, [#allocation4], 128, 128, 8
    $region61: #{tpu_custom_call.1} parent=1 // pred_fallthru
      _
    // Predicated region
    $region62: #{tpu_custom_call.1} parent=1 // pred_check
      _
    $region63: #{tpu_custom_call.1} parent=1 // pred_check_branch
      %4250 = sbr.rel (0) target = $region65
    $region64: #{tpu_custom_call.1} parent=1 // pred_region
      %4251 = dma.done [#allocation4], 1024
    $region65: #{tpu_custom_call.1} parent=1 // pred_fallthru
      _
    %4252 = vsyncpa [#allocation3], 1
    %4253 = vsyncpa [#allocation6], 1
    %4254 = vsyncpa [#allocation9], 1
    %4255 = vsyncpa [#allocation12], 1
    %4256 = vsyncpa [#allocation4], 1

</llo_original>
